<compile_context>
chip_gen: v7x
topology: tpu7x:2x2x1
jax: 0.10.0
libtpu: 0.0.40
codegen_flags: <defaults>
</compile_context>

<pallas_src>
import jax
import jax.numpy as jnp
from jax.experimental import pallas as pl
from jax.experimental.pallas import tpu as pltpu

K = 3
H1 = 256            # layer1 width
H2 = 128            # layer2 width
HPAD = 128          # lane-dense packed width for the combined (a | out) output slab
BN_EPS = 1e-5


# ----------------------------- kernels --------------------------------------

def _stats_kernel(x_ref, w1_ref, b1_ref, stats_ref):
    """Per-B-tile batch statistics of layer1+ReLU: row 0 = sum, row 1 = sum of squares."""
    h1 = jnp.dot(x_ref[...], w1_ref[...],
                 preferred_element_type=jnp.float32) + b1_ref[...]      # (BT, 256) f32
    h1 = jnp.maximum(h1, 0.0)
    s = jnp.sum(h1, axis=0, keepdims=True)                              # (1, 256) f32
    ss = jnp.sum(h1 * h1, axis=0, keepdims=True)                        # (1, 256) f32
    stats_ref[...] = jnp.concatenate(
        [s, ss, jnp.zeros((6, H1), jnp.float32)], axis=0)               # (8, 256)


def _mlp_kernel(x_ref, w1_ref, b1_ref, w2_ref, b2_ref, w3_ref, b3_ref,
                w4_ref, b4_ref, out_ref):
    """Recompute layer1, then (BN-folded) layers 2-4; pack a|out into one slab."""
    h1 = jnp.dot(x_ref[...], w1_ref[...],
                 preferred_element_type=jnp.float32) + b1_ref[...]      # (BT, 256)
    h1 = jnp.maximum(h1, 0.0)

    # BatchNorm is folded into (w2, b2) by the wrapper: h1n @ w2 + b2 == h1 @ w2' + b2'.
    h2 = jnp.dot(h1.astype(jnp.bfloat16), w2_ref[...],
                 preferred_element_type=jnp.float32) + b2_ref[...]      # (BT, 128)
    h2 = jnp.maximum(h2, 0.0)

    a = jnp.dot(h2.astype(jnp.bfloat16), w3_ref[...],
                preferred_element_type=jnp.float32) + b3_ref[...]       # (BT, 128)
    a = jnp.maximum(a, 0.0)                                             # lanes >= K are exactly 0

    out = jnp.dot(a.astype(jnp.bfloat16), w4_ref[...],
                  preferred_element_type=jnp.float32) + b4_ref[...]     # nonzero only in [K, K+d_out)

    # Disjoint nonzero lanes -> pack both results into one lane-dense f32 slab.
    out_ref[...] = a + out


# ----------------------------- wrapper ---------------------------------------

def _pick_block_b(B, requested):
    """Largest multiple-of-128 divisor of B that is <= requested, preferring >= 2 tiles."""
    assert B % 128 == 0, "batch size must be a multiple of 128"
    divisors = [b for b in range(128, B + 1, 128) if B % b == 0]
    capped = [b for b in divisors if b <= requested] or [divisors[0]]
    multi_tile = [b for b in capped if B // b >= 2]          # megacore-friendly on v7x
    return max(multi_tile) if multi_tile else max(capped)


def network_forward(x, params, *, block_b=1024):
    B, d_in = x.shape
    d_out = params["w4"].shape[1]
    assert K + d_out <= HPAD, "packed output slab requires K + d_out <= 128"
    block_b = _pick_block_b(B, block_b)
    nb = B // block_b

    # One-time bf16 casts / padded weight tiles (MXU operand dtype).
    x_bf = x.astype(jnp.bfloat16)
    w1_bf = params["w1"].astype(jnp.bfloat16)
    b1 = params["b1"]
    # layer3 padded to 128 lanes ([0:K) useful); layer4 shifted to lanes [K:K+d_out).
    w3p = jnp.zeros((H2, HPAD), jnp.bfloat16).at[:, :K].set(params["w3"].astype(jnp.bfloat16))
    b3p = jnp.zeros((1, HPAD), jnp.float32).at[:, :K].set(params["b3"])
    w4p = jnp.zeros((HPAD, HPAD), jnp.bfloat16).at[:K, K:K + d_out].set(
        params["w4"].astype(jnp.bfloat16))
    b4p = jnp.zeros((1, HPAD), jnp.float32).at[:, K:K + d_out].set(params["b4"])

    # ---- pass 1: per-tile batch statistics of relu(layer1(x)) ---------------
    partial_stats = pl.pallas_call(
        _stats_kernel,
        grid=(nb,),
        in_specs=[
            pl.BlockSpec((block_b, d_in), lambda i: (i, 0)),
            pl.BlockSpec((d_in, H1), lambda i: (0, 0)),
            pl.BlockSpec((1, H1), lambda i: (0, 0)),
        ],
        out_specs=pl.BlockSpec((None, 8, H1), lambda i: (i, 0, 0)),
        out_shape=jax.ShapeDtypeStruct((nb, 8, H1), jnp.float32),
        compiler_params=pltpu.CompilerParams(dimension_semantics=("parallel",)),
    )(x_bf, w1_bf, b1)

    # ---- tiny wrapper reduce + BN fold into layer2 ---------------------------
    stats = jnp.sum(partial_stats, axis=0)                     # (8, 256)
    inv_n = 1.0 / B
    mean = stats[0:1, :] * inv_n                               # (1, 256)
    var = jnp.maximum(stats[1:2, :] * inv_n - mean * mean, 0.0)  # biased, like BatchNorm1d
    scale = params["gamma"] * jax.lax.rsqrt(var + BN_EPS)      # (1, 256)
    shift = params["beta"] - mean * scale                      # (1, 256)
    w2f = (scale.reshape(H1, 1) * params["w2"]).astype(jnp.bfloat16)   # (256, 128) bf16
    b2f = shift @ params["w2"] + params["b2"]                  # (1, 128) f32

    # ---- pass 2: layer1 recompute + BN-folded layers 2-4, packed output -----
    slab = pl.pallas_call(
        _mlp_kernel,
        grid=(nb,),
        in_specs=[
            pl.BlockSpec((block_b, d_in), lambda i: (i, 0)),
            pl.BlockSpec((d_in, H1), lambda i: (0, 0)),
            pl.BlockSpec((1, H1), lambda i: (0, 0)),
            pl.BlockSpec((H1, H2), lambda i: (0, 0)),
            pl.BlockSpec((1, H2), lambda i: (0, 0)),
            pl.BlockSpec((H2, HPAD), lambda i: (0, 0)),
            pl.BlockSpec((1, HPAD), lambda i: (0, 0)),
            pl.BlockSpec((HPAD, HPAD), lambda i: (0, 0)),
            pl.BlockSpec((1, HPAD), lambda i: (0, 0)),
        ],
        out_specs=pl.BlockSpec((block_b, HPAD), lambda i: (i, 0)),
        out_shape=jax.ShapeDtypeStruct((B, HPAD), jnp.float32),
        compiler_params=pltpu.CompilerParams(dimension_semantics=("parallel",)),
    )(x_bf, w1_bf, b1, w2f, b2f, w3p, b3p, w4p, b4p)

    # slice the packed lane-dense slab back into the module's two outputs
    a = slab[:, :K]
    out = slab[:, K:K + d_out]
    return out, a


# ----------------------------- params & references ---------------------------

def init_params(key, d_in, d_out):
    ks = jax.random.split(key, 8)

    def lin(kw, kb, fan_in, fan_out):
        bound = 1.0 / jnp.sqrt(fan_in)
        w = jax.random.uniform(kw, (fan_in, fan_out), jnp.float32, -bound, bound)
        b = jax.random.uniform(kb, (1, fan_out), jnp.float32, -bound, bound)
        return w, b

    w1, b1 = lin(ks[0], ks[1], d_in, H1)
    w2, b2 = lin(ks[2], ks[3], H1, H2)
    w3, b3 = lin(ks[4], ks[5], H2, K)
    w4, b4 = lin(ks[6], ks[7], K, d_out)
    return dict(
        w1=w1, b1=b1,
        gamma=jnp.ones((1, H1), jnp.float32),   # BatchNorm1d weight init
        beta=jnp.zeros((1, H1), jnp.float32),   # BatchNorm1d bias init
        w2=w2, b2=b2, w3=w3, b3=b3, w4=w4, b4=b4,
    )


def reference_forward_mixed(x, p):
    """Mirror of the kernel's numerics: bf16 MXU operands, f32 stats, BN folded into w2."""
    bf, f32 = jnp.bfloat16, jnp.float32
    n = x.shape[0]
    x_bf = x.astype(bf)
    h1 = jnp.maximum(jnp.dot(x_bf, p["w1"].astype(bf),
                             preferred_element_type=f32) + p["b1"], 0.0)
    mean = jnp.sum(h1, axis=0, keepdims=True) / n
    var = jnp.maximum(jnp.sum(h1 * h1, axis=0, keepdims=True) / n - mean * mean, 0.0)
    scale = p["gamma"] * jax.lax.rsqrt(var + BN_EPS)
    shift = p["beta"] - mean * scale
    w2f = (scale.reshape(H1, 1) * p["w2"]).astype(bf)
    b2f = shift @ p["w2"] + p["b2"]
    h2 = jnp.maximum(jnp.dot(h1.astype(bf), w2f, preferred_element_type=f32) + b2f, 0.0)
    a = jnp.maximum(jnp.dot(h2.astype(bf), p["w3"].astype(bf),
                            preferred_element_type=f32) + p["b3"], 0.0)
    out = jnp.dot(a.astype(bf), p["w4"].astype(bf), preferred_element_type=f32) + p["b4"]
    return out, a


def reference_forward_f32(x, p):
    """Full-precision (f32) forward equivalent to the PyTorch module (training mode)."""
    h1 = jnp.maximum(x @ p["w1"] + p["b1"], 0.0)
    mean = jnp.mean(h1, axis=0, keepdims=True)
    var = jnp.mean((h1 - mean) ** 2, axis=0, keepdims=True)
    h1n = (h1 - mean) * jax.lax.rsqrt(var + BN_EPS) * p["gamma"] + p["beta"]
    h2 = jnp.maximum(h1n @ p["w2"] + p["b2"], 0.0)
    a = jnp.maximum(h2 @ p["w3"] + p["b3"], 0.0)
    out = a @ p["w4"] + p["b4"]
    return out, a


# ----------------------------- main -------------------------------------------

if __name__ == "__main__":
    B, d_in, d_out = 1024, 32, 4          # multi-tile: block_b=512, nb=2 (megacore-shardable)
    key = jax.random.PRNGKey(0)
    kx, kp = jax.random.split(key)
    x = jax.random.normal(kx, (B, d_in), jnp.float32)
    params = init_params(kp, d_in, d_out)

    fwd = jax.jit(network_forward, static_argnames=("block_b",))
    out, a = fwd(x, params, block_b=1024)
    jax.block_until_ready((out, a))

    assert out.shape == (B, d_out) and a.shape == (B, K)

    # tight check vs a reference that mirrors the kernel's numerics
    m_out, m_a = reference_forward_mixed(x, params)
    assert jnp.allclose(out, m_out, atol=5e-3, rtol=5e-3)
    assert jnp.allclose(a, m_a, atol=5e-3, rtol=5e-3)

    # semantic check vs the full-precision f32 forward (bf16-MXU tolerance)
    f_out, f_a = reference_forward_f32(x, params)
    assert jnp.allclose(out, f_out, atol=5e-2, rtol=5e-2)
    assert jnp.allclose(a, f_a, atol=5e-2, rtol=5e-2)

    print("KERNEL_OK")
</pallas_src>

<mosaic_0001>
module attributes {stable_mosaic.version = 11 : i64} {
  func.func @_stats_kernel(%arg0: i32, %arg1: memref<512x32xbf16, #tpu.memory_space<vmem>>, %arg2: memref<32x256xbf16, #tpu.memory_space<vmem>>, %arg3: memref<1x256xf32, #tpu.memory_space<vmem>>, %arg4: memref<1x8x256xf32, #tpu.memory_space<vmem>>) attributes {dimension_semantics = [#tpu.dimension_semantics<parallel>], iteration_bounds = array<i64: 2>, scalar_prefetch = 0 : i64, scratch_operands = 0 : i64, tpu.core_type = #tpu.core_type<tc>, window_params = [{transform_indices = @transform_0, window_bounds = array<i64: 512, 32>}, {pipeline_mode = #tpu.pipeline_mode<synchronous>, transform_indices = @transform_1, window_bounds = array<i64: 32, 256>}, {pipeline_mode = #tpu.pipeline_mode<synchronous>, transform_indices = @transform_2, window_bounds = array<i64: 1, 256>}, {transform_indices = @transform_3, window_bounds = array<i64: 1, 8, 256>}]} {
    %c0 = arith.constant 0 : index
    %c0_0 = arith.constant 0 : index
    %0 = vector.load %arg1[%c0, %c0_0] : memref<512x32xbf16, #tpu.memory_space<vmem>>, vector<512x32xbf16>
    %c0_1 = arith.constant 0 : index
    %c0_2 = arith.constant 0 : index
    %1 = vector.load %arg2[%c0_1, %c0_2] : memref<32x256xbf16, #tpu.memory_space<vmem>>, vector<32x256xbf16>
    %cst = arith.constant dense<0.000000e+00> : vector<512x256xf32>
    %2 = tpu.matmul %0, %1, %cst {dimension_numbers = #tpu.dot_dimension_numbers<[1], [0], [0], [1], [0, 0, 1, 1], [], []>} : vector<512x32xbf16>, vector<32x256xbf16>, vector<512x256xf32> -> vector<512x256xf32>
    %c0_3 = arith.constant 0 : index
    %c0_4 = arith.constant 0 : index
    %3 = vector.load %arg3[%c0_3, %c0_4] : memref<1x256xf32, #tpu.memory_space<vmem>>, vector<1x256xf32>
    %4 = vector.broadcast %3 : vector<1x256xf32> to vector<512x256xf32>
    %5 = arith.addf %2, %4 : vector<512x256xf32>
    %cst_5 = arith.constant 0.000000e+00 : f32
    %6 = vector.broadcast %cst_5 : f32 to vector<512x256xf32>
    %7 = arith.maximumf %5, %6 : vector<512x256xf32>
    %cst_6 = arith.constant dense<0.000000e+00> : vector<256xf32>
    %8 = vector.multi_reduction <add>, %7, %cst_6 [0] : vector<512x256xf32> to vector<256xf32>
    %9 = vector.shape_cast %8 : vector<256xf32> to vector<1x256xf32>
    %10 = arith.mulf %7, %7 : vector<512x256xf32>
    %cst_7 = arith.constant dense<0.000000e+00> : vector<256xf32>
    %11 = vector.multi_reduction <add>, %10, %cst_7 [0] : vector<512x256xf32> to vector<256xf32>
    %12 = vector.shape_cast %11 : vector<256xf32> to vector<1x256xf32>
    %cst_8 = arith.constant 0.000000e+00 : f32
    %13 = vector.broadcast %cst_8 : f32 to vector<6x256xf32>
    %14 = tpu.concatenate %9, %12, %13 in 0 : vector<1x256xf32>, vector<1x256xf32>, vector<6x256xf32> -> vector<8x256xf32>
    %c0_9 = arith.constant 0 : index
    %c0_10 = arith.constant 0 : index
    %c0_11 = arith.constant 0 : index
    %15 = vector.load %arg4[%c0_9, %c0_10, %c0_11] : memref<1x8x256xf32, #tpu.memory_space<vmem>>, vector<1x8x256xf32>
    %16 = vector.shape_cast %15 : vector<1x8x256xf32> to vector<8x256xf32>
    %17 = vector.shape_cast %14 : vector<8x256xf32> to vector<1x8x256xf32>
    tpu.vector_store %arg4[%c0_9, %c0_10, %c0_11], %17 {strides = array<i32>} : memref<1x8x256xf32, #tpu.memory_space<vmem>>, vector<1x8x256xf32>,
    return
  }
  func.func @transform_0(%arg0: i32) -> (i32, i32) {
    %c0_i32 = arith.constant 0 : i32
    %c0_i32_0 = arith.constant 0 : i32
    return %arg0, %c0_i32 : i32, i32
  }
  func.func @transform_1(%arg0: i32) -> (i32, i32) {
    %c0_i32 = arith.constant 0 : i32
    %c0_i32_0 = arith.constant 0 : i32
    %c0_i32_1 = arith.constant 0 : i32
    return %c0_i32, %c0_i32_0 : i32, i32
  }
  func.func @transform_2(%arg0: i32) -> (i32, i32) {
    %c0_i32 = arith.constant 0 : i32
    %c0_i32_0 = arith.constant 0 : i32
    %c0_i32_1 = arith.constant 0 : i32
    return %c0_i32, %c0_i32_0 : i32, i32
  }
  func.func @transform_3(%arg0: i32) -> (i32, i32, i32) {
    %c0_i32 = arith.constant 0 : i32
    %c0_i32_0 = arith.constant 0 : i32
    %c0_i32_1 = arith.constant 0 : i32
    return %arg0, %c0_i32, %c0_i32_0 : i32, i32, i32
  }
}

module attributes {stable_mosaic.version = 11 : i64} {
  func.func @_mlp_kernel(%arg0: i32, %arg1: memref<512x32xbf16, #tpu.memory_space<vmem>>, %arg2: memref<32x256xbf16, #tpu.memory_space<vmem>>, %arg3: memref<1x256xf32, #tpu.memory_space<vmem>>, %arg4: memref<256x128xbf16, #tpu.memory_space<vmem>>, %arg5: memref<1x128xf32, #tpu.memory_space<vmem>>, %arg6: memref<128x128xbf16, #tpu.memory_space<vmem>>, %arg7: memref<1x128xf32, #tpu.memory_space<vmem>>, %arg8: memref<128x128xbf16, #tpu.memory_space<vmem>>, %arg9: memref<1x128xf32, #tpu.memory_space<vmem>>, %arg10: memref<512x128xf32, #tpu.memory_space<vmem>>) attributes {dimension_semantics = [#tpu.dimension_semantics<parallel>], iteration_bounds = array<i64: 2>, scalar_prefetch = 0 : i64, scratch_operands = 0 : i64, tpu.core_type = #tpu.core_type<tc>, window_params = [{transform_indices = @transform_0, window_bounds = array<i64: 512, 32>}, {pipeline_mode = #tpu.pipeline_mode<synchronous>, transform_indices = @transform_1, window_bounds = array<i64: 32, 256>}, {pipeline_mode = #tpu.pipeline_mode<synchronous>, transform_indices = @transform_2, window_bounds = array<i64: 1, 256>}, {pipeline_mode = #tpu.pipeline_mode<synchronous>, transform_indices = @transform_3, window_bounds = array<i64: 256, 128>}, {pipeline_mode = #tpu.pipeline_mode<synchronous>, transform_indices = @transform_4, window_bounds = array<i64: 1, 128>}, {pipeline_mode = #tpu.pipeline_mode<synchronous>, transform_indices = @transform_5, window_bounds = array<i64: 128, 128>}, {pipeline_mode = #tpu.pipeline_mode<synchronous>, transform_indices = @transform_6, window_bounds = array<i64: 1, 128>}, {pipeline_mode = #tpu.pipeline_mode<synchronous>, transform_indices = @transform_7, window_bounds = array<i64: 128, 128>}, {pipeline_mode = #tpu.pipeline_mode<synchronous>, transform_indices = @transform_8, window_bounds = array<i64: 1, 128>}, {transform_indices = @transform_9, window_bounds = array<i64: 512, 128>}]} {
    %c0 = arith.constant 0 : index
    %c0_0 = arith.constant 0 : index
    %0 = vector.load %arg1[%c0, %c0_0] : memref<512x32xbf16, #tpu.memory_space<vmem>>, vector<512x32xbf16>
    %c0_1 = arith.constant 0 : index
    %c0_2 = arith.constant 0 : index
    %1 = vector.load %arg2[%c0_1, %c0_2] : memref<32x256xbf16, #tpu.memory_space<vmem>>, vector<32x256xbf16>
    %cst = arith.constant dense<0.000000e+00> : vector<512x256xf32>
    %2 = tpu.matmul %0, %1, %cst {dimension_numbers = #tpu.dot_dimension_numbers<[1], [0], [0], [1], [0, 0, 1, 1], [], []>} : vector<512x32xbf16>, vector<32x256xbf16>, vector<512x256xf32> -> vector<512x256xf32>
    %c0_3 = arith.constant 0 : index
    %c0_4 = arith.constant 0 : index
    %3 = vector.load %arg3[%c0_3, %c0_4] : memref<1x256xf32, #tpu.memory_space<vmem>>, vector<1x256xf32>
    %4 = vector.broadcast %3 : vector<1x256xf32> to vector<512x256xf32>
    %5 = arith.addf %2, %4 : vector<512x256xf32>
    %cst_5 = arith.constant 0.000000e+00 : f32
    %6 = vector.broadcast %cst_5 : f32 to vector<512x256xf32>
    %7 = arith.maximumf %5, %6 : vector<512x256xf32>
    %8 = arith.truncf %7 : vector<512x256xf32> to vector<512x256xbf16>
    %c0_6 = arith.constant 0 : index
    %c0_7 = arith.constant 0 : index
    %9 = vector.load %arg4[%c0_6, %c0_7] : memref<256x128xbf16, #tpu.memory_space<vmem>>, vector<256x128xbf16>
    %cst_8 = arith.constant dense<0.000000e+00> : vector<512x128xf32>
    %10 = tpu.matmul %8, %9, %cst_8 {dimension_numbers = #tpu.dot_dimension_numbers<[1], [0], [0], [1], [0, 0, 1, 1], [], []>} : vector<512x256xbf16>, vector<256x128xbf16>, vector<512x128xf32> -> vector<512x128xf32>
    %c0_9 = arith.constant 0 : index
    %c0_10 = arith.constant 0 : index
    %11 = vector.load %arg5[%c0_9, %c0_10] : memref<1x128xf32, #tpu.memory_space<vmem>>, vector<1x128xf32>
    %12 = vector.broadcast %11 : vector<1x128xf32> to vector<512x128xf32>
    %13 = arith.addf %10, %12 : vector<512x128xf32>
    %cst_11 = arith.constant 0.000000e+00 : f32
    %14 = vector.broadcast %cst_11 : f32 to vector<512x128xf32>
    %15 = arith.maximumf %13, %14 : vector<512x128xf32>
    %16 = arith.truncf %15 : vector<512x128xf32> to vector<512x128xbf16>
    %c0_12 = arith.constant 0 : index
    %c0_13 = arith.constant 0 : index
    %17 = vector.load %arg6[%c0_12, %c0_13] : memref<128x128xbf16, #tpu.memory_space<vmem>>, vector<128x128xbf16>
    %cst_14 = arith.constant dense<0.000000e+00> : vector<512x128xf32>
    %18 = tpu.matmul %16, %17, %cst_14 {dimension_numbers = #tpu.dot_dimension_numbers<[1], [0], [0], [1], [0, 0, 1, 1], [], []>} : vector<512x128xbf16>, vector<128x128xbf16>, vector<512x128xf32> -> vector<512x128xf32>
    %c0_15 = arith.constant 0 : index
    %c0_16 = arith.constant 0 : index
    %19 = vector.load %arg7[%c0_15, %c0_16] : memref<1x128xf32, #tpu.memory_space<vmem>>, vector<1x128xf32>
    %20 = vector.broadcast %19 : vector<1x128xf32> to vector<512x128xf32>
    %21 = arith.addf %18, %20 : vector<512x128xf32>
    %cst_17 = arith.constant 0.000000e+00 : f32
    %22 = vector.broadcast %cst_17 : f32 to vector<512x128xf32>
    %23 = arith.maximumf %21, %22 : vector<512x128xf32>
    %24 = arith.truncf %23 : vector<512x128xf32> to vector<512x128xbf16>
    %c0_18 = arith.constant 0 : index
    %c0_19 = arith.constant 0 : index
    %25 = vector.load %arg8[%c0_18, %c0_19] : memref<128x128xbf16, #tpu.memory_space<vmem>>, vector<128x128xbf16>
    %cst_20 = arith.constant dense<0.000000e+00> : vector<512x128xf32>
    %26 = tpu.matmul %24, %25, %cst_20 {dimension_numbers = #tpu.dot_dimension_numbers<[1], [0], [0], [1], [0, 0, 1, 1], [], []>} : vector<512x128xbf16>, vector<128x128xbf16>, vector<512x128xf32> -> vector<512x128xf32>
    %c0_21 = arith.constant 0 : index
    %c0_22 = arith.constant 0 : index
    %27 = vector.load %arg9[%c0_21, %c0_22] : memref<1x128xf32, #tpu.memory_space<vmem>>, vector<1x128xf32>
    %28 = vector.broadcast %27 : vector<1x128xf32> to vector<512x128xf32>
    %29 = arith.addf %26, %28 : vector<512x128xf32>
    %30 = arith.addf %23, %29 : vector<512x128xf32>
    %c0_23 = arith.constant 0 : index
    %c0_24 = arith.constant 0 : index
    %31 = vector.load %arg10[%c0_23, %c0_24] : memref<512x128xf32, #tpu.memory_space<vmem>>, vector<512x128xf32>
    tpu.vector_store %arg10[%c0_23, %c0_24], %30 {strides = array<i32>} : memref<512x128xf32, #tpu.memory_space<vmem>>, vector<512x128xf32>,
    return
  }
  func.func @transform_0(%arg0: i32) -> (i32, i32) {
    %c0_i32 = arith.constant 0 : i32
    %c0_i32_0 = arith.constant 0 : i32
    return %arg0, %c0_i32 : i32, i32
  }
  func.func @transform_1(%arg0: i32) -> (i32, i32) {
    %c0_i32 = arith.constant 0 : i32
    %c0_i32_0 = arith.constant 0 : i32
    %c0_i32_1 = arith.constant 0 : i32
    return %c0_i32, %c0_i32_0 : i32, i32
  }
  func.func @transform_2(%arg0: i32) -> (i32, i32) {
    %c0_i32 = arith.constant 0 : i32
    %c0_i32_0 = arith.constant 0 : i32
    %c0_i32_1 = arith.constant 0 : i32
    return %c0_i32, %c0_i32_0 : i32, i32
  }
  func.func @transform_3(%arg0: i32) -> (i32, i32) {
    %c0_i32 = arith.constant 0 : i32
    %c0_i32_0 = arith.constant 0 : i32
    %c0_i32_1 = arith.constant 0 : i32
    return %c0_i32, %c0_i32_0 : i32, i32
  }
  func.func @transform_4(%arg0: i32) -> (i32, i32) {
    %c0_i32 = arith.constant 0 : i32
    %c0_i32_0 = arith.constant 0 : i32
    %c0_i32_1 = arith.constant 0 : i32
    return %c0_i32, %c0_i32_0 : i32, i32
  }
  func.func @transform_5(%arg0: i32) -> (i32, i32) {
    %c0_i32 = arith.constant 0 : i32
    %c0_i32_0 = arith.constant 0 : i32
    %c0_i32_1 = arith.constant 0 : i32
    return %c0_i32, %c0_i32_0 : i32, i32
  }
  func.func @transform_6(%arg0: i32) -> (i32, i32) {
    %c0_i32 = arith.constant 0 : i32
    %c0_i32_0 = arith.constant 0 : i32
    %c0_i32_1 = arith.constant 0 : i32
    return %c0_i32, %c0_i32_0 : i32, i32
  }
  func.func @transform_7(%arg0: i32) -> (i32, i32) {
    %c0_i32 = arith.constant 0 : i32
    %c0_i32_0 = arith.constant 0 : i32
    %c0_i32_1 = arith.constant 0 : i32
    return %c0_i32, %c0_i32_0 : i32, i32
  }
  func.func @transform_8(%arg0: i32) -> (i32, i32) {
    %c0_i32 = arith.constant 0 : i32
    %c0_i32_0 = arith.constant 0 : i32
    %c0_i32_1 = arith.constant 0 : i32
    return %c0_i32, %c0_i32_0 : i32, i32
  }
  func.func @transform_9(%arg0: i32) -> (i32, i32) {
    %c0_i32 = arith.constant 0 : i32
    %c0_i32_0 = arith.constant 0 : i32
    return %arg0, %c0_i32 : i32, i32
  }
}

</mosaic_0001>

<llo_original>
// kernel: network_forward.2
$region0: #{network_forward.2}
  #allocation0 [shape = 'u32[]', space=smem, size = 0x4, offset = 0x4, fixed_abs, tag = 'smem constant byte address 0x4 - core index']
  #allocation1 [shape = 'u32[144,128]{1,0:T(1,128)}', space=vmem, size = 0x12000, scoped, tag = 'internal scratch']
  %s0 = inlined_call_operand.vmem [shape: bf16[1024,32], index: 0, kind: input, shape index: {}]
  %s1 = inlined_call_operand.vmem [shape: bf16[32,256], index: 1, kind: input, shape index: {}]
  %s2 = inlined_call_operand.vmem [shape: f32[1,256], index: 2, kind: input, shape index: {}]
  %s3 = inlined_call_operand.vmem [shape: f32[2,8,256], index: 3, kind: output, shape index: {}]
  %s4 = sld [smem:[#allocation0]]
  $region45: #{network_forward.2} parent=0
    _
  %s6 = ssub.s32 1, %s4
  %s7 = scalar_select 0, %s6, %s4
  loop: start=0, step=1, limit=4
  $region2: #{network_forward.2} parent=0 // loop_pre_header
    _
  $region3: #{network_forward.2} parent=0 // loop_header
    %s9 = sphi 0, %s13
    %p10 = scmp.ge.s32.totalorder %s9, 4
    %s19 = sphi 0, %s21
    %s22 = sphi 0, %s19
    %s23 = sphi 0, %s22
    %s39 = sphi 0, %s23
    %s43 = sphi 0, %s43
    %s45 = sphi 0, %s43
    %s46 = sphi 0, %s45
    %s60 = sphi 0, %s46
    %s64 = sphi 0, %s64
    %s66 = sphi 0, %s64
    %s67 = sphi 0, %s66
    %s81 = sphi 0, %s67
    %s87 = sphi 0, %s89
    %s90 = sphi 0, %s87
    %s91 = sphi 0, %s90
    %s107 = sphi 0, %s91
  $region4: #{network_forward.2} parent=0 // loop_header_branch
    %12 = sbr.rel (%p10) target = $region8
  $region5: #{network_forward.2} parent=0 // loop_body
    %s14 = ssub.s32 %s9, 1
    %s15 = ssub.s32 %s9, 2
    %s16 = sadd.s32 %s9, 1
    %s17 = ssub.s32 %s9, %s16
    %p18 = scmp.eq.s32.totalorder %s17, 0
    %s20 = sadd.s32 %s19, 1
    %s21 = scalar_select %p18, %s19, %s20
    %p24 = pneg %p18
    %p25 = scmp.eq.s32.totalorder %s9, 1
    %p26 = por %p24, %p25
    %p27 = scmp.ne.s32.totalorder %s19, %s22
    %p28 = scmp.eq.s32.totalorder %s9, 0
    %p29 = por %p27, %p28
    %p30 = scmp.ne.s32.totalorder %s19, %s22
    %p31 = scmp.eq.s32.totalorder %s14, 1
    %p32 = por %p30, %p31
    %p33 = scmp.ne.s32.totalorder %s22, %s23
    %p34 = scmp.eq.s32.totalorder %s14, 0
    %p35 = por %p33, %p34
    %p36 = scmp.ne.s32.totalorder %s22, %s23
    %p37 = scmp.eq.s32.totalorder %s15, 1
    %p38 = por %p36, %p37
    %p40 = scmp.ne.s32.totalorder %s23, %s39
    %p41 = scmp.eq.s32.totalorder %s15, 0
    %p42 = por %p40, %p41
    %s44 = sadd.s32 %s43, 1
    %p47 = scmp.eq.s32.totalorder %s9, 1
    %p48 = scmp.ne.s32.totalorder %s43, %s45
    %p49 = scmp.eq.s32.totalorder %s9, 0
    %p50 = por %p48, %p49
    %p51 = scmp.ne.s32.totalorder %s43, %s45
    %p52 = scmp.eq.s32.totalorder %s14, 1
    %p53 = por %p51, %p52
    %p54 = scmp.ne.s32.totalorder %s45, %s46
    %p55 = scmp.eq.s32.totalorder %s14, 0
    %p56 = por %p54, %p55
    %p57 = scmp.ne.s32.totalorder %s45, %s46
    %p58 = scmp.eq.s32.totalorder %s15, 1
    %p59 = por %p57, %p58
    %p61 = scmp.ne.s32.totalorder %s46, %s60
    %p62 = scmp.eq.s32.totalorder %s15, 0
    %p63 = por %p61, %p62
    %s65 = sadd.s32 %s64, 1
    %p68 = scmp.eq.s32.totalorder %s9, 1
    %p69 = scmp.ne.s32.totalorder %s64, %s66
    %p70 = scmp.eq.s32.totalorder %s9, 0
    %p71 = por %p69, %p70
    %p72 = scmp.ne.s32.totalorder %s64, %s66
    %p73 = scmp.eq.s32.totalorder %s14, 1
    %p74 = por %p72, %p73
    %p75 = scmp.ne.s32.totalorder %s66, %s67
    %p76 = scmp.eq.s32.totalorder %s14, 0
    %p77 = por %p75, %p76
    %p78 = scmp.ne.s32.totalorder %s66, %s67
    %p79 = scmp.eq.s32.totalorder %s15, 1
    %p80 = por %p78, %p79
    %p82 = scmp.ne.s32.totalorder %s67, %s81
    %p83 = scmp.eq.s32.totalorder %s15, 0
    %p84 = por %p82, %p83
    %s85 = ssub.s32 %s9, %s16
    %p86 = scmp.eq.s32.totalorder %s85, 0
    %s88 = sadd.s32 %s87, 1
    %s89 = scalar_select %p86, %s87, %s88
    %p92 = pneg %p86
    %p93 = scmp.eq.s32.totalorder %s9, 1
    %p94 = por %p92, %p93
    %p95 = scmp.ne.s32.totalorder %s87, %s90
    %p96 = scmp.eq.s32.totalorder %s9, 0
    %p97 = por %p95, %p96
    %p98 = scmp.ne.s32.totalorder %s87, %s90
    %p99 = scmp.eq.s32.totalorder %s14, 1
    %p100 = por %p98, %p99
    %p101 = scmp.ne.s32.totalorder %s90, %s91
    %p102 = scmp.eq.s32.totalorder %s14, 0
    %p103 = por %p101, %p102
    %p104 = scmp.ne.s32.totalorder %s90, %s91
    %p105 = scmp.eq.s32.totalorder %s15, 1
    %p106 = por %p104, %p105
    %p108 = scmp.ne.s32.totalorder %s91, %s107
    %p109 = scmp.eq.s32.totalorder %s15, 0
    %p110 = por %p108, %p109
    %p111 = scmp.le.s32.totalorder 1, %s9
    %p112 = scmp.lt.s32.totalorder %s9, 3
    %p113 = pnand %p111, %p112
    %p114 = pneg %p113
    // Predicated region
    $region9: #{network_forward.2} parent=5 // pred_check
      _
    $region10: #{network_forward.2} parent=5 // pred_check_branch
      %116 = sbr.rel (%p113) target = $region12
    $region11: #{network_forward.2} parent=5 // pred_region
      %s117 = ssub.s32 %s9, 1
      // Predicated region
      $region13: #{network_forward.2} parent=11 // pred_check
        %p118 = pneg %p56
      $region14: #{network_forward.2} parent=11 // pred_check_branch
        %120 = sbr.rel (%p118) target = $region16
      $region15: #{network_forward.2} parent=11 // pred_region
        _
      $region16: #{network_forward.2} parent=11 // pred_fallthru
        _
      // Predicated region
      $region17: #{network_forward.2} parent=11 // pred_check
        %p121 = pneg %p77
      $region18: #{network_forward.2} parent=11 // pred_check_branch
        %123 = sbr.rel (%p121) target = $region20
      $region19: #{network_forward.2} parent=11 // pred_region
        _
      $region20: #{network_forward.2} parent=11 // pred_fallthru
        _
    $region12: #{network_forward.2} parent=5 // pred_fallthru
      _
    %p124 = scmp.lt.s32.totalorder %s9, 2
    // Predicated region
    $region21: #{network_forward.2} parent=5 // pred_check
      %p125 = pneg %p124
    $region22: #{network_forward.2} parent=5 // pred_check_branch
      %127 = sbr.rel (%p125) target = $region24
    $region23: #{network_forward.2} parent=5 // pred_region
      // Predicated region
      $region25: #{network_forward.2} parent=23 // pred_check
        %p128 = pneg %p29
      $region26: #{network_forward.2} parent=23 // pred_check_branch
        %130 = sbr.rel (%p128) target = $region28
      $region27: #{network_forward.2} parent=23 // pred_region
        %s131 = smul.u32 64, %s9
        %p132 = scmp.lt.s32.totalorder %s131, 127
        %s133 = scalar_select %p132, %s131, 127
        %s134 = smul.addr %s133, 4
        %s135 = scalar_lea.vmem %s0, %s134
        %s136 = smul.u32 64, %s9
      $region28: #{network_forward.2} parent=23 // pred_fallthru
        _
    $region24: #{network_forward.2} parent=5 // pred_fallthru
      _
    %p137 = scmp.le.s32.totalorder 1, %s9
    %p138 = scmp.lt.s32.totalorder %s9, 3
    %p139 = pnand %p137, %p138
    %p140 = pneg %p139
    // Predicated region
    $region29: #{network_forward.2} parent=5 // pred_check
      _
    $region30: #{network_forward.2} parent=5 // pred_check_branch
      %142 = sbr.rel (%p139) target = $region32
    $region31: #{network_forward.2} parent=5 // pred_region
      %s143 = ssub.s32 %s9, 1
      %s144 = smul.u32 64, %s14
      %p145 = scmp.lt.s32.totalorder %s144, 127
      %s146 = scalar_select %p145, %s144, 127
      %s147 = smul.addr %s146, 4
      %s148 = scalar_lea.vmem %s0, %s147
      %p149 = pneg %p35
      %p150 = pneg %p32
      %p151 = pneg %p56
      %p152 = pneg %p53
      %p153 = pneg %p77
      %p154 = pneg %p74
      %p155 = pneg %p103
      %p156 = pneg %p100
      %p157 = scmp.lt.s32.totalorder %s14, 1
      %s158 = scalar_select %p157, %s14, 1
      %s159 = smul.addr %s158, 2
      %s160 = smul.addr %s159, 8
      %s161 = scalar_lea.vmem %s3, %s160
      %s162 = smul.u32 64, %s14
      %p163 = scmp.lt.s32.totalorder %s162, 127
      %s164 = scalar_select %p163, %s162, 127
      %s165 = smul.addr %s164, 4
      %s166 = scalar_lea.vmem %s0, %s165
      %s167 = smul.u32 64, %s14
      %p168 = scmp.lt.s32.totalorder %s14, 1
      %s169 = scalar_select %p168, %s14, 1
      %s170 = smul.addr %s169, 2
      %s171 = smul.addr %s170, 8
      %s172 = scalar_lea.vmem %s3, %s171
      %v174 = vld [vmem:[%s166] sm:$0xf]
      %v175 = vld [vmem:[%s166 + $0x4] sm:$0xf]
      %v176 = vld [vmem:[%s166 + $0x8] sm:$0xf]
      %v177 = vld [vmem:[%s166 + $0xc] sm:$0xf]
      %v178 = vld [vmem:[%s166 + $0x10] sm:$0xf]
      %v179 = vld [vmem:[%s166 + $0x14] sm:$0xf]
      %v180 = vld [vmem:[%s166 + $0x18] sm:$0xf]
      %v181 = vld [vmem:[%s166 + $0x1c] sm:$0xf]
      %v182 = vld [vmem:[%s166 + $0x20] sm:$0xf]
      %v183 = vld [vmem:[%s166 + $0x24] sm:$0xf]
      %v184 = vld [vmem:[%s166 + $0x28] sm:$0xf]
      %v185 = vld [vmem:[%s166 + $0x2c] sm:$0xf]
      %v186 = vld [vmem:[%s166 + $0x30] sm:$0xf]
      %v187 = vld [vmem:[%s166 + $0x34] sm:$0xf]
      %v188 = vld [vmem:[%s166 + $0x38] sm:$0xf]
      %v189 = vld [vmem:[%s166 + $0x3c] sm:$0xf]
      %v190 = vld [vmem:[%s166 + $0x40] sm:$0xf]
      %v191 = vld [vmem:[%s166 + $0x44] sm:$0xf]
      %v192 = vld [vmem:[%s166 + $0x48] sm:$0xf]
      %v193 = vld [vmem:[%s166 + $0x4c] sm:$0xf]
      %v194 = vld [vmem:[%s166 + $0x50] sm:$0xf]
      %v195 = vld [vmem:[%s166 + $0x54] sm:$0xf]
      %v196 = vld [vmem:[%s166 + $0x58] sm:$0xf]
      %v197 = vld [vmem:[%s166 + $0x5c] sm:$0xf]
      %v198 = vld [vmem:[%s166 + $0x60] sm:$0xf]
      %v199 = vld [vmem:[%s166 + $0x64] sm:$0xf]
      %v200 = vld [vmem:[%s166 + $0x68] sm:$0xf]
      %v201 = vld [vmem:[%s166 + $0x6c] sm:$0xf]
      %v202 = vld [vmem:[%s166 + $0x70] sm:$0xf]
      %v203 = vld [vmem:[%s166 + $0x74] sm:$0xf]
      %v204 = vld [vmem:[%s166 + $0x78] sm:$0xf]
      %v205 = vld [vmem:[%s166 + $0x7c] sm:$0xf]
      %v206 = vld [vmem:[%s166 + $0x80] sm:$0xf]
      %v207 = vld [vmem:[%s166 + $0x84] sm:$0xf]
      %v208 = vld [vmem:[%s166 + $0x88] sm:$0xf]
      %v209 = vld [vmem:[%s166 + $0x8c] sm:$0xf]
      %v210 = vld [vmem:[%s166 + $0x90] sm:$0xf]
      %v211 = vld [vmem:[%s166 + $0x94] sm:$0xf]
      %v212 = vld [vmem:[%s166 + $0x98] sm:$0xf]
      %v213 = vld [vmem:[%s166 + $0x9c] sm:$0xf]
      %v214 = vld [vmem:[%s166 + $0xa0] sm:$0xf]
      %v215 = vld [vmem:[%s166 + $0xa4] sm:$0xf]
      %v216 = vld [vmem:[%s166 + $0xa8] sm:$0xf]
      %v217 = vld [vmem:[%s166 + $0xac] sm:$0xf]
      %v218 = vld [vmem:[%s166 + $0xb0] sm:$0xf]
      %v219 = vld [vmem:[%s166 + $0xb4] sm:$0xf]
      %v220 = vld [vmem:[%s166 + $0xb8] sm:$0xf]
      %v221 = vld [vmem:[%s166 + $0xbc] sm:$0xf]
      %v222 = vld [vmem:[%s166 + $0xc0] sm:$0xf]
      %v223 = vld [vmem:[%s166 + $0xc4] sm:$0xf]
      %v224 = vld [vmem:[%s166 + $0xc8] sm:$0xf]
      %v225 = vld [vmem:[%s166 + $0xcc] sm:$0xf]
      %v226 = vld [vmem:[%s166 + $0xd0] sm:$0xf]
      %v227 = vld [vmem:[%s166 + $0xd4] sm:$0xf]
      %v228 = vld [vmem:[%s166 + $0xd8] sm:$0xf]
      %v229 = vld [vmem:[%s166 + $0xdc] sm:$0xf]
      %v230 = vld [vmem:[%s166 + $0xe0] sm:$0xf]
      %v231 = vld [vmem:[%s166 + $0xe4] sm:$0xf]
      %v232 = vld [vmem:[%s166 + $0xe8] sm:$0xf]
      %v233 = vld [vmem:[%s166 + $0xec] sm:$0xf]
      %v234 = vld [vmem:[%s166 + $0xf0] sm:$0xf]
      %v235 = vld [vmem:[%s166 + $0xf4] sm:$0xf]
      %v236 = vld [vmem:[%s166 + $0xf8] sm:$0xf]
      %v237 = vld [vmem:[%s166 + $0xfc] sm:$0xf]
      %v238 = vld [vmem:[%s1] sm:$0xff]
      %v239 = vld [vmem:[%s1 + $0x8] sm:$0xff]
      %v240 = vld [vmem:[%s1 + $0x10] sm:$0xff]
      %v241 = vld [vmem:[%s1 + $0x18] sm:$0xff]
      %v242 = vld [vmem:[%s2] sm:$0x3]
      %v244 = vlaneseq
      %v245 = vshrl.u32 %v244, 7
      %v246 = vsub.s32 0, %v245
      %v247 = vrot.slane %v242, %v246
      %v248 = vlaneseq
      %v249 = vshrl.u32 %v248, 7
      %v250 = vsub.s32 1, %v249
      %v251 = vrot.slane %v242, %v250
      %v318 = vunpack.c.l.b16 %v174
      %v319 = vunpack.c.l.b16 %v175
      %v320 = vunpack.c.l.b16 %v176
      %v321 = vunpack.c.l.b16 %v177
      %v322 = vunpack.c.l.b16 %v178
      %v323 = vunpack.c.l.b16 %v179
      %v324 = vunpack.c.l.b16 %v180
      %v325 = vunpack.c.l.b16 %v181
      %v326 = vunpack.c.l.b16 %v182
      %v327 = vunpack.c.l.b16 %v183
      %v328 = vunpack.c.l.b16 %v184
      %v329 = vunpack.c.l.b16 %v185
      %v330 = vunpack.c.l.b16 %v186
      %v331 = vunpack.c.l.b16 %v187
      %v332 = vunpack.c.l.b16 %v188
      %v333 = vunpack.c.l.b16 %v189
      %v334 = vunpack.c.l.b16 %v190
      %v335 = vunpack.c.l.b16 %v191
      %v336 = vunpack.c.l.b16 %v192
      %v337 = vunpack.c.l.b16 %v193
      %v338 = vunpack.c.l.b16 %v194
      %v339 = vunpack.c.l.b16 %v195
      %v340 = vunpack.c.l.b16 %v196
      %v341 = vunpack.c.l.b16 %v197
      %v342 = vunpack.c.l.b16 %v198
      %v343 = vunpack.c.l.b16 %v199
      %v344 = vunpack.c.l.b16 %v200
      %v345 = vunpack.c.l.b16 %v201
      %v346 = vunpack.c.l.b16 %v202
      %v347 = vunpack.c.l.b16 %v203
      %v348 = vunpack.c.l.b16 %v204
      %v349 = vunpack.c.l.b16 %v205
      %v350 = vunpack.c.l.b16 %v206
      %v351 = vunpack.c.l.b16 %v207
      %v352 = vunpack.c.l.b16 %v208
      %v353 = vunpack.c.l.b16 %v209
      %v354 = vunpack.c.l.b16 %v210
      %v355 = vunpack.c.l.b16 %v211
      %v356 = vunpack.c.l.b16 %v212
      %v357 = vunpack.c.l.b16 %v213
      %v358 = vunpack.c.l.b16 %v214
      %v359 = vunpack.c.l.b16 %v215
      %v360 = vunpack.c.l.b16 %v216
      %v361 = vunpack.c.l.b16 %v217
      %v362 = vunpack.c.l.b16 %v218
      %v363 = vunpack.c.l.b16 %v219
      %v364 = vunpack.c.l.b16 %v220
      %v365 = vunpack.c.l.b16 %v221
      %v366 = vunpack.c.l.b16 %v222
      %v367 = vunpack.c.l.b16 %v223
      %v368 = vunpack.c.l.b16 %v224
      %v369 = vunpack.c.l.b16 %v225
      %v370 = vunpack.c.l.b16 %v226
      %v371 = vunpack.c.l.b16 %v227
      %v372 = vunpack.c.l.b16 %v228
      %v373 = vunpack.c.l.b16 %v229
      %v374 = vunpack.c.l.b16 %v230
      %v375 = vunpack.c.l.b16 %v231
      %v376 = vunpack.c.l.b16 %v232
      %v377 = vunpack.c.l.b16 %v233
      %v378 = vunpack.c.l.b16 %v234
      %v379 = vunpack.c.l.b16 %v235
      %v380 = vunpack.c.l.b16 %v236
      %v381 = vunpack.c.l.b16 %v237
      %v382 = vpack.c.b16 %v319, %v318
      %v383 = vpack.c.b16 %v321, %v320
      %v384 = vpack.c.b16 %v323, %v322
      %v385 = vpack.c.b16 %v325, %v324
      %v386 = vpack.c.b16 %v327, %v326
      %v387 = vpack.c.b16 %v329, %v328
      %v388 = vpack.c.b16 %v331, %v330
      %v389 = vpack.c.b16 %v333, %v332
      %v390 = vpack.c.b16 %v335, %v334
      %v391 = vpack.c.b16 %v337, %v336
      %v392 = vpack.c.b16 %v339, %v338
      %v393 = vpack.c.b16 %v341, %v340
      %v394 = vpack.c.b16 %v343, %v342
      %v395 = vpack.c.b16 %v345, %v344
      %v396 = vpack.c.b16 %v347, %v346
      %v397 = vpack.c.b16 %v349, %v348
      %v398 = vpack.c.b16 %v351, %v350
      %v399 = vpack.c.b16 %v353, %v352
      %v400 = vpack.c.b16 %v355, %v354
      %v401 = vpack.c.b16 %v357, %v356
      %v402 = vpack.c.b16 %v359, %v358
      %v403 = vpack.c.b16 %v361, %v360
      %v404 = vpack.c.b16 %v363, %v362
      %v405 = vpack.c.b16 %v365, %v364
      %v406 = vpack.c.b16 %v367, %v366
      %v407 = vpack.c.b16 %v369, %v368
      %v408 = vpack.c.b16 %v371, %v370
      %v409 = vpack.c.b16 %v373, %v372
      %v410 = vpack.c.b16 %v375, %v374
      %v411 = vpack.c.b16 %v377, %v376
      %v412 = vpack.c.b16 %v379, %v378
      %v413 = vpack.c.b16 %v381, %v380
      %v418 = vunpack.c.l.b16 %v238
      %v419 = vunpack.c.h.b16 %v238
      %v420 = vunpack.c.l.b16 %v239
      %v421 = vunpack.c.h.b16 %v239
      %v422 = vunpack.c.l.b16 %v240
      %v423 = vunpack.c.h.b16 %v240
      %v424 = vunpack.c.l.b16 %v241
      %v425 = vunpack.c.h.b16 %v241
      %v426 = vpack.c.b16 %v420, %v418
      %v427 = vpack.c.b16 %v421, %v419
      %v428 = vpack.c.b16 %v424, %v422
      %v429 = vpack.c.b16 %v425, %v423
      %vm434 = vcmask 261120
      %v436 = vsel %vm434, %v382, 0
      %v439 = vsel %vm434, %v383, 0
      %v442 = vsel %vm434, %v384, 0
      %v445 = vsel %vm434, %v385, 0
      %v448 = vsel %vm434, %v386, 0
      %v451 = vsel %vm434, %v387, 0
      %v454 = vsel %vm434, %v388, 0
      %v457 = vsel %vm434, %v389, 0
      %v460 = vsel %vm434, %v390, 0
      %v463 = vsel %vm434, %v391, 0
      %v466 = vsel %vm434, %v392, 0
      %v469 = vsel %vm434, %v393, 0
      %v472 = vsel %vm434, %v394, 0
      %v475 = vsel %vm434, %v395, 0
      %v478 = vsel %vm434, %v396, 0
      %v481 = vsel %vm434, %v397, 0
      %v484 = vsel %vm434, %v398, 0
      %v487 = vsel %vm434, %v399, 0
      %v490 = vsel %vm434, %v400, 0
      %v493 = vsel %vm434, %v401, 0
      %v496 = vsel %vm434, %v402, 0
      %v499 = vsel %vm434, %v403, 0
      %v502 = vsel %vm434, %v404, 0
      %v505 = vsel %vm434, %v405, 0
      %v508 = vsel %vm434, %v406, 0
      %v511 = vsel %vm434, %v407, 0
      %v514 = vsel %vm434, %v408, 0
      %v517 = vsel %vm434, %v409, 0
      %v520 = vsel %vm434, %v410, 0
      %v523 = vsel %vm434, %v411, 0
      %v526 = vsel %vm434, %v412, 0
      %v529 = vsel %vm434, %v413, 0
      %531 = vmatprep.subr.bf16.mxu0 %v427
      %532 = vmatpush1.bf16.msra.mxu0 %v426
      %533 = vmatprep.subr.bf16.mxu0 %v429
      %534 = vmatpush1.bf16.msra.mxu0 %v428
      %535 = vmatprep.subr.bf16.mxu0 0
      %536 = vmatpush1.bf16.msra.mxu0 0
      %537 = vmatprep.subr.bf16.mxu0 0
      %538 = vmatpush1.bf16.msra.mxu0 0
      %539 = vmatprep.subr.bf16.mxu0 0
      %540 = vmatpush1.bf16.msra.mxu0 0
      %541 = vmatprep.subr.bf16.mxu0 0
      %542 = vmatpush1.bf16.msra.mxu0 0
      %543 = vmatprep.subr.bf16.mxu0 0
      %544 = vmatpush1.bf16.msra.mxu0 0
      %545 = vmatprep.subr.bf16.mxu0 0
      %546 = vmatpush1.bf16.msra.mxu0 0
      %547 = vmatprep.subr.bf16.mxu0 0
      %548 = vmatpush1.bf16.msra.mxu0 0
      %549 = vmatprep.subr.bf16.mxu0 0
      %550 = vmatpush1.bf16.msra.mxu0 0
      %551 = vmatprep.subr.bf16.mxu0 0
      %552 = vmatpush1.bf16.msra.mxu0 0
      %553 = vmatprep.subr.bf16.mxu0 0
      %554 = vmatpush1.bf16.msra.mxu0 0
      %555 = vmatprep.subr.bf16.mxu0 0
      %556 = vmatpush1.bf16.msra.mxu0 0
      %557 = vmatprep.subr.bf16.mxu0 0
      %558 = vmatpush1.bf16.msra.mxu0 0
      %559 = vmatprep.subr.bf16.mxu0 0
      %560 = vmatpush1.bf16.msra.mxu0 0
      %561 = vmatprep.subr.bf16.mxu0 0
      %562 = vmatpush1.bf16.msra.mxu0 0
      %563 = vmatprep.mubr.bf16.mxu0 0
      %564 = vmatmul.mubr.bf16.gmra.mrb[0].mxu0 %v436
      %v565 = vpop.f32.mrb[0].mxu0
      %v566 = vadd.f32 %v247, %v565
      %v567 = vpop.f32.mrb[0].mxu0
      %v568 = vadd.f32 %v251, %v567
      %v569 = vpop.f32.mrb[0].mxu0
      %v570 = vadd.f32 %v247, %v569
      %v571 = vpop.f32.mrb[0].mxu0
      %v572 = vadd.f32 %v251, %v571
      %573 = vmatprep.mubr.bf16.mxu0 0
      %574 = vmatmul.mubr.bf16.gmra.mrb[0].mxu0 %v439
      %v575 = vpop.f32.mrb[0].mxu0
      %v576 = vadd.f32 %v247, %v575
      %v577 = vpop.f32.mrb[0].mxu0
      %v578 = vadd.f32 %v251, %v577
      %v579 = vpop.f32.mrb[0].mxu0
      %v580 = vadd.f32 %v247, %v579
      %v581 = vpop.f32.mrb[0].mxu0
      %v582 = vadd.f32 %v251, %v581
      %583 = vmatprep.mubr.bf16.mxu0 0
      %584 = vmatmul.mubr.bf16.gmra.mrb[0].mxu0 %v442
      %v585 = vpop.f32.mrb[0].mxu0
      %v586 = vadd.f32 %v247, %v585
      %v587 = vpop.f32.mrb[0].mxu0
      %v588 = vadd.f32 %v251, %v587
      %v589 = vpop.f32.mrb[0].mxu0
      %v590 = vadd.f32 %v247, %v589
      %v591 = vpop.f32.mrb[0].mxu0
      %v592 = vadd.f32 %v251, %v591
      %593 = vmatprep.mubr.bf16.mxu0 0
      %594 = vmatmul.mubr.bf16.gmra.mrb[0].mxu0 %v445
      %v595 = vpop.f32.mrb[0].mxu0
      %v596 = vadd.f32 %v247, %v595
      %v597 = vpop.f32.mrb[0].mxu0
      %v598 = vadd.f32 %v251, %v597
      %v599 = vpop.f32.mrb[0].mxu0
      %v600 = vadd.f32 %v247, %v599
      %v601 = vpop.f32.mrb[0].mxu0
      %v602 = vadd.f32 %v251, %v601
      %603 = vmatprep.mubr.bf16.mxu0 0
      %604 = vmatmul.mubr.bf16.gmra.mrb[0].mxu0 %v448
      %v605 = vpop.f32.mrb[0].mxu0
      %v606 = vadd.f32 %v247, %v605
      %v607 = vpop.f32.mrb[0].mxu0
      %v608 = vadd.f32 %v251, %v607
      %v609 = vpop.f32.mrb[0].mxu0
      %v610 = vadd.f32 %v247, %v609
      %v611 = vpop.f32.mrb[0].mxu0
      %v612 = vadd.f32 %v251, %v611
      %613 = vmatprep.mubr.bf16.mxu0 0
      %614 = vmatmul.mubr.bf16.gmra.mrb[0].mxu0 %v451
      %v615 = vpop.f32.mrb[0].mxu0
      %v616 = vadd.f32 %v247, %v615
      %v617 = vpop.f32.mrb[0].mxu0
      %v618 = vadd.f32 %v251, %v617
      %v619 = vpop.f32.mrb[0].mxu0
      %v620 = vadd.f32 %v247, %v619
      %v621 = vpop.f32.mrb[0].mxu0
      %v622 = vadd.f32 %v251, %v621
      %623 = vmatprep.mubr.bf16.mxu0 0
      %624 = vmatmul.mubr.bf16.gmra.mrb[0].mxu0 %v454
      %v625 = vpop.f32.mrb[0].mxu0
      %v626 = vadd.f32 %v247, %v625
      %v627 = vpop.f32.mrb[0].mxu0
      %v628 = vadd.f32 %v251, %v627
      %v629 = vpop.f32.mrb[0].mxu0
      %v630 = vadd.f32 %v247, %v629
      %v631 = vpop.f32.mrb[0].mxu0
      %v632 = vadd.f32 %v251, %v631
      %633 = vmatprep.mubr.bf16.mxu0 0
      %634 = vmatmul.mubr.bf16.gmra.mrb[0].mxu0 %v457
      %v635 = vpop.f32.mrb[0].mxu0
      %v636 = vadd.f32 %v247, %v635
      %v637 = vpop.f32.mrb[0].mxu0
      %v638 = vadd.f32 %v251, %v637
      %v639 = vpop.f32.mrb[0].mxu0
      %v640 = vadd.f32 %v247, %v639
      %v641 = vpop.f32.mrb[0].mxu0
      %v642 = vadd.f32 %v251, %v641
      %643 = vmatprep.mubr.bf16.mxu0 0
      %644 = vmatmul.mubr.bf16.gmra.mrb[0].mxu0 %v460
      %v645 = vpop.f32.mrb[0].mxu0
      %v646 = vadd.f32 %v247, %v645
      %v647 = vpop.f32.mrb[0].mxu0
      %v648 = vadd.f32 %v251, %v647
      %v649 = vpop.f32.mrb[0].mxu0
      %v650 = vadd.f32 %v247, %v649
      %v651 = vpop.f32.mrb[0].mxu0
      %v652 = vadd.f32 %v251, %v651
      %653 = vmatprep.mubr.bf16.mxu0 0
      %654 = vmatmul.mubr.bf16.gmra.mrb[0].mxu0 %v463
      %v655 = vpop.f32.mrb[0].mxu0
      %v656 = vadd.f32 %v247, %v655
      %v657 = vpop.f32.mrb[0].mxu0
      %v658 = vadd.f32 %v251, %v657
      %v659 = vpop.f32.mrb[0].mxu0
      %v660 = vadd.f32 %v247, %v659
      %v661 = vpop.f32.mrb[0].mxu0
      %v662 = vadd.f32 %v251, %v661
      %663 = vmatprep.mubr.bf16.mxu0 0
      %664 = vmatmul.mubr.bf16.gmra.mrb[0].mxu0 %v466
      %v665 = vpop.f32.mrb[0].mxu0
      %v666 = vadd.f32 %v247, %v665
      %v667 = vpop.f32.mrb[0].mxu0
      %v668 = vadd.f32 %v251, %v667
      %v669 = vpop.f32.mrb[0].mxu0
      %v670 = vadd.f32 %v247, %v669
      %v671 = vpop.f32.mrb[0].mxu0
      %v672 = vadd.f32 %v251, %v671
      %673 = vmatprep.mubr.bf16.mxu0 0
      %674 = vmatmul.mubr.bf16.gmra.mrb[0].mxu0 %v469
      %v675 = vpop.f32.mrb[0].mxu0
      %v676 = vadd.f32 %v247, %v675
      %v677 = vpop.f32.mrb[0].mxu0
      %v678 = vadd.f32 %v251, %v677
      %v679 = vpop.f32.mrb[0].mxu0
      %v680 = vadd.f32 %v247, %v679
      %v681 = vpop.f32.mrb[0].mxu0
      %v682 = vadd.f32 %v251, %v681
      %683 = vmatprep.mubr.bf16.mxu0 0
      %684 = vmatmul.mubr.bf16.gmra.mrb[0].mxu0 %v472
      %v685 = vpop.f32.mrb[0].mxu0
      %v686 = vadd.f32 %v247, %v685
      %v687 = vpop.f32.mrb[0].mxu0
      %v688 = vadd.f32 %v251, %v687
      %v689 = vpop.f32.mrb[0].mxu0
      %v690 = vadd.f32 %v247, %v689
      %v691 = vpop.f32.mrb[0].mxu0
      %v692 = vadd.f32 %v251, %v691
      %693 = vmatprep.mubr.bf16.mxu0 0
      %694 = vmatmul.mubr.bf16.gmra.mrb[0].mxu0 %v475
      %v695 = vpop.f32.mrb[0].mxu0
      %v696 = vadd.f32 %v247, %v695
      %v697 = vpop.f32.mrb[0].mxu0
      %v698 = vadd.f32 %v251, %v697
      %v699 = vpop.f32.mrb[0].mxu0
      %v700 = vadd.f32 %v247, %v699
      %v701 = vpop.f32.mrb[0].mxu0
      %v702 = vadd.f32 %v251, %v701
      %703 = vmatprep.mubr.bf16.mxu0 0
      %704 = vmatmul.mubr.bf16.gmra.mrb[0].mxu0 %v478
      %v705 = vpop.f32.mrb[0].mxu0
      %v706 = vadd.f32 %v247, %v705
      %v707 = vpop.f32.mrb[0].mxu0
      %v708 = vadd.f32 %v251, %v707
      %v709 = vpop.f32.mrb[0].mxu0
      %v710 = vadd.f32 %v247, %v709
      %v711 = vpop.f32.mrb[0].mxu0
      %v712 = vadd.f32 %v251, %v711
      %713 = vmatprep.mubr.bf16.mxu0 0
      %714 = vmatmul.mubr.bf16.gmra.mrb[0].mxu0 %v481
      %v715 = vpop.f32.mrb[0].mxu0
      %v716 = vadd.f32 %v247, %v715
      %v717 = vpop.f32.mrb[0].mxu0
      %v718 = vadd.f32 %v251, %v717
      %v719 = vpop.f32.mrb[0].mxu0
      %v720 = vadd.f32 %v247, %v719
      %v721 = vpop.f32.mrb[0].mxu0
      %v722 = vadd.f32 %v251, %v721
      %723 = vmatprep.mubr.bf16.mxu0 0
      %724 = vmatmul.mubr.bf16.gmra.mrb[0].mxu0 %v484
      %v725 = vpop.f32.mrb[0].mxu0
      %v726 = vadd.f32 %v247, %v725
      %v727 = vpop.f32.mrb[0].mxu0
      %v728 = vadd.f32 %v251, %v727
      %v729 = vpop.f32.mrb[0].mxu0
      %v730 = vadd.f32 %v247, %v729
      %v731 = vpop.f32.mrb[0].mxu0
      %v732 = vadd.f32 %v251, %v731
      %733 = vmatprep.mubr.bf16.mxu0 0
      %734 = vmatmul.mubr.bf16.gmra.mrb[0].mxu0 %v487
      %v735 = vpop.f32.mrb[0].mxu0
      %v736 = vadd.f32 %v247, %v735
      %v737 = vpop.f32.mrb[0].mxu0
      %v738 = vadd.f32 %v251, %v737
      %v739 = vpop.f32.mrb[0].mxu0
      %v740 = vadd.f32 %v247, %v739
      %v741 = vpop.f32.mrb[0].mxu0
      %v742 = vadd.f32 %v251, %v741
      %743 = vmatprep.mubr.bf16.mxu0 0
      %744 = vmatmul.mubr.bf16.gmra.mrb[0].mxu0 %v490
      %v745 = vpop.f32.mrb[0].mxu0
      %v746 = vadd.f32 %v247, %v745
      %v747 = vpop.f32.mrb[0].mxu0
      %v748 = vadd.f32 %v251, %v747
      %v749 = vpop.f32.mrb[0].mxu0
      %v750 = vadd.f32 %v247, %v749
      %v751 = vpop.f32.mrb[0].mxu0
      %v752 = vadd.f32 %v251, %v751
      %753 = vmatprep.mubr.bf16.mxu0 0
      %754 = vmatmul.mubr.bf16.gmra.mrb[0].mxu0 %v493
      %v755 = vpop.f32.mrb[0].mxu0
      %v756 = vadd.f32 %v247, %v755
      %v757 = vpop.f32.mrb[0].mxu0
      %v758 = vadd.f32 %v251, %v757
      %v759 = vpop.f32.mrb[0].mxu0
      %v760 = vadd.f32 %v247, %v759
      %v761 = vpop.f32.mrb[0].mxu0
      %v762 = vadd.f32 %v251, %v761
      %763 = vmatprep.mubr.bf16.mxu0 0
      %764 = vmatmul.mubr.bf16.gmra.mrb[0].mxu0 %v496
      %v765 = vpop.f32.mrb[0].mxu0
      %v766 = vadd.f32 %v247, %v765
      %v767 = vpop.f32.mrb[0].mxu0
      %v768 = vadd.f32 %v251, %v767
      %v769 = vpop.f32.mrb[0].mxu0
      %v770 = vadd.f32 %v247, %v769
      %v771 = vpop.f32.mrb[0].mxu0
      %v772 = vadd.f32 %v251, %v771
      %773 = vmatprep.mubr.bf16.mxu0 0
      %774 = vmatmul.mubr.bf16.gmra.mrb[0].mxu0 %v499
      %v775 = vpop.f32.mrb[0].mxu0
      %v776 = vadd.f32 %v247, %v775
      %v777 = vpop.f32.mrb[0].mxu0
      %v778 = vadd.f32 %v251, %v777
      %v779 = vpop.f32.mrb[0].mxu0
      %v780 = vadd.f32 %v247, %v779
      %v781 = vpop.f32.mrb[0].mxu0
      %v782 = vadd.f32 %v251, %v781
      %783 = vmatprep.mubr.bf16.mxu0 0
      %784 = vmatmul.mubr.bf16.gmra.mrb[0].mxu0 %v502
      %v785 = vpop.f32.mrb[0].mxu0
      %v786 = vadd.f32 %v247, %v785
      %v787 = vpop.f32.mrb[0].mxu0
      %v788 = vadd.f32 %v251, %v787
      %v789 = vpop.f32.mrb[0].mxu0
      %v790 = vadd.f32 %v247, %v789
      %v791 = vpop.f32.mrb[0].mxu0
      %v792 = vadd.f32 %v251, %v791
      %793 = vmatprep.mubr.bf16.mxu0 0
      %794 = vmatmul.mubr.bf16.gmra.mrb[0].mxu0 %v505
      %v795 = vpop.f32.mrb[0].mxu0
      %v796 = vadd.f32 %v247, %v795
      %v797 = vpop.f32.mrb[0].mxu0
      %v798 = vadd.f32 %v251, %v797
      %v799 = vpop.f32.mrb[0].mxu0
      %v800 = vadd.f32 %v247, %v799
      %v801 = vpop.f32.mrb[0].mxu0
      %v802 = vadd.f32 %v251, %v801
      %803 = vmatprep.mubr.bf16.mxu0 0
      %804 = vmatmul.mubr.bf16.gmra.mrb[0].mxu0 %v508
      %v805 = vpop.f32.mrb[0].mxu0
      %v806 = vadd.f32 %v247, %v805
      %v807 = vpop.f32.mrb[0].mxu0
      %v808 = vadd.f32 %v251, %v807
      %v809 = vpop.f32.mrb[0].mxu0
      %v810 = vadd.f32 %v247, %v809
      %v811 = vpop.f32.mrb[0].mxu0
      %v812 = vadd.f32 %v251, %v811
      %813 = vmatprep.mubr.bf16.mxu0 0
      %814 = vmatmul.mubr.bf16.gmra.mrb[0].mxu0 %v511
      %v815 = vpop.f32.mrb[0].mxu0
      %v816 = vadd.f32 %v247, %v815
      %v817 = vpop.f32.mrb[0].mxu0
      %v818 = vadd.f32 %v251, %v817
      %v819 = vpop.f32.mrb[0].mxu0
      %v820 = vadd.f32 %v247, %v819
      %v821 = vpop.f32.mrb[0].mxu0
      %v822 = vadd.f32 %v251, %v821
      %823 = vmatprep.mubr.bf16.mxu0 0
      %824 = vmatmul.mubr.bf16.gmra.mrb[0].mxu0 %v514
      %v825 = vpop.f32.mrb[0].mxu0
      %v826 = vadd.f32 %v247, %v825
      %v827 = vpop.f32.mrb[0].mxu0
      %v828 = vadd.f32 %v251, %v827
      %v829 = vpop.f32.mrb[0].mxu0
      %v830 = vadd.f32 %v247, %v829
      %v831 = vpop.f32.mrb[0].mxu0
      %v832 = vadd.f32 %v251, %v831
      %833 = vmatprep.mubr.bf16.mxu0 0
      %834 = vmatmul.mubr.bf16.gmra.mrb[0].mxu0 %v517
      %v835 = vpop.f32.mrb[0].mxu0
      %v836 = vadd.f32 %v247, %v835
      %v837 = vpop.f32.mrb[0].mxu0
      %v838 = vadd.f32 %v251, %v837
      %v839 = vpop.f32.mrb[0].mxu0
      %v840 = vadd.f32 %v247, %v839
      %v841 = vpop.f32.mrb[0].mxu0
      %v842 = vadd.f32 %v251, %v841
      %843 = vmatprep.mubr.bf16.mxu0 0
      %844 = vmatmul.mubr.bf16.gmra.mrb[0].mxu0 %v520
      %v845 = vpop.f32.mrb[0].mxu0
      %v846 = vadd.f32 %v247, %v845
      %v847 = vpop.f32.mrb[0].mxu0
      %v848 = vadd.f32 %v251, %v847
      %v849 = vpop.f32.mrb[0].mxu0
      %v850 = vadd.f32 %v247, %v849
      %v851 = vpop.f32.mrb[0].mxu0
      %v852 = vadd.f32 %v251, %v851
      %853 = vmatprep.mubr.bf16.mxu0 0
      %854 = vmatmul.mubr.bf16.gmra.mrb[0].mxu0 %v523
      %v855 = vpop.f32.mrb[0].mxu0
      %v856 = vadd.f32 %v247, %v855
      %v857 = vpop.f32.mrb[0].mxu0
      %v858 = vadd.f32 %v251, %v857
      %v859 = vpop.f32.mrb[0].mxu0
      %v860 = vadd.f32 %v247, %v859
      %v861 = vpop.f32.mrb[0].mxu0
      %v862 = vadd.f32 %v251, %v861
      %863 = vmatprep.mubr.bf16.mxu0 0
      %864 = vmatmul.mubr.bf16.gmra.mrb[0].mxu0 %v526
      %v865 = vpop.f32.mrb[0].mxu0
      %v866 = vadd.f32 %v247, %v865
      %v867 = vpop.f32.mrb[0].mxu0
      %v868 = vadd.f32 %v251, %v867
      %v869 = vpop.f32.mrb[0].mxu0
      %v870 = vadd.f32 %v247, %v869
      %v871 = vpop.f32.mrb[0].mxu0
      %v872 = vadd.f32 %v251, %v871
      %873 = vmatprep.mubr.bf16.mxu0 0
      %874 = vmatmul.mubr.bf16.gmra.mrb[0].mxu0 %v529
      %v875 = vpop.f32.mrb[0].mxu0
      %v876 = vadd.f32 %v247, %v875
      %v877 = vpop.f32.mrb[0].mxu0
      %v878 = vadd.f32 %v251, %v877
      %v879 = vpop.f32.mrb[0].mxu0
      %v880 = vadd.f32 %v247, %v879
      %v881 = vpop.f32.mrb[0].mxu0
      %v882 = vadd.f32 %v251, %v881
      %883 = vdwg.mxu0
      %v884 = vmax.f32 %v566, 0.0
      %v885 = vmax.f32 %v568, 0.0
      %v886 = vmax.f32 %v570, 0.0
      %v887 = vmax.f32 %v572, 0.0
      %v888 = vmax.f32 %v576, 0.0
      %v889 = vmax.f32 %v578, 0.0
      %v890 = vmax.f32 %v580, 0.0
      %v891 = vmax.f32 %v582, 0.0
      %v892 = vmax.f32 %v586, 0.0
      %v893 = vmax.f32 %v588, 0.0
      %v894 = vmax.f32 %v590, 0.0
      %v895 = vmax.f32 %v592, 0.0
      %v896 = vmax.f32 %v596, 0.0
      %v897 = vmax.f32 %v598, 0.0
      %v898 = vmax.f32 %v600, 0.0
      %v899 = vmax.f32 %v602, 0.0
      %v900 = vmax.f32 %v606, 0.0
      %v901 = vmax.f32 %v608, 0.0
      %v902 = vmax.f32 %v610, 0.0
      %v903 = vmax.f32 %v612, 0.0
      %v904 = vmax.f32 %v616, 0.0
      %v905 = vmax.f32 %v618, 0.0
      %v906 = vmax.f32 %v620, 0.0
      %v907 = vmax.f32 %v622, 0.0
      %v908 = vmax.f32 %v626, 0.0
      %v909 = vmax.f32 %v628, 0.0
      %v910 = vmax.f32 %v630, 0.0
      %v911 = vmax.f32 %v632, 0.0
      %v912 = vmax.f32 %v636, 0.0
      %v913 = vmax.f32 %v638, 0.0
      %v914 = vmax.f32 %v640, 0.0
      %v915 = vmax.f32 %v642, 0.0
      %v916 = vmax.f32 %v646, 0.0
      %v917 = vmax.f32 %v648, 0.0
      %v918 = vmax.f32 %v650, 0.0
      %v919 = vmax.f32 %v652, 0.0
      %v920 = vmax.f32 %v656, 0.0
      %v921 = vmax.f32 %v658, 0.0
      %v922 = vmax.f32 %v660, 0.0
      %v923 = vmax.f32 %v662, 0.0
      %v924 = vmax.f32 %v666, 0.0
      %v925 = vmax.f32 %v668, 0.0
      %v926 = vmax.f32 %v670, 0.0
      %v927 = vmax.f32 %v672, 0.0
      %v928 = vmax.f32 %v676, 0.0
      %v929 = vmax.f32 %v678, 0.0
      %v930 = vmax.f32 %v680, 0.0
      %v931 = vmax.f32 %v682, 0.0
      %v932 = vmax.f32 %v686, 0.0
      %v933 = vmax.f32 %v688, 0.0
      %v934 = vmax.f32 %v690, 0.0
      %v935 = vmax.f32 %v692, 0.0
      %v936 = vmax.f32 %v696, 0.0
      %v937 = vmax.f32 %v698, 0.0
      %v938 = vmax.f32 %v700, 0.0
      %v939 = vmax.f32 %v702, 0.0
      %v940 = vmax.f32 %v706, 0.0
      %v941 = vmax.f32 %v708, 0.0
      %v942 = vmax.f32 %v710, 0.0
      %v943 = vmax.f32 %v712, 0.0
      %v944 = vmax.f32 %v716, 0.0
      %v945 = vmax.f32 %v718, 0.0
      %v946 = vmax.f32 %v720, 0.0
      %v947 = vmax.f32 %v722, 0.0
      %v948 = vmax.f32 %v726, 0.0
      %v949 = vmax.f32 %v728, 0.0
      %v950 = vmax.f32 %v730, 0.0
      %v951 = vmax.f32 %v732, 0.0
      %v952 = vmax.f32 %v736, 0.0
      %v953 = vmax.f32 %v738, 0.0
      %v954 = vmax.f32 %v740, 0.0
      %v955 = vmax.f32 %v742, 0.0
      %v956 = vmax.f32 %v746, 0.0
      %v957 = vmax.f32 %v748, 0.0
      %v958 = vmax.f32 %v750, 0.0
      %v959 = vmax.f32 %v752, 0.0
      %v960 = vmax.f32 %v756, 0.0
      %v961 = vmax.f32 %v758, 0.0
      %v962 = vmax.f32 %v760, 0.0
      %v963 = vmax.f32 %v762, 0.0
      %v964 = vmax.f32 %v766, 0.0
      %v965 = vmax.f32 %v768, 0.0
      %v966 = vmax.f32 %v770, 0.0
      %v967 = vmax.f32 %v772, 0.0
      %v968 = vmax.f32 %v776, 0.0
      %v969 = vmax.f32 %v778, 0.0
      %v970 = vmax.f32 %v780, 0.0
      %v971 = vmax.f32 %v782, 0.0
      %v972 = vmax.f32 %v786, 0.0
      %v973 = vmax.f32 %v788, 0.0
      %v974 = vmax.f32 %v790, 0.0
      %v975 = vmax.f32 %v792, 0.0
      %v976 = vmax.f32 %v796, 0.0
      %v977 = vmax.f32 %v798, 0.0
      %v978 = vmax.f32 %v800, 0.0
      %v979 = vmax.f32 %v802, 0.0
      %v980 = vmax.f32 %v806, 0.0
      %v981 = vmax.f32 %v808, 0.0
      %v982 = vmax.f32 %v810, 0.0
      %v983 = vmax.f32 %v812, 0.0
      %v984 = vmax.f32 %v816, 0.0
      %v985 = vmax.f32 %v818, 0.0
      %v986 = vmax.f32 %v820, 0.0
      %v987 = vmax.f32 %v822, 0.0
      %v988 = vmax.f32 %v826, 0.0
      %v989 = vmax.f32 %v828, 0.0
      %v990 = vmax.f32 %v830, 0.0
      %v991 = vmax.f32 %v832, 0.0
      %v992 = vmax.f32 %v836, 0.0
      %v993 = vmax.f32 %v838, 0.0
      %v994 = vmax.f32 %v840, 0.0
      %v995 = vmax.f32 %v842, 0.0
      %v996 = vmax.f32 %v846, 0.0
      %v997 = vmax.f32 %v848, 0.0
      %v998 = vmax.f32 %v850, 0.0
      %v999 = vmax.f32 %v852, 0.0
      %v1000 = vmax.f32 %v856, 0.0
      %v1001 = vmax.f32 %v858, 0.0
      %v1002 = vmax.f32 %v860, 0.0
      %v1003 = vmax.f32 %v862, 0.0
      %v1004 = vmax.f32 %v866, 0.0
      %v1005 = vmax.f32 %v868, 0.0
      %v1006 = vmax.f32 %v870, 0.0
      %v1007 = vmax.f32 %v872, 0.0
      %v1008 = vmax.f32 %v876, 0.0
      %v1009 = vmax.f32 %v878, 0.0
      %v1010 = vmax.f32 %v880, 0.0
      %v1011 = vmax.f32 %v882, 0.0
      %v1012 = vadd.f32 %v884, %v886
      %v1013 = vadd.f32 %v1012, %v888
      %v1014 = vadd.f32 %v1013, %v890
      %v1015 = vadd.f32 %v1014, %v892
      %v1016 = vadd.f32 %v1015, %v894
      %v1017 = vadd.f32 %v1016, %v896
      %v1018 = vadd.f32 %v1017, %v898
      %v1019 = vadd.f32 %v1018, %v900
      %v1020 = vadd.f32 %v1019, %v902
      %v1021 = vadd.f32 %v1020, %v904
      %v1022 = vadd.f32 %v1021, %v906
      %v1023 = vadd.f32 %v1022, %v908
      %v1024 = vadd.f32 %v1023, %v910
      %v1025 = vadd.f32 %v1024, %v912
      %v1026 = vadd.f32 %v1025, %v914
      %v1027 = vadd.f32 %v1026, %v916
      %v1028 = vadd.f32 %v1027, %v918
      %v1029 = vadd.f32 %v1028, %v920
      %v1030 = vadd.f32 %v1029, %v922
      %v1031 = vadd.f32 %v1030, %v924
      %v1032 = vadd.f32 %v1031, %v926
      %v1033 = vadd.f32 %v1032, %v928
      %v1034 = vadd.f32 %v1033, %v930
      %v1035 = vadd.f32 %v1034, %v932
      %v1036 = vadd.f32 %v1035, %v934
      %v1037 = vadd.f32 %v1036, %v936
      %v1038 = vadd.f32 %v1037, %v938
      %v1039 = vadd.f32 %v1038, %v940
      %v1040 = vadd.f32 %v1039, %v942
      %v1041 = vadd.f32 %v1040, %v944
      %v1042 = vadd.f32 %v1041, %v946
      %v1043 = vadd.f32 %v1042, %v948
      %v1044 = vadd.f32 %v1043, %v950
      %v1045 = vadd.f32 %v1044, %v952
      %v1046 = vadd.f32 %v1045, %v954
      %v1047 = vadd.f32 %v1046, %v956
      %v1048 = vadd.f32 %v1047, %v958
      %v1049 = vadd.f32 %v1048, %v960
      %v1050 = vadd.f32 %v1049, %v962
      %v1051 = vadd.f32 %v1050, %v964
      %v1052 = vadd.f32 %v1051, %v966
      %v1053 = vadd.f32 %v1052, %v968
      %v1054 = vadd.f32 %v1053, %v970
      %v1055 = vadd.f32 %v1054, %v972
      %v1056 = vadd.f32 %v1055, %v974
      %v1057 = vadd.f32 %v1056, %v976
      %v1058 = vadd.f32 %v1057, %v978
      %v1059 = vadd.f32 %v1058, %v980
      %v1060 = vadd.f32 %v1059, %v982
      %v1061 = vadd.f32 %v1060, %v984
      %v1062 = vadd.f32 %v1061, %v986
      %v1063 = vadd.f32 %v1062, %v988
      %v1064 = vadd.f32 %v1063, %v990
      %v1065 = vadd.f32 %v1064, %v992
      %v1066 = vadd.f32 %v1065, %v994
      %v1067 = vadd.f32 %v1066, %v996
      %v1068 = vadd.f32 %v1067, %v998
      %v1069 = vadd.f32 %v1068, %v1000
      %v1070 = vadd.f32 %v1069, %v1002
      %v1071 = vadd.f32 %v1070, %v1004
      %v1072 = vadd.f32 %v1071, %v1006
      %v1073 = vadd.f32 %v1072, %v1008
      %v1074 = vadd.f32 %v1073, %v1010
      %v1075 = vrot.slane %v1074, 4
      %v1076 = vadd.f32 %v1074, %v1075
      %v1077 = vrot.slane %v1076, 2
      %v1078 = vadd.f32 %v1076, %v1077
      %v1079 = vrot.slane %v1078, 1
      %v1080 = vadd.f32 %v1078, %v1079
      %v1081 = vadd.f32 %v885, %v887
      %v1082 = vadd.f32 %v1081, %v889
      %v1083 = vadd.f32 %v1082, %v891
      %v1084 = vadd.f32 %v1083, %v893
      %v1085 = vadd.f32 %v1084, %v895
      %v1086 = vadd.f32 %v1085, %v897
      %v1087 = vadd.f32 %v1086, %v899
      %v1088 = vadd.f32 %v1087, %v901
      %v1089 = vadd.f32 %v1088, %v903
      %v1090 = vadd.f32 %v1089, %v905
      %v1091 = vadd.f32 %v1090, %v907
      %v1092 = vadd.f32 %v1091, %v909
      %v1093 = vadd.f32 %v1092, %v911
      %v1094 = vadd.f32 %v1093, %v913
      %v1095 = vadd.f32 %v1094, %v915
      %v1096 = vadd.f32 %v1095, %v917
      %v1097 = vadd.f32 %v1096, %v919
      %v1098 = vadd.f32 %v1097, %v921
      %v1099 = vadd.f32 %v1098, %v923
      %v1100 = vadd.f32 %v1099, %v925
      %v1101 = vadd.f32 %v1100, %v927
      %v1102 = vadd.f32 %v1101, %v929
      %v1103 = vadd.f32 %v1102, %v931
      %v1104 = vadd.f32 %v1103, %v933
      %v1105 = vadd.f32 %v1104, %v935
      %v1106 = vadd.f32 %v1105, %v937
      %v1107 = vadd.f32 %v1106, %v939
      %v1108 = vadd.f32 %v1107, %v941
      %v1109 = vadd.f32 %v1108, %v943
      %v1110 = vadd.f32 %v1109, %v945
      %v1111 = vadd.f32 %v1110, %v947
      %v1112 = vadd.f32 %v1111, %v949
      %v1113 = vadd.f32 %v1112, %v951
      %v1114 = vadd.f32 %v1113, %v953
      %v1115 = vadd.f32 %v1114, %v955
      %v1116 = vadd.f32 %v1115, %v957
      %v1117 = vadd.f32 %v1116, %v959
      %v1118 = vadd.f32 %v1117, %v961
      %v1119 = vadd.f32 %v1118, %v963
      %v1120 = vadd.f32 %v1119, %v965
      %v1121 = vadd.f32 %v1120, %v967
      %v1122 = vadd.f32 %v1121, %v969
      %v1123 = vadd.f32 %v1122, %v971
      %v1124 = vadd.f32 %v1123, %v973
      %v1125 = vadd.f32 %v1124, %v975
      %v1126 = vadd.f32 %v1125, %v977
      %v1127 = vadd.f32 %v1126, %v979
      %v1128 = vadd.f32 %v1127, %v981
      %v1129 = vadd.f32 %v1128, %v983
      %v1130 = vadd.f32 %v1129, %v985
      %v1131 = vadd.f32 %v1130, %v987
      %v1132 = vadd.f32 %v1131, %v989
      %v1133 = vadd.f32 %v1132, %v991
      %v1134 = vadd.f32 %v1133, %v993
      %v1135 = vadd.f32 %v1134, %v995
      %v1136 = vadd.f32 %v1135, %v997
      %v1137 = vadd.f32 %v1136, %v999
      %v1138 = vadd.f32 %v1137, %v1001
      %v1139 = vadd.f32 %v1138, %v1003
      %v1140 = vadd.f32 %v1139, %v1005
      %v1141 = vadd.f32 %v1140, %v1007
      %v1142 = vadd.f32 %v1141, %v1009
      %v1143 = vadd.f32 %v1142, %v1011
      %v1144 = vrot.slane %v1143, 4
      %v1145 = vadd.f32 %v1143, %v1144
      %v1146 = vrot.slane %v1145, 2
      %v1147 = vadd.f32 %v1145, %v1146
      %v1148 = vrot.slane %v1147, 1
      %v1149 = vadd.f32 %v1147, %v1148
      %v1150 = vmul.f32 %v884, %v884
      %v1151 = vmul.f32 %v885, %v885
      %v1152 = vmul.f32 %v886, %v886
      %v1153 = vmul.f32 %v887, %v887
      %v1154 = vmul.f32 %v888, %v888
      %v1155 = vmul.f32 %v889, %v889
      %v1156 = vmul.f32 %v890, %v890
      %v1157 = vmul.f32 %v891, %v891
      %v1158 = vmul.f32 %v892, %v892
      %v1159 = vmul.f32 %v893, %v893
      %v1160 = vmul.f32 %v894, %v894
      %v1161 = vmul.f32 %v895, %v895
      %v1162 = vmul.f32 %v896, %v896
      %v1163 = vmul.f32 %v897, %v897
      %v1164 = vmul.f32 %v898, %v898
      %v1165 = vmul.f32 %v899, %v899
      %v1166 = vmul.f32 %v900, %v900
      %v1167 = vmul.f32 %v901, %v901
      %v1168 = vmul.f32 %v902, %v902
      %v1169 = vmul.f32 %v903, %v903
      %v1170 = vmul.f32 %v904, %v904
      %v1171 = vmul.f32 %v905, %v905
      %v1172 = vmul.f32 %v906, %v906
      %v1173 = vmul.f32 %v907, %v907
      %v1174 = vmul.f32 %v908, %v908
      %v1175 = vmul.f32 %v909, %v909
      %v1176 = vmul.f32 %v910, %v910
      %v1177 = vmul.f32 %v911, %v911
      %v1178 = vmul.f32 %v912, %v912
      %v1179 = vmul.f32 %v913, %v913
      %v1180 = vmul.f32 %v914, %v914
      %v1181 = vmul.f32 %v915, %v915
      %v1182 = vmul.f32 %v916, %v916
      %v1183 = vmul.f32 %v917, %v917
      %v1184 = vmul.f32 %v918, %v918
      %v1185 = vmul.f32 %v919, %v919
      %v1186 = vmul.f32 %v920, %v920
      %v1187 = vmul.f32 %v921, %v921
      %v1188 = vmul.f32 %v922, %v922
      %v1189 = vmul.f32 %v923, %v923
      %v1190 = vmul.f32 %v924, %v924
      %v1191 = vmul.f32 %v925, %v925
      %v1192 = vmul.f32 %v926, %v926
      %v1193 = vmul.f32 %v927, %v927
      %v1194 = vmul.f32 %v928, %v928
      %v1195 = vmul.f32 %v929, %v929
      %v1196 = vmul.f32 %v930, %v930
      %v1197 = vmul.f32 %v931, %v931
      %v1198 = vmul.f32 %v932, %v932
      %v1199 = vmul.f32 %v933, %v933
      %v1200 = vmul.f32 %v934, %v934
      %v1201 = vmul.f32 %v935, %v935
      %v1202 = vmul.f32 %v936, %v936
      %v1203 = vmul.f32 %v937, %v937
      %v1204 = vmul.f32 %v938, %v938
      %v1205 = vmul.f32 %v939, %v939
      %v1206 = vmul.f32 %v940, %v940
      %v1207 = vmul.f32 %v941, %v941
      %v1208 = vmul.f32 %v942, %v942
      %v1209 = vmul.f32 %v943, %v943
      %v1210 = vmul.f32 %v944, %v944
      %v1211 = vmul.f32 %v945, %v945
      %v1212 = vmul.f32 %v946, %v946
      %v1213 = vmul.f32 %v947, %v947
      %v1214 = vmul.f32 %v948, %v948
      %v1215 = vmul.f32 %v949, %v949
      %v1216 = vmul.f32 %v950, %v950
      %v1217 = vmul.f32 %v951, %v951
      %v1218 = vmul.f32 %v952, %v952
      %v1219 = vmul.f32 %v953, %v953
      %v1220 = vmul.f32 %v954, %v954
      %v1221 = vmul.f32 %v955, %v955
      %v1222 = vmul.f32 %v956, %v956
      %v1223 = vmul.f32 %v957, %v957
      %v1224 = vmul.f32 %v958, %v958
      %v1225 = vmul.f32 %v959, %v959
      %v1226 = vmul.f32 %v960, %v960
      %v1227 = vmul.f32 %v961, %v961
      %v1228 = vmul.f32 %v962, %v962
      %v1229 = vmul.f32 %v963, %v963
      %v1230 = vmul.f32 %v964, %v964
      %v1231 = vmul.f32 %v965, %v965
      %v1232 = vmul.f32 %v966, %v966
      %v1233 = vmul.f32 %v967, %v967
      %v1234 = vmul.f32 %v968, %v968
      %v1235 = vmul.f32 %v969, %v969
      %v1236 = vmul.f32 %v970, %v970
      %v1237 = vmul.f32 %v971, %v971
      %v1238 = vmul.f32 %v972, %v972
      %v1239 = vmul.f32 %v973, %v973
      %v1240 = vmul.f32 %v974, %v974
      %v1241 = vmul.f32 %v975, %v975
      %v1242 = vmul.f32 %v976, %v976
      %v1243 = vmul.f32 %v977, %v977
      %v1244 = vmul.f32 %v978, %v978
      %v1245 = vmul.f32 %v979, %v979
      %v1246 = vmul.f32 %v980, %v980
      %v1247 = vmul.f32 %v981, %v981
      %v1248 = vmul.f32 %v982, %v982
      %v1249 = vmul.f32 %v983, %v983
      %v1250 = vmul.f32 %v984, %v984
      %v1251 = vmul.f32 %v985, %v985
      %v1252 = vmul.f32 %v986, %v986
      %v1253 = vmul.f32 %v987, %v987
      %v1254 = vmul.f32 %v988, %v988
      %v1255 = vmul.f32 %v989, %v989
      %v1256 = vmul.f32 %v990, %v990
      %v1257 = vmul.f32 %v991, %v991
      %v1258 = vmul.f32 %v992, %v992
      %v1259 = vmul.f32 %v993, %v993
      %v1260 = vmul.f32 %v994, %v994
      %v1261 = vmul.f32 %v995, %v995
      %v1262 = vmul.f32 %v996, %v996
      %v1263 = vmul.f32 %v997, %v997
      %v1264 = vmul.f32 %v998, %v998
      %v1265 = vmul.f32 %v999, %v999
      %v1266 = vmul.f32 %v1000, %v1000
      %v1267 = vmul.f32 %v1001, %v1001
      %v1268 = vmul.f32 %v1002, %v1002
      %v1269 = vmul.f32 %v1003, %v1003
      %v1270 = vmul.f32 %v1004, %v1004
      %v1271 = vmul.f32 %v1005, %v1005
      %v1272 = vmul.f32 %v1006, %v1006
      %v1273 = vmul.f32 %v1007, %v1007
      %v1274 = vmul.f32 %v1008, %v1008
      %v1275 = vmul.f32 %v1009, %v1009
      %v1276 = vmul.f32 %v1010, %v1010
      %v1277 = vmul.f32 %v1011, %v1011
      %v1278 = vadd.f32 %v1150, %v1152
      %v1279 = vadd.f32 %v1278, %v1154
      %v1280 = vadd.f32 %v1279, %v1156
      %v1281 = vadd.f32 %v1280, %v1158
      %v1282 = vadd.f32 %v1281, %v1160
      %v1283 = vadd.f32 %v1282, %v1162
      %v1284 = vadd.f32 %v1283, %v1164
      %v1285 = vadd.f32 %v1284, %v1166
      %v1286 = vadd.f32 %v1285, %v1168
      %v1287 = vadd.f32 %v1286, %v1170
      %v1288 = vadd.f32 %v1287, %v1172
      %v1289 = vadd.f32 %v1288, %v1174
      %v1290 = vadd.f32 %v1289, %v1176
      %v1291 = vadd.f32 %v1290, %v1178
      %v1292 = vadd.f32 %v1291, %v1180
      %v1293 = vadd.f32 %v1292, %v1182
      %v1294 = vadd.f32 %v1293, %v1184
      %v1295 = vadd.f32 %v1294, %v1186
      %v1296 = vadd.f32 %v1295, %v1188
      %v1297 = vadd.f32 %v1296, %v1190
      %v1298 = vadd.f32 %v1297, %v1192
      %v1299 = vadd.f32 %v1298, %v1194
      %v1300 = vadd.f32 %v1299, %v1196
      %v1301 = vadd.f32 %v1300, %v1198
      %v1302 = vadd.f32 %v1301, %v1200
      %v1303 = vadd.f32 %v1302, %v1202
      %v1304 = vadd.f32 %v1303, %v1204
      %v1305 = vadd.f32 %v1304, %v1206
      %v1306 = vadd.f32 %v1305, %v1208
      %v1307 = vadd.f32 %v1306, %v1210
      %v1308 = vadd.f32 %v1307, %v1212
      %v1309 = vadd.f32 %v1308, %v1214
      %v1310 = vadd.f32 %v1309, %v1216
      %v1311 = vadd.f32 %v1310, %v1218
      %v1312 = vadd.f32 %v1311, %v1220
      %v1313 = vadd.f32 %v1312, %v1222
      %v1314 = vadd.f32 %v1313, %v1224
      %v1315 = vadd.f32 %v1314, %v1226
      %v1316 = vadd.f32 %v1315, %v1228
      %v1317 = vadd.f32 %v1316, %v1230
      %v1318 = vadd.f32 %v1317, %v1232
      %v1319 = vadd.f32 %v1318, %v1234
      %v1320 = vadd.f32 %v1319, %v1236
      %v1321 = vadd.f32 %v1320, %v1238
      %v1322 = vadd.f32 %v1321, %v1240
      %v1323 = vadd.f32 %v1322, %v1242
      %v1324 = vadd.f32 %v1323, %v1244
      %v1325 = vadd.f32 %v1324, %v1246
      %v1326 = vadd.f32 %v1325, %v1248
      %v1327 = vadd.f32 %v1326, %v1250
      %v1328 = vadd.f32 %v1327, %v1252
      %v1329 = vadd.f32 %v1328, %v1254
      %v1330 = vadd.f32 %v1329, %v1256
      %v1331 = vadd.f32 %v1330, %v1258
      %v1332 = vadd.f32 %v1331, %v1260
      %v1333 = vadd.f32 %v1332, %v1262
      %v1334 = vadd.f32 %v1333, %v1264
      %v1335 = vadd.f32 %v1334, %v1266
      %v1336 = vadd.f32 %v1335, %v1268
      %v1337 = vadd.f32 %v1336, %v1270
      %v1338 = vadd.f32 %v1337, %v1272
      %v1339 = vadd.f32 %v1338, %v1274
      %v1340 = vadd.f32 %v1339, %v1276
      %v1341 = vrot.slane %v1340, 4
      %v1342 = vadd.f32 %v1340, %v1341
      %v1343 = vrot.slane %v1342, 2
      %v1344 = vadd.f32 %v1342, %v1343
      %v1345 = vrot.slane %v1344, 1
      %v1346 = vadd.f32 %v1344, %v1345
      %v1347 = vadd.f32 %v1151, %v1153
      %v1348 = vadd.f32 %v1347, %v1155
      %v1349 = vadd.f32 %v1348, %v1157
      %v1350 = vadd.f32 %v1349, %v1159
      %v1351 = vadd.f32 %v1350, %v1161
      %v1352 = vadd.f32 %v1351, %v1163
      %v1353 = vadd.f32 %v1352, %v1165
      %v1354 = vadd.f32 %v1353, %v1167
      %v1355 = vadd.f32 %v1354, %v1169
      %v1356 = vadd.f32 %v1355, %v1171
      %v1357 = vadd.f32 %v1356, %v1173
      %v1358 = vadd.f32 %v1357, %v1175
      %v1359 = vadd.f32 %v1358, %v1177
      %v1360 = vadd.f32 %v1359, %v1179
      %v1361 = vadd.f32 %v1360, %v1181
      %v1362 = vadd.f32 %v1361, %v1183
      %v1363 = vadd.f32 %v1362, %v1185
      %v1364 = vadd.f32 %v1363, %v1187
      %v1365 = vadd.f32 %v1364, %v1189
      %v1366 = vadd.f32 %v1365, %v1191
      %v1367 = vadd.f32 %v1366, %v1193
      %v1368 = vadd.f32 %v1367, %v1195
      %v1369 = vadd.f32 %v1368, %v1197
      %v1370 = vadd.f32 %v1369, %v1199
      %v1371 = vadd.f32 %v1370, %v1201
      %v1372 = vadd.f32 %v1371, %v1203
      %v1373 = vadd.f32 %v1372, %v1205
      %v1374 = vadd.f32 %v1373, %v1207
      %v1375 = vadd.f32 %v1374, %v1209
      %v1376 = vadd.f32 %v1375, %v1211
      %v1377 = vadd.f32 %v1376, %v1213
      %v1378 = vadd.f32 %v1377, %v1215
      %v1379 = vadd.f32 %v1378, %v1217
      %v1380 = vadd.f32 %v1379, %v1219
      %v1381 = vadd.f32 %v1380, %v1221
      %v1382 = vadd.f32 %v1381, %v1223
      %v1383 = vadd.f32 %v1382, %v1225
      %v1384 = vadd.f32 %v1383, %v1227
      %v1385 = vadd.f32 %v1384, %v1229
      %v1386 = vadd.f32 %v1385, %v1231
      %v1387 = vadd.f32 %v1386, %v1233
      %v1388 = vadd.f32 %v1387, %v1235
      %v1389 = vadd.f32 %v1388, %v1237
      %v1390 = vadd.f32 %v1389, %v1239
      %v1391 = vadd.f32 %v1390, %v1241
      %v1392 = vadd.f32 %v1391, %v1243
      %v1393 = vadd.f32 %v1392, %v1245
      %v1394 = vadd.f32 %v1393, %v1247
      %v1395 = vadd.f32 %v1394, %v1249
      %v1396 = vadd.f32 %v1395, %v1251
      %v1397 = vadd.f32 %v1396, %v1253
      %v1398 = vadd.f32 %v1397, %v1255
      %v1399 = vadd.f32 %v1398, %v1257
      %v1400 = vadd.f32 %v1399, %v1259
      %v1401 = vadd.f32 %v1400, %v1261
      %v1402 = vadd.f32 %v1401, %v1263
      %v1403 = vadd.f32 %v1402, %v1265
      %v1404 = vadd.f32 %v1403, %v1267
      %v1405 = vadd.f32 %v1404, %v1269
      %v1406 = vadd.f32 %v1405, %v1271
      %v1407 = vadd.f32 %v1406, %v1273
      %v1408 = vadd.f32 %v1407, %v1275
      %v1409 = vadd.f32 %v1408, %v1277
      %v1410 = vrot.slane %v1409, 4
      %v1411 = vadd.f32 %v1409, %v1410
      %v1412 = vrot.slane %v1411, 2
      %v1413 = vadd.f32 %v1411, %v1412
      %v1414 = vrot.slane %v1413, 1
      %v1415 = vadd.f32 %v1413, %v1414
      %vm1416 = vcmask 1040384
      %v1417 = vsel %vm1416, %v1080, %v1346
      %v1418 = vsel %vm1416, %v1149, %v1415
      %vm1419 = vcmask 1041408
      %v1420 = vsel %vm1419, %v1417, 0.0
      %v1421 = vsel %vm1419, %v1418, 0.0
      %1422 = vst [vmem:[%s172] sm:$0xff] %v1420
      %1423 = vst [vmem:[%s172 + $0x8] sm:$0xff] %v1421
      %p1424 = scmp.lt.s32.totalorder %s14, 1
      %s1425 = scalar_select %p1424, %s14, 1
      %s1426 = smul.addr %s1425, 2
      %s1427 = smul.addr %s1426, 8
      %s1428 = scalar_lea.vmem %s3, %s1427
      // Predicated region
      $region33: #{network_forward.2} parent=31 // pred_check
        %p1429 = pneg %p100
      $region34: #{network_forward.2} parent=31 // pred_check_branch
        %1431 = sbr.rel (%p1429) target = $region36
      $region35: #{network_forward.2} parent=31 // pred_region
        _
      $region36: #{network_forward.2} parent=31 // pred_fallthru
        _
    $region32: #{network_forward.2} parent=5 // pred_fallthru
      _
    %p1432 = scmp.le.s32.totalorder 2, %s9
    // Predicated region
    $region37: #{network_forward.2} parent=5 // pred_check
      %p1433 = pneg %p1432
    $region38: #{network_forward.2} parent=5 // pred_check_branch
      %1435 = sbr.rel (%p1433) target = $region40
    $region39: #{network_forward.2} parent=5 // pred_region
      %s1436 = ssub.s32 %s9, 2
      // Predicated region
      $region41: #{network_forward.2} parent=39 // pred_check
        %p1437 = pneg %p106
      $region42: #{network_forward.2} parent=39 // pred_check_branch
        %1439 = sbr.rel (%p1437) target = $region44
      $region43: #{network_forward.2} parent=39 // pred_region
        %p1440 = scmp.lt.s32.totalorder %s15, 1
        %s1441 = scalar_select %p1440, %s15, 1
        %s1442 = smul.addr %s1441, 2
        %s1443 = smul.addr %s1442, 8
        %s1444 = scalar_lea.vmem %s3, %s1443
      $region44: #{network_forward.2} parent=39 // pred_fallthru
        _
    $region40: #{network_forward.2} parent=5 // pred_fallthru
      _
  $region6: #{network_forward.2} parent=0 // loop_footer
    %s13 = sadd.s32 1, %s9
  $region7: #{network_forward.2} parent=0 // loop_footer_branch
    %8 = sbr.rel target = $region3
  $region8: #{network_forward.2} parent=0 // loop_exit
    _

// kernel: network_forward.3
$region0: #{network_forward.3}
  #allocation0 [shape = 'u32[]', space=smem, size = 0x4, offset = 0x4, fixed_abs, tag = 'smem constant byte address 0x4 - core index']
  #allocation1 [shape = 'u32[144,128]{1,0:T(1,128)}', space=vmem, size = 0x12000, scoped, tag = 'internal scratch']
  %s0 = inlined_call_operand.vmem [shape: bf16[1024,32], index: 0, kind: input, shape index: {}]
  %s1 = inlined_call_operand.vmem [shape: bf16[32,256], index: 1, kind: input, shape index: {}]
  %s2 = inlined_call_operand.vmem [shape: f32[1,256], index: 2, kind: input, shape index: {}]
  %s3 = inlined_call_operand.vmem [shape: bf16[256,128], index: 3, kind: input, shape index: {}]
  %s4 = inlined_call_operand.vmem [shape: f32[1,128], index: 4, kind: input, shape index: {}]
  %s5 = inlined_call_operand.vmem [shape: bf16[128,128], index: 5, kind: input, shape index: {}]
  %s6 = inlined_call_operand.vmem [shape: f32[1,128], index: 6, kind: input, shape index: {}]
  %s7 = inlined_call_operand.vmem [shape: bf16[128,128], index: 7, kind: input, shape index: {}]
  %s8 = inlined_call_operand.vmem [shape: f32[1,128], index: 8, kind: input, shape index: {}]
  %s9 = inlined_call_operand.vmem [shape: f32[1024,128], index: 9, kind: output, shape index: {}]
  %s10 = sld [smem:[#allocation0]]
  $region69: #{network_forward.3} parent=0
    _
  %s12 = ssub.s32 1, %s10
  %s13 = scalar_select 0, %s12, %s10
  loop: start=0, step=1, limit=4
  $region2: #{network_forward.3} parent=0 // loop_pre_header
    _
  $region3: #{network_forward.3} parent=0 // loop_header
    %s15 = sphi 0, %s19
    %p16 = scmp.ge.s32.totalorder %s15, 4
    %s25 = sphi 0, %s27
    %s28 = sphi 0, %s25
    %s29 = sphi 0, %s28
    %s45 = sphi 0, %s29
    %s49 = sphi 0, %s49
    %s51 = sphi 0, %s49
    %s52 = sphi 0, %s51
    %s66 = sphi 0, %s52
    %s70 = sphi 0, %s70
    %s72 = sphi 0, %s70
    %s73 = sphi 0, %s72
    %s87 = sphi 0, %s73
    %s91 = sphi 0, %s91
    %s93 = sphi 0, %s91
    %s94 = sphi 0, %s93
    %s108 = sphi 0, %s94
    %s112 = sphi 0, %s112
    %s114 = sphi 0, %s112
    %s115 = sphi 0, %s114
    %s129 = sphi 0, %s115
    %s133 = sphi 0, %s133
    %s135 = sphi 0, %s133
    %s136 = sphi 0, %s135
    %s150 = sphi 0, %s136
    %s154 = sphi 0, %s154
    %s156 = sphi 0, %s154
    %s157 = sphi 0, %s156
    %s171 = sphi 0, %s157
    %s175 = sphi 0, %s175
    %s177 = sphi 0, %s175
    %s178 = sphi 0, %s177
    %s192 = sphi 0, %s178
    %s196 = sphi 0, %s196
    %s198 = sphi 0, %s196
    %s199 = sphi 0, %s198
    %s213 = sphi 0, %s199
    %s219 = sphi 0, %s221
    %s222 = sphi 0, %s219
    %s223 = sphi 0, %s222
    %s239 = sphi 0, %s223
  $region4: #{network_forward.3} parent=0 // loop_header_branch
    %18 = sbr.rel (%p16) target = $region8
  $region5: #{network_forward.3} parent=0 // loop_body
    %s20 = ssub.s32 %s15, 1
    %s21 = ssub.s32 %s15, 2
    %s22 = sadd.s32 %s15, 1
    %s23 = ssub.s32 %s15, %s22
    %p24 = scmp.eq.s32.totalorder %s23, 0
    %s26 = sadd.s32 %s25, 1
    %s27 = scalar_select %p24, %s25, %s26
    %p30 = pneg %p24
    %p31 = scmp.eq.s32.totalorder %s15, 1
    %p32 = por %p30, %p31
    %p33 = scmp.ne.s32.totalorder %s25, %s28
    %p34 = scmp.eq.s32.totalorder %s15, 0
    %p35 = por %p33, %p34
    %p36 = scmp.ne.s32.totalorder %s25, %s28
    %p37 = scmp.eq.s32.totalorder %s20, 1
    %p38 = por %p36, %p37
    %p39 = scmp.ne.s32.totalorder %s28, %s29
    %p40 = scmp.eq.s32.totalorder %s20, 0
    %p41 = por %p39, %p40
    %p42 = scmp.ne.s32.totalorder %s28, %s29
    %p43 = scmp.eq.s32.totalorder %s21, 1
    %p44 = por %p42, %p43
    %p46 = scmp.ne.s32.totalorder %s29, %s45
    %p47 = scmp.eq.s32.totalorder %s21, 0
    %p48 = por %p46, %p47
    %s50 = sadd.s32 %s49, 1
    %p53 = scmp.eq.s32.totalorder %s15, 1
    %p54 = scmp.ne.s32.totalorder %s49, %s51
    %p55 = scmp.eq.s32.totalorder %s15, 0
    %p56 = por %p54, %p55
    %p57 = scmp.ne.s32.totalorder %s49, %s51
    %p58 = scmp.eq.s32.totalorder %s20, 1
    %p59 = por %p57, %p58
    %p60 = scmp.ne.s32.totalorder %s51, %s52
    %p61 = scmp.eq.s32.totalorder %s20, 0
    %p62 = por %p60, %p61
    %p63 = scmp.ne.s32.totalorder %s51, %s52
    %p64 = scmp.eq.s32.totalorder %s21, 1
    %p65 = por %p63, %p64
    %p67 = scmp.ne.s32.totalorder %s52, %s66
    %p68 = scmp.eq.s32.totalorder %s21, 0
    %p69 = por %p67, %p68
    %s71 = sadd.s32 %s70, 1
    %p74 = scmp.eq.s32.totalorder %s15, 1
    %p75 = scmp.ne.s32.totalorder %s70, %s72
    %p76 = scmp.eq.s32.totalorder %s15, 0
    %p77 = por %p75, %p76
    %p78 = scmp.ne.s32.totalorder %s70, %s72
    %p79 = scmp.eq.s32.totalorder %s20, 1
    %p80 = por %p78, %p79
    %p81 = scmp.ne.s32.totalorder %s72, %s73
    %p82 = scmp.eq.s32.totalorder %s20, 0
    %p83 = por %p81, %p82
    %p84 = scmp.ne.s32.totalorder %s72, %s73
    %p85 = scmp.eq.s32.totalorder %s21, 1
    %p86 = por %p84, %p85
    %p88 = scmp.ne.s32.totalorder %s73, %s87
    %p89 = scmp.eq.s32.totalorder %s21, 0
    %p90 = por %p88, %p89
    %s92 = sadd.s32 %s91, 1
    %p95 = scmp.eq.s32.totalorder %s15, 1
    %p96 = scmp.ne.s32.totalorder %s91, %s93
    %p97 = scmp.eq.s32.totalorder %s15, 0
    %p98 = por %p96, %p97
    %p99 = scmp.ne.s32.totalorder %s91, %s93
    %p100 = scmp.eq.s32.totalorder %s20, 1
    %p101 = por %p99, %p100
    %p102 = scmp.ne.s32.totalorder %s93, %s94
    %p103 = scmp.eq.s32.totalorder %s20, 0
    %p104 = por %p102, %p103
    %p105 = scmp.ne.s32.totalorder %s93, %s94
    %p106 = scmp.eq.s32.totalorder %s21, 1
    %p107 = por %p105, %p106
    %p109 = scmp.ne.s32.totalorder %s94, %s108
    %p110 = scmp.eq.s32.totalorder %s21, 0
    %p111 = por %p109, %p110
    %s113 = sadd.s32 %s112, 1
    %p116 = scmp.eq.s32.totalorder %s15, 1
    %p117 = scmp.ne.s32.totalorder %s112, %s114
    %p118 = scmp.eq.s32.totalorder %s15, 0
    %p119 = por %p117, %p118
    %p120 = scmp.ne.s32.totalorder %s112, %s114
    %p121 = scmp.eq.s32.totalorder %s20, 1
    %p122 = por %p120, %p121
    %p123 = scmp.ne.s32.totalorder %s114, %s115
    %p124 = scmp.eq.s32.totalorder %s20, 0
    %p125 = por %p123, %p124
    %p126 = scmp.ne.s32.totalorder %s114, %s115
    %p127 = scmp.eq.s32.totalorder %s21, 1
    %p128 = por %p126, %p127
    %p130 = scmp.ne.s32.totalorder %s115, %s129
    %p131 = scmp.eq.s32.totalorder %s21, 0
    %p132 = por %p130, %p131
    %s134 = sadd.s32 %s133, 1
    %p137 = scmp.eq.s32.totalorder %s15, 1
    %p138 = scmp.ne.s32.totalorder %s133, %s135
    %p139 = scmp.eq.s32.totalorder %s15, 0
    %p140 = por %p138, %p139
    %p141 = scmp.ne.s32.totalorder %s133, %s135
    %p142 = scmp.eq.s32.totalorder %s20, 1
    %p143 = por %p141, %p142
    %p144 = scmp.ne.s32.totalorder %s135, %s136
    %p145 = scmp.eq.s32.totalorder %s20, 0
    %p146 = por %p144, %p145
    %p147 = scmp.ne.s32.totalorder %s135, %s136
    %p148 = scmp.eq.s32.totalorder %s21, 1
    %p149 = por %p147, %p148
    %p151 = scmp.ne.s32.totalorder %s136, %s150
    %p152 = scmp.eq.s32.totalorder %s21, 0
    %p153 = por %p151, %p152
    %s155 = sadd.s32 %s154, 1
    %p158 = scmp.eq.s32.totalorder %s15, 1
    %p159 = scmp.ne.s32.totalorder %s154, %s156
    %p160 = scmp.eq.s32.totalorder %s15, 0
    %p161 = por %p159, %p160
    %p162 = scmp.ne.s32.totalorder %s154, %s156
    %p163 = scmp.eq.s32.totalorder %s20, 1
    %p164 = por %p162, %p163
    %p165 = scmp.ne.s32.totalorder %s156, %s157
    %p166 = scmp.eq.s32.totalorder %s20, 0
    %p167 = por %p165, %p166
    %p168 = scmp.ne.s32.totalorder %s156, %s157
    %p169 = scmp.eq.s32.totalorder %s21, 1
    %p170 = por %p168, %p169
    %p172 = scmp.ne.s32.totalorder %s157, %s171
    %p173 = scmp.eq.s32.totalorder %s21, 0
    %p174 = por %p172, %p173
    %s176 = sadd.s32 %s175, 1
    %p179 = scmp.eq.s32.totalorder %s15, 1
    %p180 = scmp.ne.s32.totalorder %s175, %s177
    %p181 = scmp.eq.s32.totalorder %s15, 0
    %p182 = por %p180, %p181
    %p183 = scmp.ne.s32.totalorder %s175, %s177
    %p184 = scmp.eq.s32.totalorder %s20, 1
    %p185 = por %p183, %p184
    %p186 = scmp.ne.s32.totalorder %s177, %s178
    %p187 = scmp.eq.s32.totalorder %s20, 0
    %p188 = por %p186, %p187
    %p189 = scmp.ne.s32.totalorder %s177, %s178
    %p190 = scmp.eq.s32.totalorder %s21, 1
    %p191 = por %p189, %p190
    %p193 = scmp.ne.s32.totalorder %s178, %s192
    %p194 = scmp.eq.s32.totalorder %s21, 0
    %p195 = por %p193, %p194
    %s197 = sadd.s32 %s196, 1
    %p200 = scmp.eq.s32.totalorder %s15, 1
    %p201 = scmp.ne.s32.totalorder %s196, %s198
    %p202 = scmp.eq.s32.totalorder %s15, 0
    %p203 = por %p201, %p202
    %p204 = scmp.ne.s32.totalorder %s196, %s198
    %p205 = scmp.eq.s32.totalorder %s20, 1
    %p206 = por %p204, %p205
    %p207 = scmp.ne.s32.totalorder %s198, %s199
    %p208 = scmp.eq.s32.totalorder %s20, 0
    %p209 = por %p207, %p208
    %p210 = scmp.ne.s32.totalorder %s198, %s199
    %p211 = scmp.eq.s32.totalorder %s21, 1
    %p212 = por %p210, %p211
    %p214 = scmp.ne.s32.totalorder %s199, %s213
    %p215 = scmp.eq.s32.totalorder %s21, 0
    %p216 = por %p214, %p215
    %s217 = ssub.s32 %s15, %s22
    %p218 = scmp.eq.s32.totalorder %s217, 0
    %s220 = sadd.s32 %s219, 1
    %s221 = scalar_select %p218, %s219, %s220
    %p224 = pneg %p218
    %p225 = scmp.eq.s32.totalorder %s15, 1
    %p226 = por %p224, %p225
    %p227 = scmp.ne.s32.totalorder %s219, %s222
    %p228 = scmp.eq.s32.totalorder %s15, 0
    %p229 = por %p227, %p228
    %p230 = scmp.ne.s32.totalorder %s219, %s222
    %p231 = scmp.eq.s32.totalorder %s20, 1
    %p232 = por %p230, %p231
    %p233 = scmp.ne.s32.totalorder %s222, %s223
    %p234 = scmp.eq.s32.totalorder %s20, 0
    %p235 = por %p233, %p234
    %p236 = scmp.ne.s32.totalorder %s222, %s223
    %p237 = scmp.eq.s32.totalorder %s21, 1
    %p238 = por %p236, %p237
    %p240 = scmp.ne.s32.totalorder %s223, %s239
    %p241 = scmp.eq.s32.totalorder %s21, 0
    %p242 = por %p240, %p241
    %p243 = scmp.le.s32.totalorder 1, %s15
    %p244 = scmp.lt.s32.totalorder %s15, 3
    %p245 = pnand %p243, %p244
    %p246 = pneg %p245
    // Predicated region
    $region9: #{network_forward.3} parent=5 // pred_check
      _
    $region10: #{network_forward.3} parent=5 // pred_check_branch
      %248 = sbr.rel (%p245) target = $region12
    $region11: #{network_forward.3} parent=5 // pred_region
      %s249 = ssub.s32 %s15, 1
      // Predicated region
      $region13: #{network_forward.3} parent=11 // pred_check
        %p250 = pneg %p62
      $region14: #{network_forward.3} parent=11 // pred_check_branch
        %252 = sbr.rel (%p250) target = $region16
      $region15: #{network_forward.3} parent=11 // pred_region
        _
      $region16: #{network_forward.3} parent=11 // pred_fallthru
        _
      // Predicated region
      $region17: #{network_forward.3} parent=11 // pred_check
        %p253 = pneg %p83
      $region18: #{network_forward.3} parent=11 // pred_check_branch
        %255 = sbr.rel (%p253) target = $region20
      $region19: #{network_forward.3} parent=11 // pred_region
        _
      $region20: #{network_forward.3} parent=11 // pred_fallthru
        _
      // Predicated region
      $region21: #{network_forward.3} parent=11 // pred_check
        %p256 = pneg %p104
      $region22: #{network_forward.3} parent=11 // pred_check_branch
        %258 = sbr.rel (%p256) target = $region24
      $region23: #{network_forward.3} parent=11 // pred_region
        _
      $region24: #{network_forward.3} parent=11 // pred_fallthru
        _
      // Predicated region
      $region25: #{network_forward.3} parent=11 // pred_check
        %p259 = pneg %p125
      $region26: #{network_forward.3} parent=11 // pred_check_branch
        %261 = sbr.rel (%p259) target = $region28
      $region27: #{network_forward.3} parent=11 // pred_region
        _
      $region28: #{network_forward.3} parent=11 // pred_fallthru
        _
      // Predicated region
      $region29: #{network_forward.3} parent=11 // pred_check
        %p262 = pneg %p146
      $region30: #{network_forward.3} parent=11 // pred_check_branch
        %264 = sbr.rel (%p262) target = $region32
      $region31: #{network_forward.3} parent=11 // pred_region
        _
      $region32: #{network_forward.3} parent=11 // pred_fallthru
        _
      // Predicated region
      $region33: #{network_forward.3} parent=11 // pred_check
        %p265 = pneg %p167
      $region34: #{network_forward.3} parent=11 // pred_check_branch
        %267 = sbr.rel (%p265) target = $region36
      $region35: #{network_forward.3} parent=11 // pred_region
        _
      $region36: #{network_forward.3} parent=11 // pred_fallthru
        _
      // Predicated region
      $region37: #{network_forward.3} parent=11 // pred_check
        %p268 = pneg %p188
      $region38: #{network_forward.3} parent=11 // pred_check_branch
        %270 = sbr.rel (%p268) target = $region40
      $region39: #{network_forward.3} parent=11 // pred_region
        _
      $region40: #{network_forward.3} parent=11 // pred_fallthru
        _
      // Predicated region
      $region41: #{network_forward.3} parent=11 // pred_check
        %p271 = pneg %p209
      $region42: #{network_forward.3} parent=11 // pred_check_branch
        %273 = sbr.rel (%p271) target = $region44
      $region43: #{network_forward.3} parent=11 // pred_region
        _
      $region44: #{network_forward.3} parent=11 // pred_fallthru
        _
    $region12: #{network_forward.3} parent=5 // pred_fallthru
      _
    %p274 = scmp.lt.s32.totalorder %s15, 2
    // Predicated region
    $region45: #{network_forward.3} parent=5 // pred_check
      %p275 = pneg %p274
    $region46: #{network_forward.3} parent=5 // pred_check_branch
      %277 = sbr.rel (%p275) target = $region48
    $region47: #{network_forward.3} parent=5 // pred_region
      // Predicated region
      $region49: #{network_forward.3} parent=47 // pred_check
        %p278 = pneg %p35
      $region50: #{network_forward.3} parent=47 // pred_check_branch
        %280 = sbr.rel (%p278) target = $region52
      $region51: #{network_forward.3} parent=47 // pred_region
        %s281 = smul.u32 64, %s15
        %p282 = scmp.lt.s32.totalorder %s281, 127
        %s283 = scalar_select %p282, %s281, 127
        %s284 = smul.addr %s283, 4
        %s285 = scalar_lea.vmem %s0, %s284
        %s286 = smul.u32 64, %s15
      $region52: #{network_forward.3} parent=47 // pred_fallthru
        _
    $region48: #{network_forward.3} parent=5 // pred_fallthru
      _
    %p287 = scmp.le.s32.totalorder 1, %s15
    %p288 = scmp.lt.s32.totalorder %s15, 3
    %p289 = pnand %p287, %p288
    %p290 = pneg %p289
    // Predicated region
    $region53: #{network_forward.3} parent=5 // pred_check
      _
    $region54: #{network_forward.3} parent=5 // pred_check_branch
      %292 = sbr.rel (%p289) target = $region56
    $region55: #{network_forward.3} parent=5 // pred_region
      %s293 = ssub.s32 %s15, 1
      %s294 = smul.u32 64, %s20
      %p295 = scmp.lt.s32.totalorder %s294, 127
      %s296 = scalar_select %p295, %s294, 127
      %s297 = smul.addr %s296, 4
      %s298 = scalar_lea.vmem %s0, %s297
      %p299 = pneg %p41
      %p300 = pneg %p38
      %p301 = pneg %p62
      %p302 = pneg %p59
      %p303 = pneg %p83
      %p304 = pneg %p80
      %p305 = pneg %p104
      %p306 = pneg %p101
      %p307 = pneg %p125
      %p308 = pneg %p122
      %p309 = pneg %p146
      %p310 = pneg %p143
      %p311 = pneg %p167
      %p312 = pneg %p164
      %p313 = pneg %p188
      %p314 = pneg %p185
      %p315 = pneg %p209
      %p316 = pneg %p206
      %p317 = pneg %p235
      %p318 = pneg %p232
      %s319 = smul.u32 64, %s20
      %p320 = scmp.lt.s32.totalorder %s319, 127
      %s321 = scalar_select %p320, %s319, 127
      %s322 = smul.addr %s321, 8
      %s323 = scalar_lea.vmem %s9, %s322
      %s324 = smul.u32 64, %s20
      %p325 = scmp.lt.s32.totalorder %s324, 127
      %s326 = scalar_select %p325, %s324, 127
      %s327 = smul.addr %s326, 4
      %s328 = scalar_lea.vmem %s0, %s327
      %s329 = smul.u32 64, %s20
      %s330 = smul.u32 64, %s20
      %p331 = scmp.lt.s32.totalorder %s330, 127
      %s332 = scalar_select %p331, %s330, 127
      %s333 = smul.addr %s332, 8
      %s334 = scalar_lea.vmem %s9, %s333
      %s335 = smul.u32 64, %s20
      %v337 = vld [vmem:[%s328] sm:$0xf]
      %v338 = vld [vmem:[%s328 + $0x4] sm:$0xf]
      %v339 = vld [vmem:[%s328 + $0x8] sm:$0xf]
      %v340 = vld [vmem:[%s328 + $0xc] sm:$0xf]
      %v341 = vld [vmem:[%s328 + $0x10] sm:$0xf]
      %v342 = vld [vmem:[%s328 + $0x14] sm:$0xf]
      %v343 = vld [vmem:[%s328 + $0x18] sm:$0xf]
      %v344 = vld [vmem:[%s328 + $0x1c] sm:$0xf]
      %v345 = vld [vmem:[%s328 + $0x20] sm:$0xf]
      %v346 = vld [vmem:[%s328 + $0x24] sm:$0xf]
      %v347 = vld [vmem:[%s328 + $0x28] sm:$0xf]
      %v348 = vld [vmem:[%s328 + $0x2c] sm:$0xf]
      %v349 = vld [vmem:[%s328 + $0x30] sm:$0xf]
      %v350 = vld [vmem:[%s328 + $0x34] sm:$0xf]
      %v351 = vld [vmem:[%s328 + $0x38] sm:$0xf]
      %v352 = vld [vmem:[%s328 + $0x3c] sm:$0xf]
      %v353 = vld [vmem:[%s328 + $0x40] sm:$0xf]
      %v354 = vld [vmem:[%s328 + $0x44] sm:$0xf]
      %v355 = vld [vmem:[%s328 + $0x48] sm:$0xf]
      %v356 = vld [vmem:[%s328 + $0x4c] sm:$0xf]
      %v357 = vld [vmem:[%s328 + $0x50] sm:$0xf]
      %v358 = vld [vmem:[%s328 + $0x54] sm:$0xf]
      %v359 = vld [vmem:[%s328 + $0x58] sm:$0xf]
      %v360 = vld [vmem:[%s328 + $0x5c] sm:$0xf]
      %v361 = vld [vmem:[%s328 + $0x60] sm:$0xf]
      %v362 = vld [vmem:[%s328 + $0x64] sm:$0xf]
      %v363 = vld [vmem:[%s328 + $0x68] sm:$0xf]
      %v364 = vld [vmem:[%s328 + $0x6c] sm:$0xf]
      %v365 = vld [vmem:[%s328 + $0x70] sm:$0xf]
      %v366 = vld [vmem:[%s328 + $0x74] sm:$0xf]
      %v367 = vld [vmem:[%s328 + $0x78] sm:$0xf]
      %v368 = vld [vmem:[%s328 + $0x7c] sm:$0xf]
      %v369 = vld [vmem:[%s328 + $0x80] sm:$0xf]
      %v370 = vld [vmem:[%s328 + $0x84] sm:$0xf]
      %v371 = vld [vmem:[%s328 + $0x88] sm:$0xf]
      %v372 = vld [vmem:[%s328 + $0x8c] sm:$0xf]
      %v373 = vld [vmem:[%s328 + $0x90] sm:$0xf]
      %v374 = vld [vmem:[%s328 + $0x94] sm:$0xf]
      %v375 = vld [vmem:[%s328 + $0x98] sm:$0xf]
      %v376 = vld [vmem:[%s328 + $0x9c] sm:$0xf]
      %v377 = vld [vmem:[%s328 + $0xa0] sm:$0xf]
      %v378 = vld [vmem:[%s328 + $0xa4] sm:$0xf]
      %v379 = vld [vmem:[%s328 + $0xa8] sm:$0xf]
      %v380 = vld [vmem:[%s328 + $0xac] sm:$0xf]
      %v381 = vld [vmem:[%s328 + $0xb0] sm:$0xf]
      %v382 = vld [vmem:[%s328 + $0xb4] sm:$0xf]
      %v383 = vld [vmem:[%s328 + $0xb8] sm:$0xf]
      %v384 = vld [vmem:[%s328 + $0xbc] sm:$0xf]
      %v385 = vld [vmem:[%s328 + $0xc0] sm:$0xf]
      %v386 = vld [vmem:[%s328 + $0xc4] sm:$0xf]
      %v387 = vld [vmem:[%s328 + $0xc8] sm:$0xf]
      %v388 = vld [vmem:[%s328 + $0xcc] sm:$0xf]
      %v389 = vld [vmem:[%s328 + $0xd0] sm:$0xf]
      %v390 = vld [vmem:[%s328 + $0xd4] sm:$0xf]
      %v391 = vld [vmem:[%s328 + $0xd8] sm:$0xf]
      %v392 = vld [vmem:[%s328 + $0xdc] sm:$0xf]
      %v393 = vld [vmem:[%s328 + $0xe0] sm:$0xf]
      %v394 = vld [vmem:[%s328 + $0xe4] sm:$0xf]
      %v395 = vld [vmem:[%s328 + $0xe8] sm:$0xf]
      %v396 = vld [vmem:[%s328 + $0xec] sm:$0xf]
      %v397 = vld [vmem:[%s328 + $0xf0] sm:$0xf]
      %v398 = vld [vmem:[%s328 + $0xf4] sm:$0xf]
      %v399 = vld [vmem:[%s328 + $0xf8] sm:$0xf]
      %v400 = vld [vmem:[%s328 + $0xfc] sm:$0xf]
      %v401 = vld [vmem:[%s1] sm:$0xff]
      %v402 = vld [vmem:[%s1 + $0x8] sm:$0xff]
      %v403 = vld [vmem:[%s1 + $0x10] sm:$0xff]
      %v404 = vld [vmem:[%s1 + $0x18] sm:$0xff]
      %v405 = vld [vmem:[%s2] sm:$0x3]
      %v407 = vlaneseq
      %v408 = vshrl.u32 %v407, 7
      %v409 = vsub.s32 0, %v408
      %v410 = vrot.slane %v405, %v409
      %v411 = vlaneseq
      %v412 = vshrl.u32 %v411, 7
      %v413 = vsub.s32 1, %v412
      %v414 = vrot.slane %v405, %v413
      %v481 = vunpack.c.l.b16 %v337
      %v482 = vunpack.c.l.b16 %v338
      %v483 = vunpack.c.l.b16 %v339
      %v484 = vunpack.c.l.b16 %v340
      %v485 = vunpack.c.l.b16 %v341
      %v486 = vunpack.c.l.b16 %v342
      %v487 = vunpack.c.l.b16 %v343
      %v488 = vunpack.c.l.b16 %v344
      %v489 = vunpack.c.l.b16 %v345
      %v490 = vunpack.c.l.b16 %v346
      %v491 = vunpack.c.l.b16 %v347
      %v492 = vunpack.c.l.b16 %v348
      %v493 = vunpack.c.l.b16 %v349
      %v494 = vunpack.c.l.b16 %v350
      %v495 = vunpack.c.l.b16 %v351
      %v496 = vunpack.c.l.b16 %v352
      %v497 = vunpack.c.l.b16 %v353
      %v498 = vunpack.c.l.b16 %v354
      %v499 = vunpack.c.l.b16 %v355
      %v500 = vunpack.c.l.b16 %v356
      %v501 = vunpack.c.l.b16 %v357
      %v502 = vunpack.c.l.b16 %v358
      %v503 = vunpack.c.l.b16 %v359
      %v504 = vunpack.c.l.b16 %v360
      %v505 = vunpack.c.l.b16 %v361
      %v506 = vunpack.c.l.b16 %v362
      %v507 = vunpack.c.l.b16 %v363
      %v508 = vunpack.c.l.b16 %v364
      %v509 = vunpack.c.l.b16 %v365
      %v510 = vunpack.c.l.b16 %v366
      %v511 = vunpack.c.l.b16 %v367
      %v512 = vunpack.c.l.b16 %v368
      %v513 = vunpack.c.l.b16 %v369
      %v514 = vunpack.c.l.b16 %v370
      %v515 = vunpack.c.l.b16 %v371
      %v516 = vunpack.c.l.b16 %v372
      %v517 = vunpack.c.l.b16 %v373
      %v518 = vunpack.c.l.b16 %v374
      %v519 = vunpack.c.l.b16 %v375
      %v520 = vunpack.c.l.b16 %v376
      %v521 = vunpack.c.l.b16 %v377
      %v522 = vunpack.c.l.b16 %v378
      %v523 = vunpack.c.l.b16 %v379
      %v524 = vunpack.c.l.b16 %v380
      %v525 = vunpack.c.l.b16 %v381
      %v526 = vunpack.c.l.b16 %v382
      %v527 = vunpack.c.l.b16 %v383
      %v528 = vunpack.c.l.b16 %v384
      %v529 = vunpack.c.l.b16 %v385
      %v530 = vunpack.c.l.b16 %v386
      %v531 = vunpack.c.l.b16 %v387
      %v532 = vunpack.c.l.b16 %v388
      %v533 = vunpack.c.l.b16 %v389
      %v534 = vunpack.c.l.b16 %v390
      %v535 = vunpack.c.l.b16 %v391
      %v536 = vunpack.c.l.b16 %v392
      %v537 = vunpack.c.l.b16 %v393
      %v538 = vunpack.c.l.b16 %v394
      %v539 = vunpack.c.l.b16 %v395
      %v540 = vunpack.c.l.b16 %v396
      %v541 = vunpack.c.l.b16 %v397
      %v542 = vunpack.c.l.b16 %v398
      %v543 = vunpack.c.l.b16 %v399
      %v544 = vunpack.c.l.b16 %v400
      %v545 = vpack.c.b16 %v482, %v481
      %v546 = vpack.c.b16 %v484, %v483
      %v547 = vpack.c.b16 %v486, %v485
      %v548 = vpack.c.b16 %v488, %v487
      %v549 = vpack.c.b16 %v490, %v489
      %v550 = vpack.c.b16 %v492, %v491
      %v551 = vpack.c.b16 %v494, %v493
      %v552 = vpack.c.b16 %v496, %v495
      %v553 = vpack.c.b16 %v498, %v497
      %v554 = vpack.c.b16 %v500, %v499
      %v555 = vpack.c.b16 %v502, %v501
      %v556 = vpack.c.b16 %v504, %v503
      %v557 = vpack.c.b16 %v506, %v505
      %v558 = vpack.c.b16 %v508, %v507
      %v559 = vpack.c.b16 %v510, %v509
      %v560 = vpack.c.b16 %v512, %v511
      %v561 = vpack.c.b16 %v514, %v513
      %v562 = vpack.c.b16 %v516, %v515
      %v563 = vpack.c.b16 %v518, %v517
      %v564 = vpack.c.b16 %v520, %v519
      %v565 = vpack.c.b16 %v522, %v521
      %v566 = vpack.c.b16 %v524, %v523
      %v567 = vpack.c.b16 %v526, %v525
      %v568 = vpack.c.b16 %v528, %v527
      %v569 = vpack.c.b16 %v530, %v529
      %v570 = vpack.c.b16 %v532, %v531
      %v571 = vpack.c.b16 %v534, %v533
      %v572 = vpack.c.b16 %v536, %v535
      %v573 = vpack.c.b16 %v538, %v537
      %v574 = vpack.c.b16 %v540, %v539
      %v575 = vpack.c.b16 %v542, %v541
      %v576 = vpack.c.b16 %v544, %v543
      %v581 = vunpack.c.l.b16 %v401
      %v582 = vunpack.c.h.b16 %v401
      %v583 = vunpack.c.l.b16 %v402
      %v584 = vunpack.c.h.b16 %v402
      %v585 = vunpack.c.l.b16 %v403
      %v586 = vunpack.c.h.b16 %v403
      %v587 = vunpack.c.l.b16 %v404
      %v588 = vunpack.c.h.b16 %v404
      %v589 = vpack.c.b16 %v583, %v581
      %v590 = vpack.c.b16 %v584, %v582
      %v591 = vpack.c.b16 %v587, %v585
      %v592 = vpack.c.b16 %v588, %v586
      %vm597 = vcmask 261120
      %v599 = vsel %vm597, %v545, 0
      %v602 = vsel %vm597, %v546, 0
      %v605 = vsel %vm597, %v547, 0
      %v608 = vsel %vm597, %v548, 0
      %v611 = vsel %vm597, %v549, 0
      %v614 = vsel %vm597, %v550, 0
      %v617 = vsel %vm597, %v551, 0
      %v620 = vsel %vm597, %v552, 0
      %v623 = vsel %vm597, %v553, 0
      %v626 = vsel %vm597, %v554, 0
      %v629 = vsel %vm597, %v555, 0
      %v632 = vsel %vm597, %v556, 0
      %v635 = vsel %vm597, %v557, 0
      %v638 = vsel %vm597, %v558, 0
      %v641 = vsel %vm597, %v559, 0
      %v644 = vsel %vm597, %v560, 0
      %v647 = vsel %vm597, %v561, 0
      %v650 = vsel %vm597, %v562, 0
      %v653 = vsel %vm597, %v563, 0
      %v656 = vsel %vm597, %v564, 0
      %v659 = vsel %vm597, %v565, 0
      %v662 = vsel %vm597, %v566, 0
      %v665 = vsel %vm597, %v567, 0
      %v668 = vsel %vm597, %v568, 0
      %v671 = vsel %vm597, %v569, 0
      %v674 = vsel %vm597, %v570, 0
      %v677 = vsel %vm597, %v571, 0
      %v680 = vsel %vm597, %v572, 0
      %v683 = vsel %vm597, %v573, 0
      %v686 = vsel %vm597, %v574, 0
      %v689 = vsel %vm597, %v575, 0
      %v692 = vsel %vm597, %v576, 0
      %694 = vmatprep.subr.bf16.mxu0 %v590
      %695 = vmatpush1.bf16.msra.mxu0 %v589
      %696 = vmatprep.subr.bf16.mxu0 %v592
      %697 = vmatpush1.bf16.msra.mxu0 %v591
      %698 = vmatprep.subr.bf16.mxu0 0
      %699 = vmatpush1.bf16.msra.mxu0 0
      %700 = vmatprep.subr.bf16.mxu0 0
      %701 = vmatpush1.bf16.msra.mxu0 0
      %702 = vmatprep.subr.bf16.mxu0 0
      %703 = vmatpush1.bf16.msra.mxu0 0
      %704 = vmatprep.subr.bf16.mxu0 0
      %705 = vmatpush1.bf16.msra.mxu0 0
      %706 = vmatprep.subr.bf16.mxu0 0
      %707 = vmatpush1.bf16.msra.mxu0 0
      %708 = vmatprep.subr.bf16.mxu0 0
      %709 = vmatpush1.bf16.msra.mxu0 0
      %710 = vmatprep.subr.bf16.mxu0 0
      %711 = vmatpush1.bf16.msra.mxu0 0
      %712 = vmatprep.subr.bf16.mxu0 0
      %713 = vmatpush1.bf16.msra.mxu0 0
      %714 = vmatprep.subr.bf16.mxu0 0
      %715 = vmatpush1.bf16.msra.mxu0 0
      %716 = vmatprep.subr.bf16.mxu0 0
      %717 = vmatpush1.bf16.msra.mxu0 0
      %718 = vmatprep.subr.bf16.mxu0 0
      %719 = vmatpush1.bf16.msra.mxu0 0
      %720 = vmatprep.subr.bf16.mxu0 0
      %721 = vmatpush1.bf16.msra.mxu0 0
      %722 = vmatprep.subr.bf16.mxu0 0
      %723 = vmatpush1.bf16.msra.mxu0 0
      %724 = vmatprep.subr.bf16.mxu0 0
      %725 = vmatpush1.bf16.msra.mxu0 0
      %726 = vmatprep.mubr.bf16.mxu0 0
      %727 = vmatmul.mubr.bf16.gmra.mrb[0].mxu0 %v599
      %v728 = vpop.f32.mrb[0].mxu0
      %v729 = vadd.f32 %v410, %v728
      %v730 = vpop.f32.mrb[0].mxu0
      %v731 = vadd.f32 %v414, %v730
      %v732 = vpop.f32.mrb[0].mxu0
      %v733 = vadd.f32 %v410, %v732
      %v734 = vpop.f32.mrb[0].mxu0
      %v735 = vadd.f32 %v414, %v734
      %736 = vmatprep.mubr.bf16.mxu0 0
      %737 = vmatmul.mubr.bf16.gmra.mrb[0].mxu0 %v602
      %v738 = vpop.f32.mrb[0].mxu0
      %v739 = vadd.f32 %v410, %v738
      %v740 = vpop.f32.mrb[0].mxu0
      %v741 = vadd.f32 %v414, %v740
      %v742 = vpop.f32.mrb[0].mxu0
      %v743 = vadd.f32 %v410, %v742
      %v744 = vpop.f32.mrb[0].mxu0
      %v745 = vadd.f32 %v414, %v744
      %746 = vmatprep.mubr.bf16.mxu0 0
      %747 = vmatmul.mubr.bf16.gmra.mrb[0].mxu0 %v605
      %v748 = vpop.f32.mrb[0].mxu0
      %v749 = vadd.f32 %v410, %v748
      %v750 = vpop.f32.mrb[0].mxu0
      %v751 = vadd.f32 %v414, %v750
      %v752 = vpop.f32.mrb[0].mxu0
      %v753 = vadd.f32 %v410, %v752
      %v754 = vpop.f32.mrb[0].mxu0
      %v755 = vadd.f32 %v414, %v754
      %756 = vmatprep.mubr.bf16.mxu0 0
      %757 = vmatmul.mubr.bf16.gmra.mrb[0].mxu0 %v608
      %v758 = vpop.f32.mrb[0].mxu0
      %v759 = vadd.f32 %v410, %v758
      %v760 = vpop.f32.mrb[0].mxu0
      %v761 = vadd.f32 %v414, %v760
      %v762 = vpop.f32.mrb[0].mxu0
      %v763 = vadd.f32 %v410, %v762
      %v764 = vpop.f32.mrb[0].mxu0
      %v765 = vadd.f32 %v414, %v764
      %766 = vmatprep.mubr.bf16.mxu0 0
      %767 = vmatmul.mubr.bf16.gmra.mrb[0].mxu0 %v611
      %v768 = vpop.f32.mrb[0].mxu0
      %v769 = vadd.f32 %v410, %v768
      %v770 = vpop.f32.mrb[0].mxu0
      %v771 = vadd.f32 %v414, %v770
      %v772 = vpop.f32.mrb[0].mxu0
      %v773 = vadd.f32 %v410, %v772
      %v774 = vpop.f32.mrb[0].mxu0
      %v775 = vadd.f32 %v414, %v774
      %776 = vmatprep.mubr.bf16.mxu0 0
      %777 = vmatmul.mubr.bf16.gmra.mrb[0].mxu0 %v614
      %v778 = vpop.f32.mrb[0].mxu0
      %v779 = vadd.f32 %v410, %v778
      %v780 = vpop.f32.mrb[0].mxu0
      %v781 = vadd.f32 %v414, %v780
      %v782 = vpop.f32.mrb[0].mxu0
      %v783 = vadd.f32 %v410, %v782
      %v784 = vpop.f32.mrb[0].mxu0
      %v785 = vadd.f32 %v414, %v784
      %786 = vmatprep.mubr.bf16.mxu0 0
      %787 = vmatmul.mubr.bf16.gmra.mrb[0].mxu0 %v617
      %v788 = vpop.f32.mrb[0].mxu0
      %v789 = vadd.f32 %v410, %v788
      %v790 = vpop.f32.mrb[0].mxu0
      %v791 = vadd.f32 %v414, %v790
      %v792 = vpop.f32.mrb[0].mxu0
      %v793 = vadd.f32 %v410, %v792
      %v794 = vpop.f32.mrb[0].mxu0
      %v795 = vadd.f32 %v414, %v794
      %796 = vmatprep.mubr.bf16.mxu0 0
      %797 = vmatmul.mubr.bf16.gmra.mrb[0].mxu0 %v620
      %v798 = vpop.f32.mrb[0].mxu0
      %v799 = vadd.f32 %v410, %v798
      %v800 = vpop.f32.mrb[0].mxu0
      %v801 = vadd.f32 %v414, %v800
      %v802 = vpop.f32.mrb[0].mxu0
      %v803 = vadd.f32 %v410, %v802
      %v804 = vpop.f32.mrb[0].mxu0
      %v805 = vadd.f32 %v414, %v804
      %806 = vmatprep.mubr.bf16.mxu0 0
      %807 = vmatmul.mubr.bf16.gmra.mrb[0].mxu0 %v623
      %v808 = vpop.f32.mrb[0].mxu0
      %v809 = vadd.f32 %v410, %v808
      %v810 = vpop.f32.mrb[0].mxu0
      %v811 = vadd.f32 %v414, %v810
      %v812 = vpop.f32.mrb[0].mxu0
      %v813 = vadd.f32 %v410, %v812
      %v814 = vpop.f32.mrb[0].mxu0
      %v815 = vadd.f32 %v414, %v814
      %816 = vmatprep.mubr.bf16.mxu0 0
      %817 = vmatmul.mubr.bf16.gmra.mrb[0].mxu0 %v626
      %v818 = vpop.f32.mrb[0].mxu0
      %v819 = vadd.f32 %v410, %v818
      %v820 = vpop.f32.mrb[0].mxu0
      %v821 = vadd.f32 %v414, %v820
      %v822 = vpop.f32.mrb[0].mxu0
      %v823 = vadd.f32 %v410, %v822
      %v824 = vpop.f32.mrb[0].mxu0
      %v825 = vadd.f32 %v414, %v824
      %826 = vmatprep.mubr.bf16.mxu0 0
      %827 = vmatmul.mubr.bf16.gmra.mrb[0].mxu0 %v629
      %v828 = vpop.f32.mrb[0].mxu0
      %v829 = vadd.f32 %v410, %v828
      %v830 = vpop.f32.mrb[0].mxu0
      %v831 = vadd.f32 %v414, %v830
      %v832 = vpop.f32.mrb[0].mxu0
      %v833 = vadd.f32 %v410, %v832
      %v834 = vpop.f32.mrb[0].mxu0
      %v835 = vadd.f32 %v414, %v834
      %836 = vmatprep.mubr.bf16.mxu0 0
      %837 = vmatmul.mubr.bf16.gmra.mrb[0].mxu0 %v632
      %v838 = vpop.f32.mrb[0].mxu0
      %v839 = vadd.f32 %v410, %v838
      %v840 = vpop.f32.mrb[0].mxu0
      %v841 = vadd.f32 %v414, %v840
      %v842 = vpop.f32.mrb[0].mxu0
      %v843 = vadd.f32 %v410, %v842
      %v844 = vpop.f32.mrb[0].mxu0
      %v845 = vadd.f32 %v414, %v844
      %846 = vmatprep.mubr.bf16.mxu0 0
      %847 = vmatmul.mubr.bf16.gmra.mrb[0].mxu0 %v635
      %v848 = vpop.f32.mrb[0].mxu0
      %v849 = vadd.f32 %v410, %v848
      %v850 = vpop.f32.mrb[0].mxu0
      %v851 = vadd.f32 %v414, %v850
      %v852 = vpop.f32.mrb[0].mxu0
      %v853 = vadd.f32 %v410, %v852
      %v854 = vpop.f32.mrb[0].mxu0
      %v855 = vadd.f32 %v414, %v854
      %856 = vmatprep.mubr.bf16.mxu0 0
      %857 = vmatmul.mubr.bf16.gmra.mrb[0].mxu0 %v638
      %v858 = vpop.f32.mrb[0].mxu0
      %v859 = vadd.f32 %v410, %v858
      %v860 = vpop.f32.mrb[0].mxu0
      %v861 = vadd.f32 %v414, %v860
      %v862 = vpop.f32.mrb[0].mxu0
      %v863 = vadd.f32 %v410, %v862
      %v864 = vpop.f32.mrb[0].mxu0
      %v865 = vadd.f32 %v414, %v864
      %866 = vmatprep.mubr.bf16.mxu0 0
      %867 = vmatmul.mubr.bf16.gmra.mrb[0].mxu0 %v641
      %v868 = vpop.f32.mrb[0].mxu0
      %v869 = vadd.f32 %v410, %v868
      %v870 = vpop.f32.mrb[0].mxu0
      %v871 = vadd.f32 %v414, %v870
      %v872 = vpop.f32.mrb[0].mxu0
      %v873 = vadd.f32 %v410, %v872
      %v874 = vpop.f32.mrb[0].mxu0
      %v875 = vadd.f32 %v414, %v874
      %876 = vmatprep.mubr.bf16.mxu0 0
      %877 = vmatmul.mubr.bf16.gmra.mrb[0].mxu0 %v644
      %v878 = vpop.f32.mrb[0].mxu0
      %v879 = vadd.f32 %v410, %v878
      %v880 = vpop.f32.mrb[0].mxu0
      %v881 = vadd.f32 %v414, %v880
      %v882 = vpop.f32.mrb[0].mxu0
      %v883 = vadd.f32 %v410, %v882
      %v884 = vpop.f32.mrb[0].mxu0
      %v885 = vadd.f32 %v414, %v884
      %886 = vmatprep.mubr.bf16.mxu0 0
      %887 = vmatmul.mubr.bf16.gmra.mrb[0].mxu0 %v647
      %v888 = vpop.f32.mrb[0].mxu0
      %v889 = vadd.f32 %v410, %v888
      %v890 = vpop.f32.mrb[0].mxu0
      %v891 = vadd.f32 %v414, %v890
      %v892 = vpop.f32.mrb[0].mxu0
      %v893 = vadd.f32 %v410, %v892
      %v894 = vpop.f32.mrb[0].mxu0
      %v895 = vadd.f32 %v414, %v894
      %896 = vmatprep.mubr.bf16.mxu0 0
      %897 = vmatmul.mubr.bf16.gmra.mrb[0].mxu0 %v650
      %v898 = vpop.f32.mrb[0].mxu0
      %v899 = vadd.f32 %v410, %v898
      %v900 = vpop.f32.mrb[0].mxu0
      %v901 = vadd.f32 %v414, %v900
      %v902 = vpop.f32.mrb[0].mxu0
      %v903 = vadd.f32 %v410, %v902
      %v904 = vpop.f32.mrb[0].mxu0
      %v905 = vadd.f32 %v414, %v904
      %906 = vmatprep.mubr.bf16.mxu0 0
      %907 = vmatmul.mubr.bf16.gmra.mrb[0].mxu0 %v653
      %v908 = vpop.f32.mrb[0].mxu0
      %v909 = vadd.f32 %v410, %v908
      %v910 = vpop.f32.mrb[0].mxu0
      %v911 = vadd.f32 %v414, %v910
      %v912 = vpop.f32.mrb[0].mxu0
      %v913 = vadd.f32 %v410, %v912
      %v914 = vpop.f32.mrb[0].mxu0
      %v915 = vadd.f32 %v414, %v914
      %916 = vmatprep.mubr.bf16.mxu0 0
      %917 = vmatmul.mubr.bf16.gmra.mrb[0].mxu0 %v656
      %v918 = vpop.f32.mrb[0].mxu0
      %v919 = vadd.f32 %v410, %v918
      %v920 = vpop.f32.mrb[0].mxu0
      %v921 = vadd.f32 %v414, %v920
      %v922 = vpop.f32.mrb[0].mxu0
      %v923 = vadd.f32 %v410, %v922
      %v924 = vpop.f32.mrb[0].mxu0
      %v925 = vadd.f32 %v414, %v924
      %926 = vmatprep.mubr.bf16.mxu0 0
      %927 = vmatmul.mubr.bf16.gmra.mrb[0].mxu0 %v659
      %v928 = vpop.f32.mrb[0].mxu0
      %v929 = vadd.f32 %v410, %v928
      %v930 = vpop.f32.mrb[0].mxu0
      %v931 = vadd.f32 %v414, %v930
      %v932 = vpop.f32.mrb[0].mxu0
      %v933 = vadd.f32 %v410, %v932
      %v934 = vpop.f32.mrb[0].mxu0
      %v935 = vadd.f32 %v414, %v934
      %936 = vmatprep.mubr.bf16.mxu0 0
      %937 = vmatmul.mubr.bf16.gmra.mrb[0].mxu0 %v662
      %v938 = vpop.f32.mrb[0].mxu0
      %v939 = vadd.f32 %v410, %v938
      %v940 = vpop.f32.mrb[0].mxu0
      %v941 = vadd.f32 %v414, %v940
      %v942 = vpop.f32.mrb[0].mxu0
      %v943 = vadd.f32 %v410, %v942
      %v944 = vpop.f32.mrb[0].mxu0
      %v945 = vadd.f32 %v414, %v944
      %946 = vmatprep.mubr.bf16.mxu0 0
      %947 = vmatmul.mubr.bf16.gmra.mrb[0].mxu0 %v665
      %v948 = vpop.f32.mrb[0].mxu0
      %v949 = vadd.f32 %v410, %v948
      %v950 = vpop.f32.mrb[0].mxu0
      %v951 = vadd.f32 %v414, %v950
      %v952 = vpop.f32.mrb[0].mxu0
      %v953 = vadd.f32 %v410, %v952
      %v954 = vpop.f32.mrb[0].mxu0
      %v955 = vadd.f32 %v414, %v954
      %956 = vmatprep.mubr.bf16.mxu0 0
      %957 = vmatmul.mubr.bf16.gmra.mrb[0].mxu0 %v668
      %v958 = vpop.f32.mrb[0].mxu0
      %v959 = vadd.f32 %v410, %v958
      %v960 = vpop.f32.mrb[0].mxu0
      %v961 = vadd.f32 %v414, %v960
      %v962 = vpop.f32.mrb[0].mxu0
      %v963 = vadd.f32 %v410, %v962
      %v964 = vpop.f32.mrb[0].mxu0
      %v965 = vadd.f32 %v414, %v964
      %966 = vmatprep.mubr.bf16.mxu0 0
      %967 = vmatmul.mubr.bf16.gmra.mrb[0].mxu0 %v671
      %v968 = vpop.f32.mrb[0].mxu0
      %v969 = vadd.f32 %v410, %v968
      %v970 = vpop.f32.mrb[0].mxu0
      %v971 = vadd.f32 %v414, %v970
      %v972 = vpop.f32.mrb[0].mxu0
      %v973 = vadd.f32 %v410, %v972
      %v974 = vpop.f32.mrb[0].mxu0
      %v975 = vadd.f32 %v414, %v974
      %976 = vmatprep.mubr.bf16.mxu0 0
      %977 = vmatmul.mubr.bf16.gmra.mrb[0].mxu0 %v674
      %v978 = vpop.f32.mrb[0].mxu0
      %v979 = vadd.f32 %v410, %v978
      %v980 = vpop.f32.mrb[0].mxu0
      %v981 = vadd.f32 %v414, %v980
      %v982 = vpop.f32.mrb[0].mxu0
      %v983 = vadd.f32 %v410, %v982
      %v984 = vpop.f32.mrb[0].mxu0
      %v985 = vadd.f32 %v414, %v984
      %986 = vmatprep.mubr.bf16.mxu0 0
      %987 = vmatmul.mubr.bf16.gmra.mrb[0].mxu0 %v677
      %v988 = vpop.f32.mrb[0].mxu0
      %v989 = vadd.f32 %v410, %v988
      %v990 = vpop.f32.mrb[0].mxu0
      %v991 = vadd.f32 %v414, %v990
      %v992 = vpop.f32.mrb[0].mxu0
      %v993 = vadd.f32 %v410, %v992
      %v994 = vpop.f32.mrb[0].mxu0
      %v995 = vadd.f32 %v414, %v994
      %996 = vmatprep.mubr.bf16.mxu0 0
      %997 = vmatmul.mubr.bf16.gmra.mrb[0].mxu0 %v680
      %v998 = vpop.f32.mrb[0].mxu0
      %v999 = vadd.f32 %v410, %v998
      %v1000 = vpop.f32.mrb[0].mxu0
      %v1001 = vadd.f32 %v414, %v1000
      %v1002 = vpop.f32.mrb[0].mxu0
      %v1003 = vadd.f32 %v410, %v1002
      %v1004 = vpop.f32.mrb[0].mxu0
      %v1005 = vadd.f32 %v414, %v1004
      %1006 = vmatprep.mubr.bf16.mxu0 0
      %1007 = vmatmul.mubr.bf16.gmra.mrb[0].mxu0 %v683
      %v1008 = vpop.f32.mrb[0].mxu0
      %v1009 = vadd.f32 %v410, %v1008
      %v1010 = vpop.f32.mrb[0].mxu0
      %v1011 = vadd.f32 %v414, %v1010
      %v1012 = vpop.f32.mrb[0].mxu0
      %v1013 = vadd.f32 %v410, %v1012
      %v1014 = vpop.f32.mrb[0].mxu0
      %v1015 = vadd.f32 %v414, %v1014
      %1016 = vmatprep.mubr.bf16.mxu0 0
      %1017 = vmatmul.mubr.bf16.gmra.mrb[0].mxu0 %v686
      %v1018 = vpop.f32.mrb[0].mxu0
      %v1019 = vadd.f32 %v410, %v1018
      %v1020 = vpop.f32.mrb[0].mxu0
      %v1021 = vadd.f32 %v414, %v1020
      %v1022 = vpop.f32.mrb[0].mxu0
      %v1023 = vadd.f32 %v410, %v1022
      %v1024 = vpop.f32.mrb[0].mxu0
      %v1025 = vadd.f32 %v414, %v1024
      %1026 = vmatprep.mubr.bf16.mxu0 0
      %1027 = vmatmul.mubr.bf16.gmra.mrb[0].mxu0 %v689
      %v1028 = vpop.f32.mrb[0].mxu0
      %v1029 = vadd.f32 %v410, %v1028
      %v1030 = vpop.f32.mrb[0].mxu0
      %v1031 = vadd.f32 %v414, %v1030
      %v1032 = vpop.f32.mrb[0].mxu0
      %v1033 = vadd.f32 %v410, %v1032
      %v1034 = vpop.f32.mrb[0].mxu0
      %v1035 = vadd.f32 %v414, %v1034
      %1036 = vmatprep.mubr.bf16.mxu0 0
      %1037 = vmatmul.mubr.bf16.gmra.mrb[0].mxu0 %v692
      %v1038 = vpop.f32.mrb[0].mxu0
      %v1039 = vadd.f32 %v410, %v1038
      %v1040 = vpop.f32.mrb[0].mxu0
      %v1041 = vadd.f32 %v414, %v1040
      %v1042 = vpop.f32.mrb[0].mxu0
      %v1043 = vadd.f32 %v410, %v1042
      %v1044 = vpop.f32.mrb[0].mxu0
      %v1045 = vadd.f32 %v414, %v1044
      %1046 = vdwg.mxu0
      %v1047 = vmax.f32 %v729, 0.0
      %v1048 = vmax.f32 %v731, 0.0
      %v1049 = vmax.f32 %v733, 0.0
      %v1050 = vmax.f32 %v735, 0.0
      %v1051 = vmax.f32 %v739, 0.0
      %v1052 = vmax.f32 %v741, 0.0
      %v1053 = vmax.f32 %v743, 0.0
      %v1054 = vmax.f32 %v745, 0.0
      %v1055 = vmax.f32 %v749, 0.0
      %v1056 = vmax.f32 %v751, 0.0
      %v1057 = vmax.f32 %v753, 0.0
      %v1058 = vmax.f32 %v755, 0.0
      %v1059 = vmax.f32 %v759, 0.0
      %v1060 = vmax.f32 %v761, 0.0
      %v1061 = vmax.f32 %v763, 0.0
      %v1062 = vmax.f32 %v765, 0.0
      %v1063 = vmax.f32 %v769, 0.0
      %v1064 = vmax.f32 %v771, 0.0
      %v1065 = vmax.f32 %v773, 0.0
      %v1066 = vmax.f32 %v775, 0.0
      %v1067 = vmax.f32 %v779, 0.0
      %v1068 = vmax.f32 %v781, 0.0
      %v1069 = vmax.f32 %v783, 0.0
      %v1070 = vmax.f32 %v785, 0.0
      %v1071 = vmax.f32 %v789, 0.0
      %v1072 = vmax.f32 %v791, 0.0
      %v1073 = vmax.f32 %v793, 0.0
      %v1074 = vmax.f32 %v795, 0.0
      %v1075 = vmax.f32 %v799, 0.0
      %v1076 = vmax.f32 %v801, 0.0
      %v1077 = vmax.f32 %v803, 0.0
      %v1078 = vmax.f32 %v805, 0.0
      %v1079 = vmax.f32 %v809, 0.0
      %v1080 = vmax.f32 %v811, 0.0
      %v1081 = vmax.f32 %v813, 0.0
      %v1082 = vmax.f32 %v815, 0.0
      %v1083 = vmax.f32 %v819, 0.0
      %v1084 = vmax.f32 %v821, 0.0
      %v1085 = vmax.f32 %v823, 0.0
      %v1086 = vmax.f32 %v825, 0.0
      %v1087 = vmax.f32 %v829, 0.0
      %v1088 = vmax.f32 %v831, 0.0
      %v1089 = vmax.f32 %v833, 0.0
      %v1090 = vmax.f32 %v835, 0.0
      %v1091 = vmax.f32 %v839, 0.0
      %v1092 = vmax.f32 %v841, 0.0
      %v1093 = vmax.f32 %v843, 0.0
      %v1094 = vmax.f32 %v845, 0.0
      %v1095 = vmax.f32 %v849, 0.0
      %v1096 = vmax.f32 %v851, 0.0
      %v1097 = vmax.f32 %v853, 0.0
      %v1098 = vmax.f32 %v855, 0.0
      %v1099 = vmax.f32 %v859, 0.0
      %v1100 = vmax.f32 %v861, 0.0
      %v1101 = vmax.f32 %v863, 0.0
      %v1102 = vmax.f32 %v865, 0.0
      %v1103 = vmax.f32 %v869, 0.0
      %v1104 = vmax.f32 %v871, 0.0
      %v1105 = vmax.f32 %v873, 0.0
      %v1106 = vmax.f32 %v875, 0.0
      %v1107 = vmax.f32 %v879, 0.0
      %v1108 = vmax.f32 %v881, 0.0
      %v1109 = vmax.f32 %v883, 0.0
      %v1110 = vmax.f32 %v885, 0.0
      %v1111 = vmax.f32 %v889, 0.0
      %v1112 = vmax.f32 %v891, 0.0
      %v1113 = vmax.f32 %v893, 0.0
      %v1114 = vmax.f32 %v895, 0.0
      %v1115 = vmax.f32 %v899, 0.0
      %v1116 = vmax.f32 %v901, 0.0
      %v1117 = vmax.f32 %v903, 0.0
      %v1118 = vmax.f32 %v905, 0.0
      %v1119 = vmax.f32 %v909, 0.0
      %v1120 = vmax.f32 %v911, 0.0
      %v1121 = vmax.f32 %v913, 0.0
      %v1122 = vmax.f32 %v915, 0.0
      %v1123 = vmax.f32 %v919, 0.0
      %v1124 = vmax.f32 %v921, 0.0
      %v1125 = vmax.f32 %v923, 0.0
      %v1126 = vmax.f32 %v925, 0.0
      %v1127 = vmax.f32 %v929, 0.0
      %v1128 = vmax.f32 %v931, 0.0
      %v1129 = vmax.f32 %v933, 0.0
      %v1130 = vmax.f32 %v935, 0.0
      %v1131 = vmax.f32 %v939, 0.0
      %v1132 = vmax.f32 %v941, 0.0
      %v1133 = vmax.f32 %v943, 0.0
      %v1134 = vmax.f32 %v945, 0.0
      %v1135 = vmax.f32 %v949, 0.0
      %v1136 = vmax.f32 %v951, 0.0
      %v1137 = vmax.f32 %v953, 0.0
      %v1138 = vmax.f32 %v955, 0.0
      %v1139 = vmax.f32 %v959, 0.0
      %v1140 = vmax.f32 %v961, 0.0
      %v1141 = vmax.f32 %v963, 0.0
      %v1142 = vmax.f32 %v965, 0.0
      %v1143 = vmax.f32 %v969, 0.0
      %v1144 = vmax.f32 %v971, 0.0
      %v1145 = vmax.f32 %v973, 0.0
      %v1146 = vmax.f32 %v975, 0.0
      %v1147 = vmax.f32 %v979, 0.0
      %v1148 = vmax.f32 %v981, 0.0
      %v1149 = vmax.f32 %v983, 0.0
      %v1150 = vmax.f32 %v985, 0.0
      %v1151 = vmax.f32 %v989, 0.0
      %v1152 = vmax.f32 %v991, 0.0
      %v1153 = vmax.f32 %v993, 0.0
      %v1154 = vmax.f32 %v995, 0.0
      %v1155 = vmax.f32 %v999, 0.0
      %v1156 = vmax.f32 %v1001, 0.0
      %v1157 = vmax.f32 %v1003, 0.0
      %v1158 = vmax.f32 %v1005, 0.0
      %v1159 = vmax.f32 %v1009, 0.0
      %v1160 = vmax.f32 %v1011, 0.0
      %v1161 = vmax.f32 %v1013, 0.0
      %v1162 = vmax.f32 %v1015, 0.0
      %v1163 = vmax.f32 %v1019, 0.0
      %v1164 = vmax.f32 %v1021, 0.0
      %v1165 = vmax.f32 %v1023, 0.0
      %v1166 = vmax.f32 %v1025, 0.0
      %v1167 = vmax.f32 %v1029, 0.0
      %v1168 = vmax.f32 %v1031, 0.0
      %v1169 = vmax.f32 %v1033, 0.0
      %v1170 = vmax.f32 %v1035, 0.0
      %v1171 = vmax.f32 %v1039, 0.0
      %v1172 = vmax.f32 %v1041, 0.0
      %v1173 = vmax.f32 %v1043, 0.0
      %v1174 = vmax.f32 %v1045, 0.0
      %v1175 = vpack.c.bf16 %v1049, %v1047
      %v1176 = vpack.c.bf16 %v1050, %v1048
      %v1177 = vpack.c.bf16 %v1053, %v1051
      %v1178 = vpack.c.bf16 %v1054, %v1052
      %v1179 = vpack.c.bf16 %v1057, %v1055
      %v1180 = vpack.c.bf16 %v1058, %v1056
      %v1181 = vpack.c.bf16 %v1061, %v1059
      %v1182 = vpack.c.bf16 %v1062, %v1060
      %v1183 = vpack.c.bf16 %v1065, %v1063
      %v1184 = vpack.c.bf16 %v1066, %v1064
      %v1185 = vpack.c.bf16 %v1069, %v1067
      %v1186 = vpack.c.bf16 %v1070, %v1068
      %v1187 = vpack.c.bf16 %v1073, %v1071
      %v1188 = vpack.c.bf16 %v1074, %v1072
      %v1189 = vpack.c.bf16 %v1077, %v1075
      %v1190 = vpack.c.bf16 %v1078, %v1076
      %v1191 = vpack.c.bf16 %v1081, %v1079
      %v1192 = vpack.c.bf16 %v1082, %v1080
      %v1193 = vpack.c.bf16 %v1085, %v1083
      %v1194 = vpack.c.bf16 %v1086, %v1084
      %v1195 = vpack.c.bf16 %v1089, %v1087
      %v1196 = vpack.c.bf16 %v1090, %v1088
      %v1197 = vpack.c.bf16 %v1093, %v1091
      %v1198 = vpack.c.bf16 %v1094, %v1092
      %v1199 = vpack.c.bf16 %v1097, %v1095
      %v1200 = vpack.c.bf16 %v1098, %v1096
      %v1201 = vpack.c.bf16 %v1101, %v1099
      %v1202 = vpack.c.bf16 %v1102, %v1100
      %v1203 = vpack.c.bf16 %v1105, %v1103
      %v1204 = vpack.c.bf16 %v1106, %v1104
      %v1205 = vpack.c.bf16 %v1109, %v1107
      %v1206 = vpack.c.bf16 %v1110, %v1108
      %v1207 = vpack.c.bf16 %v1113, %v1111
      %v1208 = vpack.c.bf16 %v1114, %v1112
      %v1209 = vpack.c.bf16 %v1117, %v1115
      %v1210 = vpack.c.bf16 %v1118, %v1116
      %v1211 = vpack.c.bf16 %v1121, %v1119
      %v1212 = vpack.c.bf16 %v1122, %v1120
      %v1213 = vpack.c.bf16 %v1125, %v1123
      %v1214 = vpack.c.bf16 %v1126, %v1124
      %v1215 = vpack.c.bf16 %v1129, %v1127
      %v1216 = vpack.c.bf16 %v1130, %v1128
      %v1217 = vpack.c.bf16 %v1133, %v1131
      %v1218 = vpack.c.bf16 %v1134, %v1132
      %v1219 = vpack.c.bf16 %v1137, %v1135
      %v1220 = vpack.c.bf16 %v1138, %v1136
      %v1221 = vpack.c.bf16 %v1141, %v1139
      %v1222 = vpack.c.bf16 %v1142, %v1140
      %v1223 = vpack.c.bf16 %v1145, %v1143
      %v1224 = vpack.c.bf16 %v1146, %v1144
      %v1225 = vpack.c.bf16 %v1149, %v1147
      %v1226 = vpack.c.bf16 %v1150, %v1148
      %v1227 = vpack.c.bf16 %v1153, %v1151
      %v1228 = vpack.c.bf16 %v1154, %v1152
      %v1229 = vpack.c.bf16 %v1157, %v1155
      %v1230 = vpack.c.bf16 %v1158, %v1156
      %v1231 = vpack.c.bf16 %v1161, %v1159
      %v1232 = vpack.c.bf16 %v1162, %v1160
      %v1233 = vpack.c.bf16 %v1165, %v1163
      %v1234 = vpack.c.bf16 %v1166, %v1164
      %v1235 = vpack.c.bf16 %v1169, %v1167
      %v1236 = vpack.c.bf16 %v1170, %v1168
      %v1237 = vpack.c.bf16 %v1173, %v1171
      %v1238 = vpack.c.bf16 %v1174, %v1172
      %v1239 = vld [vmem:[%s3] sm:$0xf]
      %v1240 = vld [vmem:[%s3 + $0x4] sm:$0xf]
      %v1241 = vld [vmem:[%s3 + $0x8] sm:$0xf]
      %v1242 = vld [vmem:[%s3 + $0xc] sm:$0xf]
      %v1243 = vld [vmem:[%s3 + $0x10] sm:$0xf]
      %v1244 = vld [vmem:[%s3 + $0x14] sm:$0xf]
      %v1245 = vld [vmem:[%s3 + $0x18] sm:$0xf]
      %v1246 = vld [vmem:[%s3 + $0x1c] sm:$0xf]
      %v1247 = vld [vmem:[%s3 + $0x20] sm:$0xf]
      %v1248 = vld [vmem:[%s3 + $0x24] sm:$0xf]
      %v1249 = vld [vmem:[%s3 + $0x28] sm:$0xf]
      %v1250 = vld [vmem:[%s3 + $0x2c] sm:$0xf]
      %v1251 = vld [vmem:[%s3 + $0x30] sm:$0xf]
      %v1252 = vld [vmem:[%s3 + $0x34] sm:$0xf]
      %v1253 = vld [vmem:[%s3 + $0x38] sm:$0xf]
      %v1254 = vld [vmem:[%s3 + $0x3c] sm:$0xf]
      %v1255 = vld [vmem:[%s3 + $0x40] sm:$0xf]
      %v1256 = vld [vmem:[%s3 + $0x44] sm:$0xf]
      %v1257 = vld [vmem:[%s3 + $0x48] sm:$0xf]
      %v1258 = vld [vmem:[%s3 + $0x4c] sm:$0xf]
      %v1259 = vld [vmem:[%s3 + $0x50] sm:$0xf]
      %v1260 = vld [vmem:[%s3 + $0x54] sm:$0xf]
      %v1261 = vld [vmem:[%s3 + $0x58] sm:$0xf]
      %v1262 = vld [vmem:[%s3 + $0x5c] sm:$0xf]
      %v1263 = vld [vmem:[%s3 + $0x60] sm:$0xf]
      %v1264 = vld [vmem:[%s3 + $0x64] sm:$0xf]
      %v1265 = vld [vmem:[%s3 + $0x68] sm:$0xf]
      %v1266 = vld [vmem:[%s3 + $0x6c] sm:$0xf]
      %v1267 = vld [vmem:[%s3 + $0x70] sm:$0xf]
      %v1268 = vld [vmem:[%s3 + $0x74] sm:$0xf]
      %v1269 = vld [vmem:[%s3 + $0x78] sm:$0xf]
      %v1270 = vld [vmem:[%s3 + $0x7c] sm:$0xf]
      %v1271 = vld [vmem:[%s4] sm:$0x1]
      %v1273 = vlaneseq
      %v1274 = vshrl.u32 %v1273, 7
      %v1275 = vsub.s32 0, %v1274
      %v1276 = vrot.slane %v1271, %v1275
      %v1310 = vunpack.c.l.b16 %v1239
      %v1311 = vunpack.c.l.b16 %v1240
      %v1312 = vunpack.c.l.b16 %v1241
      %v1313 = vunpack.c.l.b16 %v1242
      %v1314 = vunpack.c.l.b16 %v1243
      %v1315 = vunpack.c.l.b16 %v1244
      %v1316 = vunpack.c.l.b16 %v1245
      %v1317 = vunpack.c.l.b16 %v1246
      %v1318 = vunpack.c.l.b16 %v1247
      %v1319 = vunpack.c.l.b16 %v1248
      %v1320 = vunpack.c.l.b16 %v1249
      %v1321 = vunpack.c.l.b16 %v1250
      %v1322 = vunpack.c.l.b16 %v1251
      %v1323 = vunpack.c.l.b16 %v1252
      %v1324 = vunpack.c.l.b16 %v1253
      %v1325 = vunpack.c.l.b16 %v1254
      %v1326 = vunpack.c.l.b16 %v1255
      %v1327 = vunpack.c.l.b16 %v1256
      %v1328 = vunpack.c.l.b16 %v1257
      %v1329 = vunpack.c.l.b16 %v1258
      %v1330 = vunpack.c.l.b16 %v1259
      %v1331 = vunpack.c.l.b16 %v1260
      %v1332 = vunpack.c.l.b16 %v1261
      %v1333 = vunpack.c.l.b16 %v1262
      %v1334 = vunpack.c.l.b16 %v1263
      %v1335 = vunpack.c.l.b16 %v1264
      %v1336 = vunpack.c.l.b16 %v1265
      %v1337 = vunpack.c.l.b16 %v1266
      %v1338 = vunpack.c.l.b16 %v1267
      %v1339 = vunpack.c.l.b16 %v1268
      %v1340 = vunpack.c.l.b16 %v1269
      %v1341 = vunpack.c.l.b16 %v1270
      %v1342 = vpack.c.b16 %v1311, %v1310
      %v1343 = vpack.c.b16 %v1313, %v1312
      %v1344 = vpack.c.b16 %v1315, %v1314
      %v1345 = vpack.c.b16 %v1317, %v1316
      %v1346 = vpack.c.b16 %v1319, %v1318
      %v1347 = vpack.c.b16 %v1321, %v1320
      %v1348 = vpack.c.b16 %v1323, %v1322
      %v1349 = vpack.c.b16 %v1325, %v1324
      %v1350 = vpack.c.b16 %v1327, %v1326
      %v1351 = vpack.c.b16 %v1329, %v1328
      %v1352 = vpack.c.b16 %v1331, %v1330
      %v1353 = vpack.c.b16 %v1333, %v1332
      %v1354 = vpack.c.b16 %v1335, %v1334
      %v1355 = vpack.c.b16 %v1337, %v1336
      %v1356 = vpack.c.b16 %v1339, %v1338
      %v1357 = vpack.c.b16 %v1341, %v1340
      %1374 = vmatprep.subr.bf16.mxu0 0
      %1375 = vmatpush1.bf16.msra.mxu0 %v1342
      %1376 = vmatprep.subr.bf16.mxu0 0
      %1377 = vmatpush1.bf16.msra.mxu0 %v1343
      %1378 = vmatprep.subr.bf16.mxu0 0
      %1379 = vmatpush1.bf16.msra.mxu0 %v1344
      %1380 = vmatprep.subr.bf16.mxu0 0
      %1381 = vmatpush1.bf16.msra.mxu0 %v1345
      %1382 = vmatprep.subr.bf16.mxu0 0
      %1383 = vmatpush1.bf16.msra.mxu0 %v1346
      %1384 = vmatprep.subr.bf16.mxu0 0
      %1385 = vmatpush1.bf16.msra.mxu0 %v1347
      %1386 = vmatprep.subr.bf16.mxu0 0
      %1387 = vmatpush1.bf16.msra.mxu0 %v1348
      %1388 = vmatprep.subr.bf16.mxu0 0
      %1389 = vmatpush1.bf16.msra.mxu0 %v1349
      %1390 = vmatprep.subr.bf16.mxu0 0
      %1391 = vmatpush1.bf16.msra.mxu0 %v1350
      %1392 = vmatprep.subr.bf16.mxu0 0
      %1393 = vmatpush1.bf16.msra.mxu0 %v1351
      %1394 = vmatprep.subr.bf16.mxu0 0
      %1395 = vmatpush1.bf16.msra.mxu0 %v1352
      %1396 = vmatprep.subr.bf16.mxu0 0
      %1397 = vmatpush1.bf16.msra.mxu0 %v1353
      %1398 = vmatprep.subr.bf16.mxu0 0
      %1399 = vmatpush1.bf16.msra.mxu0 %v1354
      %1400 = vmatprep.subr.bf16.mxu0 0
      %1401 = vmatpush1.bf16.msra.mxu0 %v1355
      %1402 = vmatprep.subr.bf16.mxu0 0
      %1403 = vmatpush1.bf16.msra.mxu0 %v1356
      %1404 = vmatprep.subr.bf16.mxu0 0
      %1405 = vmatpush1.bf16.msra.mxu0 %v1357
      %1406 = vmatprep.mubr.bf16.mxu0 %v1176
      %1407 = vmatmul.mubr.bf16.gmra.mrb[0].mxu0 %v1175
      %v1408 = vpop.f32.mrb[0].mxu0
      %v1409 = vadd.f32 %v1276, %v1408
      %v1410 = vpop.f32.mrb[0].mxu0
      %v1411 = vpop.f32.mrb[0].mxu0
      %v1412 = vadd.f32 %v1276, %v1411
      %v1413 = vpop.f32.mrb[0].mxu0
      %1414 = vmatprep.mubr.bf16.mxu0 %v1178
      %1415 = vmatmul.mubr.bf16.gmra.mrb[0].mxu0 %v1177
      %v1416 = vpop.f32.mrb[0].mxu0
      %v1417 = vadd.f32 %v1276, %v1416
      %v1418 = vpop.f32.mrb[0].mxu0
      %v1419 = vpop.f32.mrb[0].mxu0
      %v1420 = vadd.f32 %v1276, %v1419
      %v1421 = vpop.f32.mrb[0].mxu0
      %1422 = vmatprep.mubr.bf16.mxu0 %v1180
      %1423 = vmatmul.mubr.bf16.gmra.mrb[0].mxu0 %v1179
      %v1424 = vpop.f32.mrb[0].mxu0
      %v1425 = vadd.f32 %v1276, %v1424
      %v1426 = vpop.f32.mrb[0].mxu0
      %v1427 = vpop.f32.mrb[0].mxu0
      %v1428 = vadd.f32 %v1276, %v1427
      %v1429 = vpop.f32.mrb[0].mxu0
      %1430 = vmatprep.mubr.bf16.mxu0 %v1182
      %1431 = vmatmul.mubr.bf16.gmra.mrb[0].mxu0 %v1181
      %v1432 = vpop.f32.mrb[0].mxu0
      %v1433 = vadd.f32 %v1276, %v1432
      %v1434 = vpop.f32.mrb[0].mxu0
      %v1435 = vpop.f32.mrb[0].mxu0
      %v1436 = vadd.f32 %v1276, %v1435
      %v1437 = vpop.f32.mrb[0].mxu0
      %1438 = vmatprep.mubr.bf16.mxu0 %v1184
      %1439 = vmatmul.mubr.bf16.gmra.mrb[0].mxu0 %v1183
      %v1440 = vpop.f32.mrb[0].mxu0
      %v1441 = vadd.f32 %v1276, %v1440
      %v1442 = vpop.f32.mrb[0].mxu0
      %v1443 = vpop.f32.mrb[0].mxu0
      %v1444 = vadd.f32 %v1276, %v1443
      %v1445 = vpop.f32.mrb[0].mxu0
      %1446 = vmatprep.mubr.bf16.mxu0 %v1186
      %1447 = vmatmul.mubr.bf16.gmra.mrb[0].mxu0 %v1185
      %v1448 = vpop.f32.mrb[0].mxu0
      %v1449 = vadd.f32 %v1276, %v1448
      %v1450 = vpop.f32.mrb[0].mxu0
      %v1451 = vpop.f32.mrb[0].mxu0
      %v1452 = vadd.f32 %v1276, %v1451
      %v1453 = vpop.f32.mrb[0].mxu0
      %1454 = vmatprep.mubr.bf16.mxu0 %v1188
      %1455 = vmatmul.mubr.bf16.gmra.mrb[0].mxu0 %v1187
      %v1456 = vpop.f32.mrb[0].mxu0
      %v1457 = vadd.f32 %v1276, %v1456
      %v1458 = vpop.f32.mrb[0].mxu0
      %v1459 = vpop.f32.mrb[0].mxu0
      %v1460 = vadd.f32 %v1276, %v1459
      %v1461 = vpop.f32.mrb[0].mxu0
      %1462 = vmatprep.mubr.bf16.mxu0 %v1190
      %1463 = vmatmul.mubr.bf16.gmra.mrb[0].mxu0 %v1189
      %v1464 = vpop.f32.mrb[0].mxu0
      %v1465 = vadd.f32 %v1276, %v1464
      %v1466 = vpop.f32.mrb[0].mxu0
      %v1467 = vpop.f32.mrb[0].mxu0
      %v1468 = vadd.f32 %v1276, %v1467
      %v1469 = vpop.f32.mrb[0].mxu0
      %1470 = vmatprep.mubr.bf16.mxu0 %v1192
      %1471 = vmatmul.mubr.bf16.gmra.mrb[0].mxu0 %v1191
      %v1472 = vpop.f32.mrb[0].mxu0
      %v1473 = vadd.f32 %v1276, %v1472
      %v1474 = vpop.f32.mrb[0].mxu0
      %v1475 = vpop.f32.mrb[0].mxu0
      %v1476 = vadd.f32 %v1276, %v1475
      %v1477 = vpop.f32.mrb[0].mxu0
      %1478 = vmatprep.mubr.bf16.mxu0 %v1194
      %1479 = vmatmul.mubr.bf16.gmra.mrb[0].mxu0 %v1193
      %v1480 = vpop.f32.mrb[0].mxu0
      %v1481 = vadd.f32 %v1276, %v1480
      %v1482 = vpop.f32.mrb[0].mxu0
      %v1483 = vpop.f32.mrb[0].mxu0
      %v1484 = vadd.f32 %v1276, %v1483
      %v1485 = vpop.f32.mrb[0].mxu0
      %1486 = vmatprep.mubr.bf16.mxu0 %v1196
      %1487 = vmatmul.mubr.bf16.gmra.mrb[0].mxu0 %v1195
      %v1488 = vpop.f32.mrb[0].mxu0
      %v1489 = vadd.f32 %v1276, %v1488
      %v1490 = vpop.f32.mrb[0].mxu0
      %v1491 = vpop.f32.mrb[0].mxu0
      %v1492 = vadd.f32 %v1276, %v1491
      %v1493 = vpop.f32.mrb[0].mxu0
      %1494 = vmatprep.mubr.bf16.mxu0 %v1198
      %1495 = vmatmul.mubr.bf16.gmra.mrb[0].mxu0 %v1197
      %v1496 = vpop.f32.mrb[0].mxu0
      %v1497 = vadd.f32 %v1276, %v1496
      %v1498 = vpop.f32.mrb[0].mxu0
      %v1499 = vpop.f32.mrb[0].mxu0
      %v1500 = vadd.f32 %v1276, %v1499
      %v1501 = vpop.f32.mrb[0].mxu0
      %1502 = vmatprep.mubr.bf16.mxu0 %v1200
      %1503 = vmatmul.mubr.bf16.gmra.mrb[0].mxu0 %v1199
      %v1504 = vpop.f32.mrb[0].mxu0
      %v1505 = vadd.f32 %v1276, %v1504
      %v1506 = vpop.f32.mrb[0].mxu0
      %v1507 = vpop.f32.mrb[0].mxu0
      %v1508 = vadd.f32 %v1276, %v1507
      %v1509 = vpop.f32.mrb[0].mxu0
      %1510 = vmatprep.mubr.bf16.mxu0 %v1202
      %1511 = vmatmul.mubr.bf16.gmra.mrb[0].mxu0 %v1201
      %v1512 = vpop.f32.mrb[0].mxu0
      %v1513 = vadd.f32 %v1276, %v1512
      %v1514 = vpop.f32.mrb[0].mxu0
      %v1515 = vpop.f32.mrb[0].mxu0
      %v1516 = vadd.f32 %v1276, %v1515
      %v1517 = vpop.f32.mrb[0].mxu0
      %1518 = vmatprep.mubr.bf16.mxu0 %v1204
      %1519 = vmatmul.mubr.bf16.gmra.mrb[0].mxu0 %v1203
      %v1520 = vpop.f32.mrb[0].mxu0
      %v1521 = vadd.f32 %v1276, %v1520
      %v1522 = vpop.f32.mrb[0].mxu0
      %v1523 = vpop.f32.mrb[0].mxu0
      %v1524 = vadd.f32 %v1276, %v1523
      %v1525 = vpop.f32.mrb[0].mxu0
      %1526 = vmatprep.mubr.bf16.mxu0 %v1206
      %1527 = vmatmul.mubr.bf16.gmra.mrb[0].mxu0 %v1205
      %v1528 = vpop.f32.mrb[0].mxu0
      %v1529 = vadd.f32 %v1276, %v1528
      %v1530 = vpop.f32.mrb[0].mxu0
      %v1531 = vpop.f32.mrb[0].mxu0
      %v1532 = vadd.f32 %v1276, %v1531
      %v1533 = vpop.f32.mrb[0].mxu0
      %1534 = vmatprep.mubr.bf16.mxu0 %v1208
      %1535 = vmatmul.mubr.bf16.gmra.mrb[0].mxu0 %v1207
      %v1536 = vpop.f32.mrb[0].mxu0
      %v1537 = vadd.f32 %v1276, %v1536
      %v1538 = vpop.f32.mrb[0].mxu0
      %v1539 = vpop.f32.mrb[0].mxu0
      %v1540 = vadd.f32 %v1276, %v1539
      %v1541 = vpop.f32.mrb[0].mxu0
      %1542 = vmatprep.mubr.bf16.mxu0 %v1210
      %1543 = vmatmul.mubr.bf16.gmra.mrb[0].mxu0 %v1209
      %v1544 = vpop.f32.mrb[0].mxu0
      %v1545 = vadd.f32 %v1276, %v1544
      %v1546 = vpop.f32.mrb[0].mxu0
      %v1547 = vpop.f32.mrb[0].mxu0
      %v1548 = vadd.f32 %v1276, %v1547
      %v1549 = vpop.f32.mrb[0].mxu0
      %1550 = vmatprep.mubr.bf16.mxu0 %v1212
      %1551 = vmatmul.mubr.bf16.gmra.mrb[0].mxu0 %v1211
      %v1552 = vpop.f32.mrb[0].mxu0
      %v1553 = vadd.f32 %v1276, %v1552
      %v1554 = vpop.f32.mrb[0].mxu0
      %v1555 = vpop.f32.mrb[0].mxu0
      %v1556 = vadd.f32 %v1276, %v1555
      %v1557 = vpop.f32.mrb[0].mxu0
      %1558 = vmatprep.mubr.bf16.mxu0 %v1214
      %1559 = vmatmul.mubr.bf16.gmra.mrb[0].mxu0 %v1213
      %v1560 = vpop.f32.mrb[0].mxu0
      %v1561 = vadd.f32 %v1276, %v1560
      %v1562 = vpop.f32.mrb[0].mxu0
      %v1563 = vpop.f32.mrb[0].mxu0
      %v1564 = vadd.f32 %v1276, %v1563
      %v1565 = vpop.f32.mrb[0].mxu0
      %1566 = vmatprep.mubr.bf16.mxu0 %v1216
      %1567 = vmatmul.mubr.bf16.gmra.mrb[0].mxu0 %v1215
      %v1568 = vpop.f32.mrb[0].mxu0
      %v1569 = vadd.f32 %v1276, %v1568
      %v1570 = vpop.f32.mrb[0].mxu0
      %v1571 = vpop.f32.mrb[0].mxu0
      %v1572 = vadd.f32 %v1276, %v1571
      %v1573 = vpop.f32.mrb[0].mxu0
      %1574 = vmatprep.mubr.bf16.mxu0 %v1218
      %1575 = vmatmul.mubr.bf16.gmra.mrb[0].mxu0 %v1217
      %v1576 = vpop.f32.mrb[0].mxu0
      %v1577 = vadd.f32 %v1276, %v1576
      %v1578 = vpop.f32.mrb[0].mxu0
      %v1579 = vpop.f32.mrb[0].mxu0
      %v1580 = vadd.f32 %v1276, %v1579
      %v1581 = vpop.f32.mrb[0].mxu0
      %1582 = vmatprep.mubr.bf16.mxu0 %v1220
      %1583 = vmatmul.mubr.bf16.gmra.mrb[0].mxu0 %v1219
      %v1584 = vpop.f32.mrb[0].mxu0
      %v1585 = vadd.f32 %v1276, %v1584
      %v1586 = vpop.f32.mrb[0].mxu0
      %v1587 = vpop.f32.mrb[0].mxu0
      %v1588 = vadd.f32 %v1276, %v1587
      %v1589 = vpop.f32.mrb[0].mxu0
      %1590 = vmatprep.mubr.bf16.mxu0 %v1222
      %1591 = vmatmul.mubr.bf16.gmra.mrb[0].mxu0 %v1221
      %v1592 = vpop.f32.mrb[0].mxu0
      %v1593 = vadd.f32 %v1276, %v1592
      %v1594 = vpop.f32.mrb[0].mxu0
      %v1595 = vpop.f32.mrb[0].mxu0
      %v1596 = vadd.f32 %v1276, %v1595
      %v1597 = vpop.f32.mrb[0].mxu0
      %1598 = vmatprep.mubr.bf16.mxu0 %v1224
      %1599 = vmatmul.mubr.bf16.gmra.mrb[0].mxu0 %v1223
      %v1600 = vpop.f32.mrb[0].mxu0
      %v1601 = vadd.f32 %v1276, %v1600
      %v1602 = vpop.f32.mrb[0].mxu0
      %v1603 = vpop.f32.mrb[0].mxu0
      %v1604 = vadd.f32 %v1276, %v1603
      %v1605 = vpop.f32.mrb[0].mxu0
      %1606 = vmatprep.mubr.bf16.mxu0 %v1226
      %1607 = vmatmul.mubr.bf16.gmra.mrb[0].mxu0 %v1225
      %v1608 = vpop.f32.mrb[0].mxu0
      %v1609 = vadd.f32 %v1276, %v1608
      %v1610 = vpop.f32.mrb[0].mxu0
      %v1611 = vpop.f32.mrb[0].mxu0
      %v1612 = vadd.f32 %v1276, %v1611
      %v1613 = vpop.f32.mrb[0].mxu0
      %1614 = vmatprep.mubr.bf16.mxu0 %v1228
      %1615 = vmatmul.mubr.bf16.gmra.mrb[0].mxu0 %v1227
      %v1616 = vpop.f32.mrb[0].mxu0
      %v1617 = vadd.f32 %v1276, %v1616
      %v1618 = vpop.f32.mrb[0].mxu0
      %v1619 = vpop.f32.mrb[0].mxu0
      %v1620 = vadd.f32 %v1276, %v1619
      %v1621 = vpop.f32.mrb[0].mxu0
      %1622 = vmatprep.mubr.bf16.mxu0 %v1230
      %1623 = vmatmul.mubr.bf16.gmra.mrb[0].mxu0 %v1229
      %v1624 = vpop.f32.mrb[0].mxu0
      %v1625 = vadd.f32 %v1276, %v1624
      %v1626 = vpop.f32.mrb[0].mxu0
      %v1627 = vpop.f32.mrb[0].mxu0
      %v1628 = vadd.f32 %v1276, %v1627
      %v1629 = vpop.f32.mrb[0].mxu0
      %1630 = vmatprep.mubr.bf16.mxu0 %v1232
      %1631 = vmatmul.mubr.bf16.gmra.mrb[0].mxu0 %v1231
      %v1632 = vpop.f32.mrb[0].mxu0
      %v1633 = vadd.f32 %v1276, %v1632
      %v1634 = vpop.f32.mrb[0].mxu0
      %v1635 = vpop.f32.mrb[0].mxu0
      %v1636 = vadd.f32 %v1276, %v1635
      %v1637 = vpop.f32.mrb[0].mxu0
      %1638 = vmatprep.mubr.bf16.mxu0 %v1234
      %1639 = vmatmul.mubr.bf16.gmra.mrb[0].mxu0 %v1233
      %v1640 = vpop.f32.mrb[0].mxu0
      %v1641 = vadd.f32 %v1276, %v1640
      %v1642 = vpop.f32.mrb[0].mxu0
      %v1643 = vpop.f32.mrb[0].mxu0
      %v1644 = vadd.f32 %v1276, %v1643
      %v1645 = vpop.f32.mrb[0].mxu0
      %1646 = vmatprep.mubr.bf16.mxu0 %v1236
      %1647 = vmatmul.mubr.bf16.gmra.mrb[0].mxu0 %v1235
      %v1648 = vpop.f32.mrb[0].mxu0
      %v1649 = vadd.f32 %v1276, %v1648
      %v1650 = vpop.f32.mrb[0].mxu0
      %v1651 = vpop.f32.mrb[0].mxu0
      %v1652 = vadd.f32 %v1276, %v1651
      %v1653 = vpop.f32.mrb[0].mxu0
      %1654 = vmatprep.mubr.bf16.mxu0 %v1238
      %1655 = vmatmul.mubr.bf16.gmra.mrb[0].mxu0 %v1237
      %v1656 = vpop.f32.mrb[0].mxu0
      %v1657 = vadd.f32 %v1276, %v1656
      %v1658 = vpop.f32.mrb[0].mxu0
      %v1659 = vpop.f32.mrb[0].mxu0
      %v1660 = vadd.f32 %v1276, %v1659
      %v1661 = vpop.f32.mrb[0].mxu0
      %1662 = vdwg.mxu0
      %v1663 = vmax.f32 %v1409, 0.0
      %v1664 = vmax.f32 %v1412, 0.0
      %v1665 = vmax.f32 %v1417, 0.0
      %v1666 = vmax.f32 %v1420, 0.0
      %v1667 = vmax.f32 %v1425, 0.0
      %v1668 = vmax.f32 %v1428, 0.0
      %v1669 = vmax.f32 %v1433, 0.0
      %v1670 = vmax.f32 %v1436, 0.0
      %v1671 = vmax.f32 %v1441, 0.0
      %v1672 = vmax.f32 %v1444, 0.0
      %v1673 = vmax.f32 %v1449, 0.0
      %v1674 = vmax.f32 %v1452, 0.0
      %v1675 = vmax.f32 %v1457, 0.0
      %v1676 = vmax.f32 %v1460, 0.0
      %v1677 = vmax.f32 %v1465, 0.0
      %v1678 = vmax.f32 %v1468, 0.0
      %v1679 = vmax.f32 %v1473, 0.0
      %v1680 = vmax.f32 %v1476, 0.0
      %v1681 = vmax.f32 %v1481, 0.0
      %v1682 = vmax.f32 %v1484, 0.0
      %v1683 = vmax.f32 %v1489, 0.0
      %v1684 = vmax.f32 %v1492, 0.0
      %v1685 = vmax.f32 %v1497, 0.0
      %v1686 = vmax.f32 %v1500, 0.0
      %v1687 = vmax.f32 %v1505, 0.0
      %v1688 = vmax.f32 %v1508, 0.0
      %v1689 = vmax.f32 %v1513, 0.0
      %v1690 = vmax.f32 %v1516, 0.0
      %v1691 = vmax.f32 %v1521, 0.0
      %v1692 = vmax.f32 %v1524, 0.0
      %v1693 = vmax.f32 %v1529, 0.0
      %v1694 = vmax.f32 %v1532, 0.0
      %v1695 = vmax.f32 %v1537, 0.0
      %v1696 = vmax.f32 %v1540, 0.0
      %v1697 = vmax.f32 %v1545, 0.0
      %v1698 = vmax.f32 %v1548, 0.0
      %v1699 = vmax.f32 %v1553, 0.0
      %v1700 = vmax.f32 %v1556, 0.0
      %v1701 = vmax.f32 %v1561, 0.0
      %v1702 = vmax.f32 %v1564, 0.0
      %v1703 = vmax.f32 %v1569, 0.0
      %v1704 = vmax.f32 %v1572, 0.0
      %v1705 = vmax.f32 %v1577, 0.0
      %v1706 = vmax.f32 %v1580, 0.0
      %v1707 = vmax.f32 %v1585, 0.0
      %v1708 = vmax.f32 %v1588, 0.0
      %v1709 = vmax.f32 %v1593, 0.0
      %v1710 = vmax.f32 %v1596, 0.0
      %v1711 = vmax.f32 %v1601, 0.0
      %v1712 = vmax.f32 %v1604, 0.0
      %v1713 = vmax.f32 %v1609, 0.0
      %v1714 = vmax.f32 %v1612, 0.0
      %v1715 = vmax.f32 %v1617, 0.0
      %v1716 = vmax.f32 %v1620, 0.0
      %v1717 = vmax.f32 %v1625, 0.0
      %v1718 = vmax.f32 %v1628, 0.0
      %v1719 = vmax.f32 %v1633, 0.0
      %v1720 = vmax.f32 %v1636, 0.0
      %v1721 = vmax.f32 %v1641, 0.0
      %v1722 = vmax.f32 %v1644, 0.0
      %v1723 = vmax.f32 %v1649, 0.0
      %v1724 = vmax.f32 %v1652, 0.0
      %v1725 = vmax.f32 %v1657, 0.0
      %v1726 = vmax.f32 %v1660, 0.0
      %v1727 = vpack.c.bf16 %v1664, %v1663
      %v1728 = vpack.c.bf16 %v1666, %v1665
      %v1729 = vpack.c.bf16 %v1668, %v1667
      %v1730 = vpack.c.bf16 %v1670, %v1669
      %v1731 = vpack.c.bf16 %v1672, %v1671
      %v1732 = vpack.c.bf16 %v1674, %v1673
      %v1733 = vpack.c.bf16 %v1676, %v1675
      %v1734 = vpack.c.bf16 %v1678, %v1677
      %v1735 = vpack.c.bf16 %v1680, %v1679
      %v1736 = vpack.c.bf16 %v1682, %v1681
      %v1737 = vpack.c.bf16 %v1684, %v1683
      %v1738 = vpack.c.bf16 %v1686, %v1685
      %v1739 = vpack.c.bf16 %v1688, %v1687
      %v1740 = vpack.c.bf16 %v1690, %v1689
      %v1741 = vpack.c.bf16 %v1692, %v1691
      %v1742 = vpack.c.bf16 %v1694, %v1693
      %v1743 = vpack.c.bf16 %v1696, %v1695
      %v1744 = vpack.c.bf16 %v1698, %v1697
      %v1745 = vpack.c.bf16 %v1700, %v1699
      %v1746 = vpack.c.bf16 %v1702, %v1701
      %v1747 = vpack.c.bf16 %v1704, %v1703
      %v1748 = vpack.c.bf16 %v1706, %v1705
      %v1749 = vpack.c.bf16 %v1708, %v1707
      %v1750 = vpack.c.bf16 %v1710, %v1709
      %v1751 = vpack.c.bf16 %v1712, %v1711
      %v1752 = vpack.c.bf16 %v1714, %v1713
      %v1753 = vpack.c.bf16 %v1716, %v1715
      %v1754 = vpack.c.bf16 %v1718, %v1717
      %v1755 = vpack.c.bf16 %v1720, %v1719
      %v1756 = vpack.c.bf16 %v1722, %v1721
      %v1757 = vpack.c.bf16 %v1724, %v1723
      %v1758 = vpack.c.bf16 %v1726, %v1725
      %v1759 = vld [vmem:[%s5] sm:$0xf]
      %v1760 = vld [vmem:[%s5 + $0x4] sm:$0xf]
      %v1761 = vld [vmem:[%s5 + $0x8] sm:$0xf]
      %v1762 = vld [vmem:[%s5 + $0xc] sm:$0xf]
      %v1763 = vld [vmem:[%s5 + $0x10] sm:$0xf]
      %v1764 = vld [vmem:[%s5 + $0x14] sm:$0xf]
      %v1765 = vld [vmem:[%s5 + $0x18] sm:$0xf]
      %v1766 = vld [vmem:[%s5 + $0x1c] sm:$0xf]
      %v1767 = vld [vmem:[%s5 + $0x20] sm:$0xf]
      %v1768 = vld [vmem:[%s5 + $0x24] sm:$0xf]
      %v1769 = vld [vmem:[%s5 + $0x28] sm:$0xf]
      %v1770 = vld [vmem:[%s5 + $0x2c] sm:$0xf]
      %v1771 = vld [vmem:[%s5 + $0x30] sm:$0xf]
      %v1772 = vld [vmem:[%s5 + $0x34] sm:$0xf]
      %v1773 = vld [vmem:[%s5 + $0x38] sm:$0xf]
      %v1774 = vld [vmem:[%s5 + $0x3c] sm:$0xf]
      %v1775 = vld [vmem:[%s6] sm:$0x1]
      %v1777 = vlaneseq
      %v1778 = vshrl.u32 %v1777, 7
      %v1779 = vsub.s32 0, %v1778
      %v1780 = vrot.slane %v1775, %v1779
      %v1798 = vunpack.c.l.b16 %v1759
      %v1799 = vunpack.c.l.b16 %v1760
      %v1800 = vunpack.c.l.b16 %v1761
      %v1801 = vunpack.c.l.b16 %v1762
      %v1802 = vunpack.c.l.b16 %v1763
      %v1803 = vunpack.c.l.b16 %v1764
      %v1804 = vunpack.c.l.b16 %v1765
      %v1805 = vunpack.c.l.b16 %v1766
      %v1806 = vunpack.c.l.b16 %v1767
      %v1807 = vunpack.c.l.b16 %v1768
      %v1808 = vunpack.c.l.b16 %v1769
      %v1809 = vunpack.c.l.b16 %v1770
      %v1810 = vunpack.c.l.b16 %v1771
      %v1811 = vunpack.c.l.b16 %v1772
      %v1812 = vunpack.c.l.b16 %v1773
      %v1813 = vunpack.c.l.b16 %v1774
      %v1814 = vpack.c.b16 %v1799, %v1798
      %v1815 = vpack.c.b16 %v1801, %v1800
      %v1816 = vpack.c.b16 %v1803, %v1802
      %v1817 = vpack.c.b16 %v1805, %v1804
      %v1818 = vpack.c.b16 %v1807, %v1806
      %v1819 = vpack.c.b16 %v1809, %v1808
      %v1820 = vpack.c.b16 %v1811, %v1810
      %v1821 = vpack.c.b16 %v1813, %v1812
      %1830 = vmatprep.subr.bf16.mxu0 0
      %1831 = vmatpush1.bf16.msra.mxu0 %v1814
      %1832 = vmatprep.subr.bf16.mxu0 0
      %1833 = vmatpush1.bf16.msra.mxu0 %v1815
      %1834 = vmatprep.subr.bf16.mxu0 0
      %1835 = vmatpush1.bf16.msra.mxu0 %v1816
      %1836 = vmatprep.subr.bf16.mxu0 0
      %1837 = vmatpush1.bf16.msra.mxu0 %v1817
      %1838 = vmatprep.subr.bf16.mxu0 0
      %1839 = vmatpush1.bf16.msra.mxu0 %v1818
      %1840 = vmatprep.subr.bf16.mxu0 0
      %1841 = vmatpush1.bf16.msra.mxu0 %v1819
      %1842 = vmatprep.subr.bf16.mxu0 0
      %1843 = vmatpush1.bf16.msra.mxu0 %v1820
      %1844 = vmatprep.subr.bf16.mxu0 0
      %1845 = vmatpush1.bf16.msra.mxu0 %v1821
      %1846 = vmatprep.subr.bf16.mxu0 0
      %1847 = vmatpush1.bf16.msra.mxu0 0
      %1848 = vmatprep.subr.bf16.mxu0 0
      %1849 = vmatpush1.bf16.msra.mxu0 0
      %1850 = vmatprep.subr.bf16.mxu0 0
      %1851 = vmatpush1.bf16.msra.mxu0 0
      %1852 = vmatprep.subr.bf16.mxu0 0
      %1853 = vmatpush1.bf16.msra.mxu0 0
      %1854 = vmatprep.subr.bf16.mxu0 0
      %1855 = vmatpush1.bf16.msra.mxu0 0
      %1856 = vmatprep.subr.bf16.mxu0 0
      %1857 = vmatpush1.bf16.msra.mxu0 0
      %1858 = vmatprep.subr.bf16.mxu0 0
      %1859 = vmatpush1.bf16.msra.mxu0 0
      %1860 = vmatprep.subr.bf16.mxu0 0
      %1861 = vmatpush1.bf16.msra.mxu0 0
      %1862 = vmatprep.mubr.bf16.mxu0 0
      %1863 = vmatmul.mubr.bf16.gmra.mrb[0].mxu0 %v1727
      %v1864 = vpop.f32.mrb[0].mxu0
      %v1865 = vadd.f32 %v1780, %v1864
      %v1866 = vpop.f32.mrb[0].mxu0
      %v1867 = vpop.f32.mrb[0].mxu0
      %v1868 = vadd.f32 %v1780, %v1867
      %v1869 = vpop.f32.mrb[0].mxu0
      %1870 = vmatprep.mubr.bf16.mxu0 0
      %1871 = vmatmul.mubr.bf16.gmra.mrb[0].mxu0 %v1728
      %v1872 = vpop.f32.mrb[0].mxu0
      %v1873 = vadd.f32 %v1780, %v1872
      %v1874 = vpop.f32.mrb[0].mxu0
      %v1875 = vpop.f32.mrb[0].mxu0
      %v1876 = vadd.f32 %v1780, %v1875
      %v1877 = vpop.f32.mrb[0].mxu0
      %1878 = vmatprep.mubr.bf16.mxu0 0
      %1879 = vmatmul.mubr.bf16.gmra.mrb[0].mxu0 %v1729
      %v1880 = vpop.f32.mrb[0].mxu0
      %v1881 = vadd.f32 %v1780, %v1880
      %v1882 = vpop.f32.mrb[0].mxu0
      %v1883 = vpop.f32.mrb[0].mxu0
      %v1884 = vadd.f32 %v1780, %v1883
      %v1885 = vpop.f32.mrb[0].mxu0
      %1886 = vmatprep.mubr.bf16.mxu0 0
      %1887 = vmatmul.mubr.bf16.gmra.mrb[0].mxu0 %v1730
      %v1888 = vpop.f32.mrb[0].mxu0
      %v1889 = vadd.f32 %v1780, %v1888
      %v1890 = vpop.f32.mrb[0].mxu0
      %v1891 = vpop.f32.mrb[0].mxu0
      %v1892 = vadd.f32 %v1780, %v1891
      %v1893 = vpop.f32.mrb[0].mxu0
      %1894 = vmatprep.mubr.bf16.mxu0 0
      %1895 = vmatmul.mubr.bf16.gmra.mrb[0].mxu0 %v1731
      %v1896 = vpop.f32.mrb[0].mxu0
      %v1897 = vadd.f32 %v1780, %v1896
      %v1898 = vpop.f32.mrb[0].mxu0
      %v1899 = vpop.f32.mrb[0].mxu0
      %v1900 = vadd.f32 %v1780, %v1899
      %v1901 = vpop.f32.mrb[0].mxu0
      %1902 = vmatprep.mubr.bf16.mxu0 0
      %1903 = vmatmul.mubr.bf16.gmra.mrb[0].mxu0 %v1732
      %v1904 = vpop.f32.mrb[0].mxu0
      %v1905 = vadd.f32 %v1780, %v1904
      %v1906 = vpop.f32.mrb[0].mxu0
      %v1907 = vpop.f32.mrb[0].mxu0
      %v1908 = vadd.f32 %v1780, %v1907
      %v1909 = vpop.f32.mrb[0].mxu0
      %1910 = vmatprep.mubr.bf16.mxu0 0
      %1911 = vmatmul.mubr.bf16.gmra.mrb[0].mxu0 %v1733
      %v1912 = vpop.f32.mrb[0].mxu0
      %v1913 = vadd.f32 %v1780, %v1912
      %v1914 = vpop.f32.mrb[0].mxu0
      %v1915 = vpop.f32.mrb[0].mxu0
      %v1916 = vadd.f32 %v1780, %v1915
      %v1917 = vpop.f32.mrb[0].mxu0
      %1918 = vmatprep.mubr.bf16.mxu0 0
      %1919 = vmatmul.mubr.bf16.gmra.mrb[0].mxu0 %v1734
      %v1920 = vpop.f32.mrb[0].mxu0
      %v1921 = vadd.f32 %v1780, %v1920
      %v1922 = vpop.f32.mrb[0].mxu0
      %v1923 = vpop.f32.mrb[0].mxu0
      %v1924 = vadd.f32 %v1780, %v1923
      %v1925 = vpop.f32.mrb[0].mxu0
      %1926 = vmatprep.mubr.bf16.mxu0 0
      %1927 = vmatmul.mubr.bf16.gmra.mrb[0].mxu0 %v1735
      %v1928 = vpop.f32.mrb[0].mxu0
      %v1929 = vadd.f32 %v1780, %v1928
      %v1930 = vpop.f32.mrb[0].mxu0
      %v1931 = vpop.f32.mrb[0].mxu0
      %v1932 = vadd.f32 %v1780, %v1931
      %v1933 = vpop.f32.mrb[0].mxu0
      %1934 = vmatprep.mubr.bf16.mxu0 0
      %1935 = vmatmul.mubr.bf16.gmra.mrb[0].mxu0 %v1736
      %v1936 = vpop.f32.mrb[0].mxu0
      %v1937 = vadd.f32 %v1780, %v1936
      %v1938 = vpop.f32.mrb[0].mxu0
      %v1939 = vpop.f32.mrb[0].mxu0
      %v1940 = vadd.f32 %v1780, %v1939
      %v1941 = vpop.f32.mrb[0].mxu0
      %1942 = vmatprep.mubr.bf16.mxu0 0
      %1943 = vmatmul.mubr.bf16.gmra.mrb[0].mxu0 %v1737
      %v1944 = vpop.f32.mrb[0].mxu0
      %v1945 = vadd.f32 %v1780, %v1944
      %v1946 = vpop.f32.mrb[0].mxu0
      %v1947 = vpop.f32.mrb[0].mxu0
      %v1948 = vadd.f32 %v1780, %v1947
      %v1949 = vpop.f32.mrb[0].mxu0
      %1950 = vmatprep.mubr.bf16.mxu0 0
      %1951 = vmatmul.mubr.bf16.gmra.mrb[0].mxu0 %v1738
      %v1952 = vpop.f32.mrb[0].mxu0
      %v1953 = vadd.f32 %v1780, %v1952
      %v1954 = vpop.f32.mrb[0].mxu0
      %v1955 = vpop.f32.mrb[0].mxu0
      %v1956 = vadd.f32 %v1780, %v1955
      %v1957 = vpop.f32.mrb[0].mxu0
      %1958 = vmatprep.mubr.bf16.mxu0 0
      %1959 = vmatmul.mubr.bf16.gmra.mrb[0].mxu0 %v1739
      %v1960 = vpop.f32.mrb[0].mxu0
      %v1961 = vadd.f32 %v1780, %v1960
      %v1962 = vpop.f32.mrb[0].mxu0
      %v1963 = vpop.f32.mrb[0].mxu0
      %v1964 = vadd.f32 %v1780, %v1963
      %v1965 = vpop.f32.mrb[0].mxu0
      %1966 = vmatprep.mubr.bf16.mxu0 0
      %1967 = vmatmul.mubr.bf16.gmra.mrb[0].mxu0 %v1740
      %v1968 = vpop.f32.mrb[0].mxu0
      %v1969 = vadd.f32 %v1780, %v1968
      %v1970 = vpop.f32.mrb[0].mxu0
      %v1971 = vpop.f32.mrb[0].mxu0
      %v1972 = vadd.f32 %v1780, %v1971
      %v1973 = vpop.f32.mrb[0].mxu0
      %1974 = vmatprep.mubr.bf16.mxu0 0
      %1975 = vmatmul.mubr.bf16.gmra.mrb[0].mxu0 %v1741
      %v1976 = vpop.f32.mrb[0].mxu0
      %v1977 = vadd.f32 %v1780, %v1976
      %v1978 = vpop.f32.mrb[0].mxu0
      %v1979 = vpop.f32.mrb[0].mxu0
      %v1980 = vadd.f32 %v1780, %v1979
      %v1981 = vpop.f32.mrb[0].mxu0
      %1982 = vmatprep.mubr.bf16.mxu0 0
      %1983 = vmatmul.mubr.bf16.gmra.mrb[0].mxu0 %v1742
      %v1984 = vpop.f32.mrb[0].mxu0
      %v1985 = vadd.f32 %v1780, %v1984
      %v1986 = vpop.f32.mrb[0].mxu0
      %v1987 = vpop.f32.mrb[0].mxu0
      %v1988 = vadd.f32 %v1780, %v1987
      %v1989 = vpop.f32.mrb[0].mxu0
      %1990 = vmatprep.mubr.bf16.mxu0 0
      %1991 = vmatmul.mubr.bf16.gmra.mrb[0].mxu0 %v1743
      %v1992 = vpop.f32.mrb[0].mxu0
      %v1993 = vadd.f32 %v1780, %v1992
      %v1994 = vpop.f32.mrb[0].mxu0
      %v1995 = vpop.f32.mrb[0].mxu0
      %v1996 = vadd.f32 %v1780, %v1995
      %v1997 = vpop.f32.mrb[0].mxu0
      %1998 = vmatprep.mubr.bf16.mxu0 0
      %1999 = vmatmul.mubr.bf16.gmra.mrb[0].mxu0 %v1744
      %v2000 = vpop.f32.mrb[0].mxu0
      %v2001 = vadd.f32 %v1780, %v2000
      %v2002 = vpop.f32.mrb[0].mxu0
      %v2003 = vpop.f32.mrb[0].mxu0
      %v2004 = vadd.f32 %v1780, %v2003
      %v2005 = vpop.f32.mrb[0].mxu0
      %2006 = vmatprep.mubr.bf16.mxu0 0
      %2007 = vmatmul.mubr.bf16.gmra.mrb[0].mxu0 %v1745
      %v2008 = vpop.f32.mrb[0].mxu0
      %v2009 = vadd.f32 %v1780, %v2008
      %v2010 = vpop.f32.mrb[0].mxu0
      %v2011 = vpop.f32.mrb[0].mxu0
      %v2012 = vadd.f32 %v1780, %v2011
      %v2013 = vpop.f32.mrb[0].mxu0
      %2014 = vmatprep.mubr.bf16.mxu0 0
      %2015 = vmatmul.mubr.bf16.gmra.mrb[0].mxu0 %v1746
      %v2016 = vpop.f32.mrb[0].mxu0
      %v2017 = vadd.f32 %v1780, %v2016
      %v2018 = vpop.f32.mrb[0].mxu0
      %v2019 = vpop.f32.mrb[0].mxu0
      %v2020 = vadd.f32 %v1780, %v2019
      %v2021 = vpop.f32.mrb[0].mxu0
      %2022 = vmatprep.mubr.bf16.mxu0 0
      %2023 = vmatmul.mubr.bf16.gmra.mrb[0].mxu0 %v1747
      %v2024 = vpop.f32.mrb[0].mxu0
      %v2025 = vadd.f32 %v1780, %v2024
      %v2026 = vpop.f32.mrb[0].mxu0
      %v2027 = vpop.f32.mrb[0].mxu0
      %v2028 = vadd.f32 %v1780, %v2027
      %v2029 = vpop.f32.mrb[0].mxu0
      %2030 = vmatprep.mubr.bf16.mxu0 0
      %2031 = vmatmul.mubr.bf16.gmra.mrb[0].mxu0 %v1748
      %v2032 = vpop.f32.mrb[0].mxu0
      %v2033 = vadd.f32 %v1780, %v2032
      %v2034 = vpop.f32.mrb[0].mxu0
      %v2035 = vpop.f32.mrb[0].mxu0
      %v2036 = vadd.f32 %v1780, %v2035
      %v2037 = vpop.f32.mrb[0].mxu0
      %2038 = vmatprep.mubr.bf16.mxu0 0
      %2039 = vmatmul.mubr.bf16.gmra.mrb[0].mxu0 %v1749
      %v2040 = vpop.f32.mrb[0].mxu0
      %v2041 = vadd.f32 %v1780, %v2040
      %v2042 = vpop.f32.mrb[0].mxu0
      %v2043 = vpop.f32.mrb[0].mxu0
      %v2044 = vadd.f32 %v1780, %v2043
      %v2045 = vpop.f32.mrb[0].mxu0
      %2046 = vmatprep.mubr.bf16.mxu0 0
      %2047 = vmatmul.mubr.bf16.gmra.mrb[0].mxu0 %v1750
      %v2048 = vpop.f32.mrb[0].mxu0
      %v2049 = vadd.f32 %v1780, %v2048
      %v2050 = vpop.f32.mrb[0].mxu0
      %v2051 = vpop.f32.mrb[0].mxu0
      %v2052 = vadd.f32 %v1780, %v2051
      %v2053 = vpop.f32.mrb[0].mxu0
      %2054 = vmatprep.mubr.bf16.mxu0 0
      %2055 = vmatmul.mubr.bf16.gmra.mrb[0].mxu0 %v1751
      %v2056 = vpop.f32.mrb[0].mxu0
      %v2057 = vadd.f32 %v1780, %v2056
      %v2058 = vpop.f32.mrb[0].mxu0
      %v2059 = vpop.f32.mrb[0].mxu0
      %v2060 = vadd.f32 %v1780, %v2059
      %v2061 = vpop.f32.mrb[0].mxu0
      %2062 = vmatprep.mubr.bf16.mxu0 0
      %2063 = vmatmul.mubr.bf16.gmra.mrb[0].mxu0 %v1752
      %v2064 = vpop.f32.mrb[0].mxu0
      %v2065 = vadd.f32 %v1780, %v2064
      %v2066 = vpop.f32.mrb[0].mxu0
      %v2067 = vpop.f32.mrb[0].mxu0
      %v2068 = vadd.f32 %v1780, %v2067
      %v2069 = vpop.f32.mrb[0].mxu0
      %2070 = vmatprep.mubr.bf16.mxu0 0
      %2071 = vmatmul.mubr.bf16.gmra.mrb[0].mxu0 %v1753
      %v2072 = vpop.f32.mrb[0].mxu0
      %v2073 = vadd.f32 %v1780, %v2072
      %v2074 = vpop.f32.mrb[0].mxu0
      %v2075 = vpop.f32.mrb[0].mxu0
      %v2076 = vadd.f32 %v1780, %v2075
      %v2077 = vpop.f32.mrb[0].mxu0
      %2078 = vmatprep.mubr.bf16.mxu0 0
      %2079 = vmatmul.mubr.bf16.gmra.mrb[0].mxu0 %v1754
      %v2080 = vpop.f32.mrb[0].mxu0
      %v2081 = vadd.f32 %v1780, %v2080
      %v2082 = vpop.f32.mrb[0].mxu0
      %v2083 = vpop.f32.mrb[0].mxu0
      %v2084 = vadd.f32 %v1780, %v2083
      %v2085 = vpop.f32.mrb[0].mxu0
      %2086 = vmatprep.mubr.bf16.mxu0 0
      %2087 = vmatmul.mubr.bf16.gmra.mrb[0].mxu0 %v1755
      %v2088 = vpop.f32.mrb[0].mxu0
      %v2089 = vadd.f32 %v1780, %v2088
      %v2090 = vpop.f32.mrb[0].mxu0
      %v2091 = vpop.f32.mrb[0].mxu0
      %v2092 = vadd.f32 %v1780, %v2091
      %v2093 = vpop.f32.mrb[0].mxu0
      %2094 = vmatprep.mubr.bf16.mxu0 0
      %2095 = vmatmul.mubr.bf16.gmra.mrb[0].mxu0 %v1756
      %v2096 = vpop.f32.mrb[0].mxu0
      %v2097 = vadd.f32 %v1780, %v2096
      %v2098 = vpop.f32.mrb[0].mxu0
      %v2099 = vpop.f32.mrb[0].mxu0
      %v2100 = vadd.f32 %v1780, %v2099
      %v2101 = vpop.f32.mrb[0].mxu0
      %2102 = vmatprep.mubr.bf16.mxu0 0
      %2103 = vmatmul.mubr.bf16.gmra.mrb[0].mxu0 %v1757
      %v2104 = vpop.f32.mrb[0].mxu0
      %v2105 = vadd.f32 %v1780, %v2104
      %v2106 = vpop.f32.mrb[0].mxu0
      %v2107 = vpop.f32.mrb[0].mxu0
      %v2108 = vadd.f32 %v1780, %v2107
      %v2109 = vpop.f32.mrb[0].mxu0
      %2110 = vmatprep.mubr.bf16.mxu0 0
      %2111 = vmatmul.mubr.bf16.gmra.mrb[0].mxu0 %v1758
      %v2112 = vpop.f32.mrb[0].mxu0
      %v2113 = vadd.f32 %v1780, %v2112
      %v2114 = vpop.f32.mrb[0].mxu0
      %v2115 = vpop.f32.mrb[0].mxu0
      %v2116 = vadd.f32 %v1780, %v2115
      %v2117 = vpop.f32.mrb[0].mxu0
      %2118 = vdwg.mxu0
      %v2119 = vmax.f32 %v1865, 0.0
      %v2120 = vmax.f32 %v1868, 0.0
      %v2121 = vmax.f32 %v1873, 0.0
      %v2122 = vmax.f32 %v1876, 0.0
      %v2123 = vmax.f32 %v1881, 0.0
      %v2124 = vmax.f32 %v1884, 0.0
      %v2125 = vmax.f32 %v1889, 0.0
      %v2126 = vmax.f32 %v1892, 0.0
      %v2127 = vmax.f32 %v1897, 0.0
      %v2128 = vmax.f32 %v1900, 0.0
      %v2129 = vmax.f32 %v1905, 0.0
      %v2130 = vmax.f32 %v1908, 0.0
      %v2131 = vmax.f32 %v1913, 0.0
      %v2132 = vmax.f32 %v1916, 0.0
      %v2133 = vmax.f32 %v1921, 0.0
      %v2134 = vmax.f32 %v1924, 0.0
      %v2135 = vmax.f32 %v1929, 0.0
      %v2136 = vmax.f32 %v1932, 0.0
      %v2137 = vmax.f32 %v1937, 0.0
      %v2138 = vmax.f32 %v1940, 0.0
      %v2139 = vmax.f32 %v1945, 0.0
      %v2140 = vmax.f32 %v1948, 0.0
      %v2141 = vmax.f32 %v1953, 0.0
      %v2142 = vmax.f32 %v1956, 0.0
      %v2143 = vmax.f32 %v1961, 0.0
      %v2144 = vmax.f32 %v1964, 0.0
      %v2145 = vmax.f32 %v1969, 0.0
      %v2146 = vmax.f32 %v1972, 0.0
      %v2147 = vmax.f32 %v1977, 0.0
      %v2148 = vmax.f32 %v1980, 0.0
      %v2149 = vmax.f32 %v1985, 0.0
      %v2150 = vmax.f32 %v1988, 0.0
      %v2151 = vmax.f32 %v1993, 0.0
      %v2152 = vmax.f32 %v1996, 0.0
      %v2153 = vmax.f32 %v2001, 0.0
      %v2154 = vmax.f32 %v2004, 0.0
      %v2155 = vmax.f32 %v2009, 0.0
      %v2156 = vmax.f32 %v2012, 0.0
      %v2157 = vmax.f32 %v2017, 0.0
      %v2158 = vmax.f32 %v2020, 0.0
      %v2159 = vmax.f32 %v2025, 0.0
      %v2160 = vmax.f32 %v2028, 0.0
      %v2161 = vmax.f32 %v2033, 0.0
      %v2162 = vmax.f32 %v2036, 0.0
      %v2163 = vmax.f32 %v2041, 0.0
      %v2164 = vmax.f32 %v2044, 0.0
      %v2165 = vmax.f32 %v2049, 0.0
      %v2166 = vmax.f32 %v2052, 0.0
      %v2167 = vmax.f32 %v2057, 0.0
      %v2168 = vmax.f32 %v2060, 0.0
      %v2169 = vmax.f32 %v2065, 0.0
      %v2170 = vmax.f32 %v2068, 0.0
      %v2171 = vmax.f32 %v2073, 0.0
      %v2172 = vmax.f32 %v2076, 0.0
      %v2173 = vmax.f32 %v2081, 0.0
      %v2174 = vmax.f32 %v2084, 0.0
      %v2175 = vmax.f32 %v2089, 0.0
      %v2176 = vmax.f32 %v2092, 0.0
      %v2177 = vmax.f32 %v2097, 0.0
      %v2178 = vmax.f32 %v2100, 0.0
      %v2179 = vmax.f32 %v2105, 0.0
      %v2180 = vmax.f32 %v2108, 0.0
      %v2181 = vmax.f32 %v2113, 0.0
      %v2182 = vmax.f32 %v2116, 0.0
      %v2183 = vpack.c.bf16 %v2120, %v2119
      %v2184 = vpack.c.bf16 %v2122, %v2121
      %v2185 = vpack.c.bf16 %v2124, %v2123
      %v2186 = vpack.c.bf16 %v2126, %v2125
      %v2187 = vpack.c.bf16 %v2128, %v2127
      %v2188 = vpack.c.bf16 %v2130, %v2129
      %v2189 = vpack.c.bf16 %v2132, %v2131
      %v2190 = vpack.c.bf16 %v2134, %v2133
      %v2191 = vpack.c.bf16 %v2136, %v2135
      %v2192 = vpack.c.bf16 %v2138, %v2137
      %v2193 = vpack.c.bf16 %v2140, %v2139
      %v2194 = vpack.c.bf16 %v2142, %v2141
      %v2195 = vpack.c.bf16 %v2144, %v2143
      %v2196 = vpack.c.bf16 %v2146, %v2145
      %v2197 = vpack.c.bf16 %v2148, %v2147
      %v2198 = vpack.c.bf16 %v2150, %v2149
      %v2199 = vpack.c.bf16 %v2152, %v2151
      %v2200 = vpack.c.bf16 %v2154, %v2153
      %v2201 = vpack.c.bf16 %v2156, %v2155
      %v2202 = vpack.c.bf16 %v2158, %v2157
      %v2203 = vpack.c.bf16 %v2160, %v2159
      %v2204 = vpack.c.bf16 %v2162, %v2161
      %v2205 = vpack.c.bf16 %v2164, %v2163
      %v2206 = vpack.c.bf16 %v2166, %v2165
      %v2207 = vpack.c.bf16 %v2168, %v2167
      %v2208 = vpack.c.bf16 %v2170, %v2169
      %v2209 = vpack.c.bf16 %v2172, %v2171
      %v2210 = vpack.c.bf16 %v2174, %v2173
      %v2211 = vpack.c.bf16 %v2176, %v2175
      %v2212 = vpack.c.bf16 %v2178, %v2177
      %v2213 = vpack.c.bf16 %v2180, %v2179
      %v2214 = vpack.c.bf16 %v2182, %v2181
      %v2215 = vld [vmem:[%s7] sm:$0xf]
      %v2216 = vld [vmem:[%s7 + $0x4] sm:$0xf]
      %v2217 = vld [vmem:[%s7 + $0x8] sm:$0xf]
      %v2218 = vld [vmem:[%s7 + $0xc] sm:$0xf]
      %v2219 = vld [vmem:[%s7 + $0x10] sm:$0xf]
      %v2220 = vld [vmem:[%s7 + $0x14] sm:$0xf]
      %v2221 = vld [vmem:[%s7 + $0x18] sm:$0xf]
      %v2222 = vld [vmem:[%s7 + $0x1c] sm:$0xf]
      %v2223 = vld [vmem:[%s7 + $0x20] sm:$0xf]
      %v2224 = vld [vmem:[%s7 + $0x24] sm:$0xf]
      %v2225 = vld [vmem:[%s7 + $0x28] sm:$0xf]
      %v2226 = vld [vmem:[%s7 + $0x2c] sm:$0xf]
      %v2227 = vld [vmem:[%s7 + $0x30] sm:$0xf]
      %v2228 = vld [vmem:[%s7 + $0x34] sm:$0xf]
      %v2229 = vld [vmem:[%s7 + $0x38] sm:$0xf]
      %v2230 = vld [vmem:[%s7 + $0x3c] sm:$0xf]
      %v2231 = vld [vmem:[%s8] sm:$0x1]
      %v2233 = vlaneseq
      %v2234 = vshrl.u32 %v2233, 7
      %v2235 = vsub.s32 0, %v2234
      %v2236 = vrot.slane %v2231, %v2235
      %v2254 = vunpack.c.l.b16 %v2215
      %v2255 = vunpack.c.l.b16 %v2216
      %v2256 = vunpack.c.l.b16 %v2217
      %v2257 = vunpack.c.l.b16 %v2218
      %v2258 = vunpack.c.l.b16 %v2219
      %v2259 = vunpack.c.l.b16 %v2220
      %v2260 = vunpack.c.l.b16 %v2221
      %v2261 = vunpack.c.l.b16 %v2222
      %v2262 = vunpack.c.l.b16 %v2223
      %v2263 = vunpack.c.l.b16 %v2224
      %v2264 = vunpack.c.l.b16 %v2225
      %v2265 = vunpack.c.l.b16 %v2226
      %v2266 = vunpack.c.l.b16 %v2227
      %v2267 = vunpack.c.l.b16 %v2228
      %v2268 = vunpack.c.l.b16 %v2229
      %v2269 = vunpack.c.l.b16 %v2230
      %v2270 = vpack.c.b16 %v2255, %v2254
      %v2271 = vpack.c.b16 %v2257, %v2256
      %v2272 = vpack.c.b16 %v2259, %v2258
      %v2273 = vpack.c.b16 %v2261, %v2260
      %v2274 = vpack.c.b16 %v2263, %v2262
      %v2275 = vpack.c.b16 %v2265, %v2264
      %v2276 = vpack.c.b16 %v2267, %v2266
      %v2277 = vpack.c.b16 %v2269, %v2268
      %2286 = vmatprep.subr.bf16.mxu0 0
      %2287 = vmatpush1.bf16.msra.mxu0 %v2270
      %2288 = vmatprep.subr.bf16.mxu0 0
      %2289 = vmatpush1.bf16.msra.mxu0 %v2271
      %2290 = vmatprep.subr.bf16.mxu0 0
      %2291 = vmatpush1.bf16.msra.mxu0 %v2272
      %2292 = vmatprep.subr.bf16.mxu0 0
      %2293 = vmatpush1.bf16.msra.mxu0 %v2273
      %2294 = vmatprep.subr.bf16.mxu0 0
      %2295 = vmatpush1.bf16.msra.mxu0 %v2274
      %2296 = vmatprep.subr.bf16.mxu0 0
      %2297 = vmatpush1.bf16.msra.mxu0 %v2275
      %2298 = vmatprep.subr.bf16.mxu0 0
      %2299 = vmatpush1.bf16.msra.mxu0 %v2276
      %2300 = vmatprep.subr.bf16.mxu0 0
      %2301 = vmatpush1.bf16.msra.mxu0 %v2277
      %2302 = vmatprep.subr.bf16.mxu0 0
      %2303 = vmatpush1.bf16.msra.mxu0 0
      %2304 = vmatprep.subr.bf16.mxu0 0
      %2305 = vmatpush1.bf16.msra.mxu0 0
      %2306 = vmatprep.subr.bf16.mxu0 0
      %2307 = vmatpush1.bf16.msra.mxu0 0
      %2308 = vmatprep.subr.bf16.mxu0 0
      %2309 = vmatpush1.bf16.msra.mxu0 0
      %2310 = vmatprep.subr.bf16.mxu0 0
      %2311 = vmatpush1.bf16.msra.mxu0 0
      %2312 = vmatprep.subr.bf16.mxu0 0
      %2313 = vmatpush1.bf16.msra.mxu0 0
      %2314 = vmatprep.subr.bf16.mxu0 0
      %2315 = vmatpush1.bf16.msra.mxu0 0
      %2316 = vmatprep.subr.bf16.mxu0 0
      %2317 = vmatpush1.bf16.msra.mxu0 0
      %2318 = vmatprep.mubr.bf16.mxu0 0
      %2319 = vmatmul.mubr.bf16.gmra.mrb[0].mxu0 %v2183
      %v2320 = vpop.f32.mrb[0].mxu0
      %v2321 = vadd.f32 %v2236, %v2320
      %v2322 = vpop.f32.mrb[0].mxu0
      %v2323 = vpop.f32.mrb[0].mxu0
      %v2324 = vadd.f32 %v2236, %v2323
      %v2325 = vpop.f32.mrb[0].mxu0
      %2326 = vmatprep.mubr.bf16.mxu0 0
      %2327 = vmatmul.mubr.bf16.gmra.mrb[0].mxu0 %v2184
      %v2328 = vpop.f32.mrb[0].mxu0
      %v2329 = vadd.f32 %v2236, %v2328
      %v2330 = vpop.f32.mrb[0].mxu0
      %v2331 = vpop.f32.mrb[0].mxu0
      %v2332 = vadd.f32 %v2236, %v2331
      %v2333 = vpop.f32.mrb[0].mxu0
      %2334 = vmatprep.mubr.bf16.mxu0 0
      %2335 = vmatmul.mubr.bf16.gmra.mrb[0].mxu0 %v2185
      %v2336 = vpop.f32.mrb[0].mxu0
      %v2337 = vadd.f32 %v2236, %v2336
      %v2338 = vpop.f32.mrb[0].mxu0
      %v2339 = vpop.f32.mrb[0].mxu0
      %v2340 = vadd.f32 %v2236, %v2339
      %v2341 = vpop.f32.mrb[0].mxu0
      %2342 = vmatprep.mubr.bf16.mxu0 0
      %2343 = vmatmul.mubr.bf16.gmra.mrb[0].mxu0 %v2186
      %v2344 = vpop.f32.mrb[0].mxu0
      %v2345 = vadd.f32 %v2236, %v2344
      %v2346 = vpop.f32.mrb[0].mxu0
      %v2347 = vpop.f32.mrb[0].mxu0
      %v2348 = vadd.f32 %v2236, %v2347
      %v2349 = vpop.f32.mrb[0].mxu0
      %2350 = vmatprep.mubr.bf16.mxu0 0
      %2351 = vmatmul.mubr.bf16.gmra.mrb[0].mxu0 %v2187
      %v2352 = vpop.f32.mrb[0].mxu0
      %v2353 = vadd.f32 %v2236, %v2352
      %v2354 = vpop.f32.mrb[0].mxu0
      %v2355 = vpop.f32.mrb[0].mxu0
      %v2356 = vadd.f32 %v2236, %v2355
      %v2357 = vpop.f32.mrb[0].mxu0
      %2358 = vmatprep.mubr.bf16.mxu0 0
      %2359 = vmatmul.mubr.bf16.gmra.mrb[0].mxu0 %v2188
      %v2360 = vpop.f32.mrb[0].mxu0
      %v2361 = vadd.f32 %v2236, %v2360
      %v2362 = vpop.f32.mrb[0].mxu0
      %v2363 = vpop.f32.mrb[0].mxu0
      %v2364 = vadd.f32 %v2236, %v2363
      %v2365 = vpop.f32.mrb[0].mxu0
      %2366 = vmatprep.mubr.bf16.mxu0 0
      %2367 = vmatmul.mubr.bf16.gmra.mrb[0].mxu0 %v2189
      %v2368 = vpop.f32.mrb[0].mxu0
      %v2369 = vadd.f32 %v2236, %v2368
      %v2370 = vpop.f32.mrb[0].mxu0
      %v2371 = vpop.f32.mrb[0].mxu0
      %v2372 = vadd.f32 %v2236, %v2371
      %v2373 = vpop.f32.mrb[0].mxu0
      %2374 = vmatprep.mubr.bf16.mxu0 0
      %2375 = vmatmul.mubr.bf16.gmra.mrb[0].mxu0 %v2190
      %v2376 = vpop.f32.mrb[0].mxu0
      %v2377 = vadd.f32 %v2236, %v2376
      %v2378 = vpop.f32.mrb[0].mxu0
      %v2379 = vpop.f32.mrb[0].mxu0
      %v2380 = vadd.f32 %v2236, %v2379
      %v2381 = vpop.f32.mrb[0].mxu0
      %2382 = vmatprep.mubr.bf16.mxu0 0
      %2383 = vmatmul.mubr.bf16.gmra.mrb[0].mxu0 %v2191
      %v2384 = vpop.f32.mrb[0].mxu0
      %v2385 = vadd.f32 %v2236, %v2384
      %v2386 = vpop.f32.mrb[0].mxu0
      %v2387 = vpop.f32.mrb[0].mxu0
      %v2388 = vadd.f32 %v2236, %v2387
      %v2389 = vpop.f32.mrb[0].mxu0
      %2390 = vmatprep.mubr.bf16.mxu0 0
      %2391 = vmatmul.mubr.bf16.gmra.mrb[0].mxu0 %v2192
      %v2392 = vpop.f32.mrb[0].mxu0
      %v2393 = vadd.f32 %v2236, %v2392
      %v2394 = vpop.f32.mrb[0].mxu0
      %v2395 = vpop.f32.mrb[0].mxu0
      %v2396 = vadd.f32 %v2236, %v2395
      %v2397 = vpop.f32.mrb[0].mxu0
      %2398 = vmatprep.mubr.bf16.mxu0 0
      %2399 = vmatmul.mubr.bf16.gmra.mrb[0].mxu0 %v2193
      %v2400 = vpop.f32.mrb[0].mxu0
      %v2401 = vadd.f32 %v2236, %v2400
      %v2402 = vpop.f32.mrb[0].mxu0
      %v2403 = vpop.f32.mrb[0].mxu0
      %v2404 = vadd.f32 %v2236, %v2403
      %v2405 = vpop.f32.mrb[0].mxu0
      %2406 = vmatprep.mubr.bf16.mxu0 0
      %2407 = vmatmul.mubr.bf16.gmra.mrb[0].mxu0 %v2194
      %v2408 = vpop.f32.mrb[0].mxu0
      %v2409 = vadd.f32 %v2236, %v2408
      %v2410 = vpop.f32.mrb[0].mxu0
      %v2411 = vpop.f32.mrb[0].mxu0
      %v2412 = vadd.f32 %v2236, %v2411
      %v2413 = vpop.f32.mrb[0].mxu0
      %2414 = vmatprep.mubr.bf16.mxu0 0
      %2415 = vmatmul.mubr.bf16.gmra.mrb[0].mxu0 %v2195
      %v2416 = vpop.f32.mrb[0].mxu0
      %v2417 = vadd.f32 %v2236, %v2416
      %v2418 = vpop.f32.mrb[0].mxu0
      %v2419 = vpop.f32.mrb[0].mxu0
      %v2420 = vadd.f32 %v2236, %v2419
      %v2421 = vpop.f32.mrb[0].mxu0
      %2422 = vmatprep.mubr.bf16.mxu0 0
      %2423 = vmatmul.mubr.bf16.gmra.mrb[0].mxu0 %v2196
      %v2424 = vpop.f32.mrb[0].mxu0
      %v2425 = vadd.f32 %v2236, %v2424
      %v2426 = vpop.f32.mrb[0].mxu0
      %v2427 = vpop.f32.mrb[0].mxu0
      %v2428 = vadd.f32 %v2236, %v2427
      %v2429 = vpop.f32.mrb[0].mxu0
      %2430 = vmatprep.mubr.bf16.mxu0 0
      %2431 = vmatmul.mubr.bf16.gmra.mrb[0].mxu0 %v2197
      %v2432 = vpop.f32.mrb[0].mxu0
      %v2433 = vadd.f32 %v2236, %v2432
      %v2434 = vpop.f32.mrb[0].mxu0
      %v2435 = vpop.f32.mrb[0].mxu0
      %v2436 = vadd.f32 %v2236, %v2435
      %v2437 = vpop.f32.mrb[0].mxu0
      %2438 = vmatprep.mubr.bf16.mxu0 0
      %2439 = vmatmul.mubr.bf16.gmra.mrb[0].mxu0 %v2198
      %v2440 = vpop.f32.mrb[0].mxu0
      %v2441 = vadd.f32 %v2236, %v2440
      %v2442 = vpop.f32.mrb[0].mxu0
      %v2443 = vpop.f32.mrb[0].mxu0
      %v2444 = vadd.f32 %v2236, %v2443
      %v2445 = vpop.f32.mrb[0].mxu0
      %2446 = vmatprep.mubr.bf16.mxu0 0
      %2447 = vmatmul.mubr.bf16.gmra.mrb[0].mxu0 %v2199
      %v2448 = vpop.f32.mrb[0].mxu0
      %v2449 = vadd.f32 %v2236, %v2448
      %v2450 = vpop.f32.mrb[0].mxu0
      %v2451 = vpop.f32.mrb[0].mxu0
      %v2452 = vadd.f32 %v2236, %v2451
      %v2453 = vpop.f32.mrb[0].mxu0
      %2454 = vmatprep.mubr.bf16.mxu0 0
      %2455 = vmatmul.mubr.bf16.gmra.mrb[0].mxu0 %v2200
      %v2456 = vpop.f32.mrb[0].mxu0
      %v2457 = vadd.f32 %v2236, %v2456
      %v2458 = vpop.f32.mrb[0].mxu0
      %v2459 = vpop.f32.mrb[0].mxu0
      %v2460 = vadd.f32 %v2236, %v2459
      %v2461 = vpop.f32.mrb[0].mxu0
      %2462 = vmatprep.mubr.bf16.mxu0 0
      %2463 = vmatmul.mubr.bf16.gmra.mrb[0].mxu0 %v2201
      %v2464 = vpop.f32.mrb[0].mxu0
      %v2465 = vadd.f32 %v2236, %v2464
      %v2466 = vpop.f32.mrb[0].mxu0
      %v2467 = vpop.f32.mrb[0].mxu0
      %v2468 = vadd.f32 %v2236, %v2467
      %v2469 = vpop.f32.mrb[0].mxu0
      %2470 = vmatprep.mubr.bf16.mxu0 0
      %2471 = vmatmul.mubr.bf16.gmra.mrb[0].mxu0 %v2202
      %v2472 = vpop.f32.mrb[0].mxu0
      %v2473 = vadd.f32 %v2236, %v2472
      %v2474 = vpop.f32.mrb[0].mxu0
      %v2475 = vpop.f32.mrb[0].mxu0
      %v2476 = vadd.f32 %v2236, %v2475
      %v2477 = vpop.f32.mrb[0].mxu0
      %2478 = vmatprep.mubr.bf16.mxu0 0
      %2479 = vmatmul.mubr.bf16.gmra.mrb[0].mxu0 %v2203
      %v2480 = vpop.f32.mrb[0].mxu0
      %v2481 = vadd.f32 %v2236, %v2480
      %v2482 = vpop.f32.mrb[0].mxu0
      %v2483 = vpop.f32.mrb[0].mxu0
      %v2484 = vadd.f32 %v2236, %v2483
      %v2485 = vpop.f32.mrb[0].mxu0
      %2486 = vmatprep.mubr.bf16.mxu0 0
      %2487 = vmatmul.mubr.bf16.gmra.mrb[0].mxu0 %v2204
      %v2488 = vpop.f32.mrb[0].mxu0
      %v2489 = vadd.f32 %v2236, %v2488
      %v2490 = vpop.f32.mrb[0].mxu0
      %v2491 = vpop.f32.mrb[0].mxu0
      %v2492 = vadd.f32 %v2236, %v2491
      %v2493 = vpop.f32.mrb[0].mxu0
      %2494 = vmatprep.mubr.bf16.mxu0 0
      %2495 = vmatmul.mubr.bf16.gmra.mrb[0].mxu0 %v2205
      %v2496 = vpop.f32.mrb[0].mxu0
      %v2497 = vadd.f32 %v2236, %v2496
      %v2498 = vpop.f32.mrb[0].mxu0
      %v2499 = vpop.f32.mrb[0].mxu0
      %v2500 = vadd.f32 %v2236, %v2499
      %v2501 = vpop.f32.mrb[0].mxu0
      %2502 = vmatprep.mubr.bf16.mxu0 0
      %2503 = vmatmul.mubr.bf16.gmra.mrb[0].mxu0 %v2206
      %v2504 = vpop.f32.mrb[0].mxu0
      %v2505 = vadd.f32 %v2236, %v2504
      %v2506 = vpop.f32.mrb[0].mxu0
      %v2507 = vpop.f32.mrb[0].mxu0
      %v2508 = vadd.f32 %v2236, %v2507
      %v2509 = vpop.f32.mrb[0].mxu0
      %2510 = vmatprep.mubr.bf16.mxu0 0
      %2511 = vmatmul.mubr.bf16.gmra.mrb[0].mxu0 %v2207
      %v2512 = vpop.f32.mrb[0].mxu0
      %v2513 = vadd.f32 %v2236, %v2512
      %v2514 = vpop.f32.mrb[0].mxu0
      %v2515 = vpop.f32.mrb[0].mxu0
      %v2516 = vadd.f32 %v2236, %v2515
      %v2517 = vpop.f32.mrb[0].mxu0
      %2518 = vmatprep.mubr.bf16.mxu0 0
      %2519 = vmatmul.mubr.bf16.gmra.mrb[0].mxu0 %v2208
      %v2520 = vpop.f32.mrb[0].mxu0
      %v2521 = vadd.f32 %v2236, %v2520
      %v2522 = vpop.f32.mrb[0].mxu0
      %v2523 = vpop.f32.mrb[0].mxu0
      %v2524 = vadd.f32 %v2236, %v2523
      %v2525 = vpop.f32.mrb[0].mxu0
      %2526 = vmatprep.mubr.bf16.mxu0 0
      %2527 = vmatmul.mubr.bf16.gmra.mrb[0].mxu0 %v2209
      %v2528 = vpop.f32.mrb[0].mxu0
      %v2529 = vadd.f32 %v2236, %v2528
      %v2530 = vpop.f32.mrb[0].mxu0
      %v2531 = vpop.f32.mrb[0].mxu0
      %v2532 = vadd.f32 %v2236, %v2531
      %v2533 = vpop.f32.mrb[0].mxu0
      %2534 = vmatprep.mubr.bf16.mxu0 0
      %2535 = vmatmul.mubr.bf16.gmra.mrb[0].mxu0 %v2210
      %v2536 = vpop.f32.mrb[0].mxu0
      %v2537 = vadd.f32 %v2236, %v2536
      %v2538 = vpop.f32.mrb[0].mxu0
      %v2539 = vpop.f32.mrb[0].mxu0
      %v2540 = vadd.f32 %v2236, %v2539
      %v2541 = vpop.f32.mrb[0].mxu0
      %2542 = vmatprep.mubr.bf16.mxu0 0
      %2543 = vmatmul.mubr.bf16.gmra.mrb[0].mxu0 %v2211
      %v2544 = vpop.f32.mrb[0].mxu0
      %v2545 = vadd.f32 %v2236, %v2544
      %v2546 = vpop.f32.mrb[0].mxu0
      %v2547 = vpop.f32.mrb[0].mxu0
      %v2548 = vadd.f32 %v2236, %v2547
      %v2549 = vpop.f32.mrb[0].mxu0
      %2550 = vmatprep.mubr.bf16.mxu0 0
      %2551 = vmatmul.mubr.bf16.gmra.mrb[0].mxu0 %v2212
      %v2552 = vpop.f32.mrb[0].mxu0
      %v2553 = vadd.f32 %v2236, %v2552
      %v2554 = vpop.f32.mrb[0].mxu0
      %v2555 = vpop.f32.mrb[0].mxu0
      %v2556 = vadd.f32 %v2236, %v2555
      %v2557 = vpop.f32.mrb[0].mxu0
      %2558 = vmatprep.mubr.bf16.mxu0 0
      %2559 = vmatmul.mubr.bf16.gmra.mrb[0].mxu0 %v2213
      %v2560 = vpop.f32.mrb[0].mxu0
      %v2561 = vadd.f32 %v2236, %v2560
      %v2562 = vpop.f32.mrb[0].mxu0
      %v2563 = vpop.f32.mrb[0].mxu0
      %v2564 = vadd.f32 %v2236, %v2563
      %v2565 = vpop.f32.mrb[0].mxu0
      %2566 = vmatprep.mubr.bf16.mxu0 0
      %2567 = vmatmul.mubr.bf16.gmra.mrb[0].mxu0 %v2214
      %v2568 = vpop.f32.mrb[0].mxu0
      %v2569 = vadd.f32 %v2236, %v2568
      %v2570 = vpop.f32.mrb[0].mxu0
      %v2571 = vpop.f32.mrb[0].mxu0
      %v2572 = vadd.f32 %v2236, %v2571
      %v2573 = vpop.f32.mrb[0].mxu0
      %2574 = vdwg.mxu0
      %v2575 = vadd.f32 %v2119, %v2321
      %v2576 = vadd.f32 %v2120, %v2324
      %v2577 = vadd.f32 %v2121, %v2329
      %v2578 = vadd.f32 %v2122, %v2332
      %v2579 = vadd.f32 %v2123, %v2337
      %v2580 = vadd.f32 %v2124, %v2340
      %v2581 = vadd.f32 %v2125, %v2345
      %v2582 = vadd.f32 %v2126, %v2348
      %v2583 = vadd.f32 %v2127, %v2353
      %v2584 = vadd.f32 %v2128, %v2356
      %v2585 = vadd.f32 %v2129, %v2361
      %v2586 = vadd.f32 %v2130, %v2364
      %v2587 = vadd.f32 %v2131, %v2369
      %v2588 = vadd.f32 %v2132, %v2372
      %v2589 = vadd.f32 %v2133, %v2377
      %v2590 = vadd.f32 %v2134, %v2380
      %v2591 = vadd.f32 %v2135, %v2385
      %v2592 = vadd.f32 %v2136, %v2388
      %v2593 = vadd.f32 %v2137, %v2393
      %v2594 = vadd.f32 %v2138, %v2396
      %v2595 = vadd.f32 %v2139, %v2401
      %v2596 = vadd.f32 %v2140, %v2404
      %v2597 = vadd.f32 %v2141, %v2409
      %v2598 = vadd.f32 %v2142, %v2412
      %v2599 = vadd.f32 %v2143, %v2417
      %v2600 = vadd.f32 %v2144, %v2420
      %v2601 = vadd.f32 %v2145, %v2425
      %v2602 = vadd.f32 %v2146, %v2428
      %v2603 = vadd.f32 %v2147, %v2433
      %v2604 = vadd.f32 %v2148, %v2436
      %v2605 = vadd.f32 %v2149, %v2441
      %v2606 = vadd.f32 %v2150, %v2444
      %v2607 = vadd.f32 %v2151, %v2449
      %v2608 = vadd.f32 %v2152, %v2452
      %v2609 = vadd.f32 %v2153, %v2457
      %v2610 = vadd.f32 %v2154, %v2460
      %v2611 = vadd.f32 %v2155, %v2465
      %v2612 = vadd.f32 %v2156, %v2468
      %v2613 = vadd.f32 %v2157, %v2473
      %v2614 = vadd.f32 %v2158, %v2476
      %v2615 = vadd.f32 %v2159, %v2481
      %v2616 = vadd.f32 %v2160, %v2484
      %v2617 = vadd.f32 %v2161, %v2489
      %v2618 = vadd.f32 %v2162, %v2492
      %v2619 = vadd.f32 %v2163, %v2497
      %v2620 = vadd.f32 %v2164, %v2500
      %v2621 = vadd.f32 %v2165, %v2505
      %v2622 = vadd.f32 %v2166, %v2508
      %v2623 = vadd.f32 %v2167, %v2513
      %v2624 = vadd.f32 %v2168, %v2516
      %v2625 = vadd.f32 %v2169, %v2521
      %v2626 = vadd.f32 %v2170, %v2524
      %v2627 = vadd.f32 %v2171, %v2529
      %v2628 = vadd.f32 %v2172, %v2532
      %v2629 = vadd.f32 %v2173, %v2537
      %v2630 = vadd.f32 %v2174, %v2540
      %v2631 = vadd.f32 %v2175, %v2545
      %v2632 = vadd.f32 %v2176, %v2548
      %v2633 = vadd.f32 %v2177, %v2553
      %v2634 = vadd.f32 %v2178, %v2556
      %v2635 = vadd.f32 %v2179, %v2561
      %v2636 = vadd.f32 %v2180, %v2564
      %v2637 = vadd.f32 %v2181, %v2569
      %v2638 = vadd.f32 %v2182, %v2572
      %2639 = vst [vmem:[%s334] sm:$0xff] %v2575
      %2640 = vst [vmem:[%s334 + $0x8] sm:$0xff] %v2576
      %2641 = vst [vmem:[%s334 + $0x10] sm:$0xff] %v2577
      %2642 = vst [vmem:[%s334 + $0x18] sm:$0xff] %v2578
      %2643 = vst [vmem:[%s334 + $0x20] sm:$0xff] %v2579
      %2644 = vst [vmem:[%s334 + $0x28] sm:$0xff] %v2580
      %2645 = vst [vmem:[%s334 + $0x30] sm:$0xff] %v2581
      %2646 = vst [vmem:[%s334 + $0x38] sm:$0xff] %v2582
      %2647 = vst [vmem:[%s334 + $0x40] sm:$0xff] %v2583
      %2648 = vst [vmem:[%s334 + $0x48] sm:$0xff] %v2584
      %2649 = vst [vmem:[%s334 + $0x50] sm:$0xff] %v2585
      %2650 = vst [vmem:[%s334 + $0x58] sm:$0xff] %v2586
      %2651 = vst [vmem:[%s334 + $0x60] sm:$0xff] %v2587
      %2652 = vst [vmem:[%s334 + $0x68] sm:$0xff] %v2588
      %2653 = vst [vmem:[%s334 + $0x70] sm:$0xff] %v2589
      %2654 = vst [vmem:[%s334 + $0x78] sm:$0xff] %v2590
      %2655 = vst [vmem:[%s334 + $0x80] sm:$0xff] %v2591
      %2656 = vst [vmem:[%s334 + $0x88] sm:$0xff] %v2592
      %2657 = vst [vmem:[%s334 + $0x90] sm:$0xff] %v2593
      %2658 = vst [vmem:[%s334 + $0x98] sm:$0xff] %v2594
      %2659 = vst [vmem:[%s334 + $0xa0] sm:$0xff] %v2595
      %2660 = vst [vmem:[%s334 + $0xa8] sm:$0xff] %v2596
      %2661 = vst [vmem:[%s334 + $0xb0] sm:$0xff] %v2597
      %2662 = vst [vmem:[%s334 + $0xb8] sm:$0xff] %v2598
      %2663 = vst [vmem:[%s334 + $0xc0] sm:$0xff] %v2599
      %2664 = vst [vmem:[%s334 + $0xc8] sm:$0xff] %v2600
      %2665 = vst [vmem:[%s334 + $0xd0] sm:$0xff] %v2601
      %2666 = vst [vmem:[%s334 + $0xd8] sm:$0xff] %v2602
      %2667 = vst [vmem:[%s334 + $0xe0] sm:$0xff] %v2603
      %2668 = vst [vmem:[%s334 + $0xe8] sm:$0xff] %v2604
      %2669 = vst [vmem:[%s334 + $0xf0] sm:$0xff] %v2605
      %2670 = vst [vmem:[%s334 + $0xf8] sm:$0xff] %v2606
      %2671 = vst [vmem:[%s334 + $0x100] sm:$0xff] %v2607
      %2672 = vst [vmem:[%s334 + $0x108] sm:$0xff] %v2608
      %2673 = vst [vmem:[%s334 + $0x110] sm:$0xff] %v2609
      %2674 = vst [vmem:[%s334 + $0x118] sm:$0xff] %v2610
      %2675 = vst [vmem:[%s334 + $0x120] sm:$0xff] %v2611
      %2676 = vst [vmem:[%s334 + $0x128] sm:$0xff] %v2612
      %2677 = vst [vmem:[%s334 + $0x130] sm:$0xff] %v2613
      %2678 = vst [vmem:[%s334 + $0x138] sm:$0xff] %v2614
      %2679 = vst [vmem:[%s334 + $0x140] sm:$0xff] %v2615
      %2680 = vst [vmem:[%s334 + $0x148] sm:$0xff] %v2616
      %2681 = vst [vmem:[%s334 + $0x150] sm:$0xff] %v2617
      %2682 = vst [vmem:[%s334 + $0x158] sm:$0xff] %v2618
      %2683 = vst [vmem:[%s334 + $0x160] sm:$0xff] %v2619
      %2684 = vst [vmem:[%s334 + $0x168] sm:$0xff] %v2620
      %2685 = vst [vmem:[%s334 + $0x170] sm:$0xff] %v2621
      %2686 = vst [vmem:[%s334 + $0x178] sm:$0xff] %v2622
      %2687 = vst [vmem:[%s334 + $0x180] sm:$0xff] %v2623
      %2688 = vst [vmem:[%s334 + $0x188] sm:$0xff] %v2624
      %2689 = vst [vmem:[%s334 + $0x190] sm:$0xff] %v2625
      %2690 = vst [vmem:[%s334 + $0x198] sm:$0xff] %v2626
      %2691 = vst [vmem:[%s334 + $0x1a0] sm:$0xff] %v2627
      %2692 = vst [vmem:[%s334 + $0x1a8] sm:$0xff] %v2628
      %2693 = vst [vmem:[%s334 + $0x1b0] sm:$0xff] %v2629
      %2694 = vst [vmem:[%s334 + $0x1b8] sm:$0xff] %v2630
      %2695 = vst [vmem:[%s334 + $0x1c0] sm:$0xff] %v2631
      %2696 = vst [vmem:[%s334 + $0x1c8] sm:$0xff] %v2632
      %2697 = vst [vmem:[%s334 + $0x1d0] sm:$0xff] %v2633
      %2698 = vst [vmem:[%s334 + $0x1d8] sm:$0xff] %v2634
      %2699 = vst [vmem:[%s334 + $0x1e0] sm:$0xff] %v2635
      %2700 = vst [vmem:[%s334 + $0x1e8] sm:$0xff] %v2636
      %2701 = vst [vmem:[%s334 + $0x1f0] sm:$0xff] %v2637
      %2702 = vst [vmem:[%s334 + $0x1f8] sm:$0xff] %v2638
      %s2703 = smul.u32 64, %s20
      %p2704 = scmp.lt.s32.totalorder %s2703, 127
      %s2705 = scalar_select %p2704, %s2703, 127
      %s2706 = smul.addr %s2705, 8
      %s2707 = scalar_lea.vmem %s9, %s2706
      // Predicated region
      $region57: #{network_forward.3} parent=55 // pred_check
        %p2708 = pneg %p232
      $region58: #{network_forward.3} parent=55 // pred_check_branch
        %2710 = sbr.rel (%p2708) target = $region60
      $region59: #{network_forward.3} parent=55 // pred_region
        %s2711 = smul.u32 64, %s20
      $region60: #{network_forward.3} parent=55 // pred_fallthru
        _
    $region56: #{network_forward.3} parent=5 // pred_fallthru
      _
    %p2712 = scmp.le.s32.totalorder 2, %s15
    // Predicated region
    $region61: #{network_forward.3} parent=5 // pred_check
      %p2713 = pneg %p2712
    $region62: #{network_forward.3} parent=5 // pred_check_branch
      %2715 = sbr.rel (%p2713) target = $region64
    $region63: #{network_forward.3} parent=5 // pred_region
      %s2716 = ssub.s32 %s15, 2
      // Predicated region
      $region65: #{network_forward.3} parent=63 // pred_check
        %p2717 = pneg %p238
      $region66: #{network_forward.3} parent=63 // pred_check_branch
        %2719 = sbr.rel (%p2717) target = $region68
      $region67: #{network_forward.3} parent=63 // pred_region
        %s2720 = smul.u32 64, %s21
        %p2721 = scmp.lt.s32.totalorder %s2720, 127
        %s2722 = scalar_select %p2721, %s2720, 127
        %s2723 = smul.addr %s2722, 8
        %s2724 = scalar_lea.vmem %s9, %s2723
      $region68: #{network_forward.3} parent=63 // pred_fallthru
        _
    $region64: #{network_forward.3} parent=5 // pred_fallthru
      _
  $region6: #{network_forward.3} parent=0 // loop_footer
    %s19 = sadd.s32 1, %s15
  $region7: #{network_forward.3} parent=0 // loop_footer_branch
    %14 = sbr.rel target = $region3
  $region8: #{network_forward.3} parent=0 // loop_exit
    _

</llo_original>
